<compile_context>
chip_gen: v6e
topology: v6e:2x2x1
jax: 0.10.0
libtpu: 0.0.40
codegen_flags: <defaults>
</compile_context>

<pallas_src>
import jax
import jax.numpy as jnp
import numpy as np
from jax.experimental import pallas as pl
from jax.experimental.pallas import tpu as pltpu

# ------------------------- LeNet static dimensions -------------------------
IMG = 32                 # input spatial size (32x32 needed for the 400-d flatten)
K = 5                    # conv kernel size
C_IN = 3                 # input channels
C1 = 6                   # conv1 output channels
C2 = 16                  # conv2 output channels
H1 = IMG - K + 1         # 28  conv1 output spatial
P1 = H1 // 2             # 14  pool1 output spatial
H2 = P1 - K + 1          # 10  conv2 output spatial
P2 = H2 // 2             # 5   pool2 output spatial
FEAT = C2 * P2 * P2      # 400 flattened features
FC1, FC2, FC3 = 120, 84, 10

BT = 8                   # images per grid step (batch tile)
ROWS = BT * IMG          # 256 rows per tile; row index = image*32 + column w


# ----------------------------------------------------------------------------
# In-kernel helpers (values only: unaligned row slices + lane concats + adds)
# ----------------------------------------------------------------------------
def _shift_cat(v, shifts):
    """Lane-concat row-shifted copies: out[i, s*W + l] = v[i + shifts[s], l]."""
    m = v.shape[0] - max(shifts)
    return jnp.concatenate([v[k:k + m, :] for k in shifts], axis=-1)


def _pair_avg(v, stride):
    """out[i, :] = 0.5 * (v[i, :] + v[i + stride, :])  (row-direction pooling)."""
    m = v.shape[0] - stride
    return 0.5 * (v[:m, :] + v[stride:stride + m, :])


# ----------------------------------------------------------------------------
# Fused kernel: rows = (image-in-tile, spatial column), lanes = (spatial row, C)
# ----------------------------------------------------------------------------
def _lenet_kernel(x_ref, w1_ref, b1_ref, w2_ref, b2_ref, pl1_ref, pl2_ref,
                  sel_ref, fc1w_ref, fc1b_ref, fc2w_ref, fc2b_ref,
                  fc3w_ref, fc3b_ref, out_ref):
    f32 = jnp.float32
    bf16 = jnp.bfloat16

    x = x_ref[...]                                          # (256, 96)  (b,w) x (h,ci)

    # conv1: one Toeplitz matmul for the whole batch tile.
    lhs1 = _shift_cat(x, (0, 1, 2, 3, 4)).astype(bf16)      # (252, 480) lanes=(kw,h,ci)
    a1 = jnp.tanh(jnp.dot(lhs1, w1_ref[...],
                          preferred_element_type=f32) + b1_ref[...])  # (252, 168) lanes=(oh,c)

    # pool1: oh-direction via lane matmul, ow-direction via row pair-average.
    h1 = jnp.dot(a1.astype(bf16), pl1_ref[...], preferred_element_type=f32)  # (252, 84)
    p1 = _pair_avg(h1, 1)                                   # (251, 84); rows 32b+2*pw valid

    # conv2 (input columns live on even rows -> shifts of 2).
    lhs2 = _shift_cat(p1, (0, 2, 4, 6, 8)).astype(bf16)     # (243, 420) lanes=(kw,ph,ci)
    a2 = jnp.tanh(jnp.dot(lhs2, w2_ref[...],
                          preferred_element_type=f32) + b2_ref[...])  # (243, 160) lanes=(qh,c)

    # pool2.
    h2 = jnp.dot(a2.astype(bf16), pl2_ref[...], preferred_element_type=f32)  # (243, 80)
    p2 = _pair_avg(h2, 2)                                   # (241, 80); rows 32b+4*rw valid

    # Gather the 5 pooled columns per image into one 400-wide feature row,
    # then compact rows {0, 32, 64, ...} to (BT, 400) with a tiny selection matmul.
    feat_rows = _shift_cat(p2, (0, 4, 8, 12, 16)).astype(bf16)          # (225, 400)
    feats = jnp.dot(sel_ref[...], feat_rows, preferred_element_type=f32)  # (BT, 400)

    # FC stack: tanh(fc1) -> tanh(fc2) -> fc3 logits.
    h = jnp.tanh(jnp.dot(feats.astype(bf16), fc1w_ref[...],
                         preferred_element_type=f32) + fc1b_ref[...])
    h = jnp.tanh(jnp.dot(h.astype(bf16), fc2w_ref[...],
                         preferred_element_type=f32) + fc2b_ref[...])
    logits = jnp.dot(h.astype(bf16), fc3w_ref[...],
                     preferred_element_type=f32) + fc3b_ref[...]
    out_ref[...] = logits.astype(out_ref.dtype)


# ----------------------------------------------------------------------------
# Trace-time weight / constant preparation
# ----------------------------------------------------------------------------
def _toeplitz_conv_weight(w, in_h, out_h):
    """(Cout,Cin,kh,kw) conv weight -> (K*in_h*Cin, out_h*Cout) Toeplitz matrix.

    RHS[kw*in_h*Cin + h*Cin + ci, oh*Cout + co] = w[co, ci, h-oh, kw] for
    0 <= h-oh < K, else 0.  Pairs with LHS rows (image, column) and lane order
    (kw, h, ci) built by _shift_cat in the kernel.
    """
    co, ci, kh, kw = w.shape
    wt = jnp.transpose(w, (3, 2, 1, 0)).astype(jnp.float32)          # (kw, kh, ci, co)
    sel = (np.arange(in_h)[None, :, None]
           == np.arange(out_h)[None, None, :] + np.arange(kh)[:, None, None])
    big = jnp.einsum('akco,khq->ahcqo', wt, jnp.asarray(sel, jnp.float32))
    return big.reshape(kw * in_h * ci, out_h * co)


def _lane_pool_matrix(spatial, chan):
    """Exact 2x avg-pool over the spatial index packed in lanes as (s, c)."""
    m = np.zeros((spatial * chan, (spatial // 2) * chan), np.float32)
    idx = np.arange(spatial * chan)
    m[idx, (idx // chan // 2) * chan + idx % chan] = 0.5
    return m


_PL1 = _lane_pool_matrix(H1, C1)                 # (168, 84)
_PL2 = _lane_pool_matrix(H2, C2)                 # (160, 80)
_SEL = np.zeros((BT, ROWS - 31), np.float32)     # picks row 32*i of each tile
_SEL[np.arange(BT), np.arange(BT) * IMG] = 1.0


# ----------------------------------------------------------------------------
# Wrapper: lane-dense packing + single pallas_call over batch tiles
# ----------------------------------------------------------------------------
def lenet_forward(x_nchw, params):
    bsz = x_nchw.shape[0]
    assert x_nchw.shape[1:] == (C_IN, IMG, IMG)
    steps = pl.cdiv(bsz, BT)
    bp = steps * BT

    # Lane-dense packing: x2d[b*32 + w, h*3 + ci] = x[b, ci, h, w].
    x2d = (jnp.transpose(x_nchw.astype(jnp.float32), (0, 3, 2, 1))
           .reshape(bsz * IMG, IMG * C_IN))
    if bp != bsz:
        x2d = jnp.concatenate(
            [x2d, jnp.zeros(((bp - bsz) * IMG, IMG * C_IN), jnp.float32)], axis=0)

    bf16 = jnp.bfloat16
    w1t = _toeplitz_conv_weight(params["conv1_w"], IMG, H1).astype(bf16)   # (480, 168)
    w2t = _toeplitz_conv_weight(params["conv2_w"], P1, H2).astype(bf16)    # (420, 160)
    b1t = jnp.tile(params["conv1_b"], H1).reshape(1, H1 * C1)              # (1, 168)
    b2t = jnp.tile(params["conv2_b"], H2).reshape(1, H2 * C2)              # (1, 160)
    # fc1 rows permuted from PyTorch's (C,H,W) flatten order to the kernel's
    # (rw, rh, c) feature order so no in-kernel transpose/flatten is needed.
    fc1p = (params["fc1_w"].reshape(C2, P2, P2, FC1)
            .transpose(2, 1, 0, 3).reshape(FEAT, FC1)).astype(bf16)

    def full(shape):
        return pl.BlockSpec(shape, lambda g: (0, 0))

    out = pl.pallas_call(
        _lenet_kernel,
        out_shape=jax.ShapeDtypeStruct((bp, FC3), jnp.float32),
        grid=(steps,),
        in_specs=[
            pl.BlockSpec((ROWS, IMG * C_IN), lambda g: (g, 0)),
            full((K * IMG * C_IN, H1 * C1)), full((1, H1 * C1)),
            full((K * P1 * C1, H2 * C2)), full((1, H2 * C2)),
            full((H1 * C1, P1 * C1)), full((H2 * C2, P2 * C2)),
            full((BT, ROWS - 31)),
            full((FEAT, FC1)), full((1, FC1)),
            full((FC1, FC2)), full((1, FC2)),
            full((FC2, FC3)), full((1, FC3)),
        ],
        out_specs=pl.BlockSpec((BT, FC3), lambda g: (g, 0)),
        compiler_params=pltpu.CompilerParams(
            dimension_semantics=("parallel",)),
    )(x2d, w1t, b1t, w2t, b2t,
      jnp.asarray(_PL1, bf16), jnp.asarray(_PL2, bf16), jnp.asarray(_SEL, bf16),
      fc1p, params["fc1_b"].reshape(1, FC1),
      params["fc2_w"].astype(bf16), params["fc2_b"].reshape(1, FC2),
      params["fc3_w"].astype(bf16), params["fc3_b"].reshape(1, FC3))
    return out[:bsz]


# ----------------------------------------------------------------------------
# Pure-JAX reference (NCHW, PyTorch semantics, f32)
# ----------------------------------------------------------------------------
def reference_forward(x_nchw, params):
    def conv(x, w, b):
        y = jax.lax.conv_general_dilated(
            x, w, window_strides=(1, 1), padding="VALID",
            dimension_numbers=("NCHW", "OIHW", "NCHW"))
        return y + b[None, :, None, None]

    def pool(x):
        bsz, c, h, w = x.shape
        return x.reshape(bsz, c, h // 2, 2, w // 2, 2).mean(axis=(3, 5))

    y = pool(jnp.tanh(conv(x_nchw, params["conv1_w"], params["conv1_b"])))
    y = pool(jnp.tanh(conv(y, params["conv2_w"], params["conv2_b"])))
    y = y.reshape(x_nchw.shape[0], -1)                 # (C,H,W) flatten order
    y = jnp.tanh(y @ params["fc1_w"] + params["fc1_b"])
    y = jnp.tanh(y @ params["fc2_w"] + params["fc2_b"])
    return y @ params["fc3_w"] + params["fc3_b"]


# ----------------------------------------------------------------------------
# Deterministic parameter init (shapes from LeNet.__init__)
# ----------------------------------------------------------------------------
def init_params(key):
    ks = jax.random.split(key, 10)

    def u(k, shape, fan_in):
        bound = 1.0 / np.sqrt(fan_in)
        return jax.random.uniform(k, shape, jnp.float32, -bound, bound)

    return {
        "conv1_w": u(ks[0], (C1, C_IN, K, K), C_IN * K * K),
        "conv1_b": u(ks[1], (C1,), C_IN * K * K),
        "conv2_w": u(ks[2], (C2, C1, K, K), C1 * K * K),
        "conv2_b": u(ks[3], (C2,), C1 * K * K),
        # Linear weights stored as (in, out); forward computes x @ W + b.
        "fc1_w": u(ks[4], (FEAT, FC1), FEAT),
        "fc1_b": u(ks[5], (FC1,), FEAT),
        "fc2_w": u(ks[6], (FC1, FC2), FC1),
        "fc2_b": u(ks[7], (FC2,), FC1),
        "fc3_w": u(ks[8], (FC2, FC3), FC2),
        "fc3_b": u(ks[9], (FC3,), FC2),
    }


if __name__ == "__main__":
    root = jax.random.PRNGKey(0)
    k_x, k_p = jax.random.split(root)
    # LeNet needs 32x32x3 input so the flatten yields 400 features.
    # batch=12 -> padded to 16 -> 2 grid steps of 8 images (exercises padding
    # and gives both v7x TensorCores a parallel grid step).
    batch = 12
    x = jax.random.normal(k_x, (batch, C_IN, IMG, IMG), jnp.float32)   # NCHW
    params = init_params(k_p)

    out = jax.block_until_ready(jax.jit(lenet_forward)(x, params))
    ref = jax.block_until_ready(reference_forward(x, params))

    assert out.shape == (batch, FC3), out.shape
    # bf16 MXU operands (f32 accumulate) => looser tolerance than pure-f32;
    # a layout/index bug would show up as O(0.3+) errors, far above this.
    np.testing.assert_allclose(np.asarray(out), np.asarray(ref),
                               atol=3e-2, rtol=3e-2)
    print("KERNEL_OK")
</pallas_src>

<mosaic_0001>
module attributes {stable_mosaic.version = 11 : i64} {
  func.func @_lenet_kernel(%arg0: i32, %arg1: memref<256x96xf32, #tpu.memory_space<vmem>>, %arg2: memref<480x168xbf16, #tpu.memory_space<vmem>>, %arg3: memref<1x168xf32, #tpu.memory_space<vmem>>, %arg4: memref<420x160xbf16, #tpu.memory_space<vmem>>, %arg5: memref<1x160xf32, #tpu.memory_space<vmem>>, %arg6: memref<168x84xbf16, #tpu.memory_space<vmem>>, %arg7: memref<160x80xbf16, #tpu.memory_space<vmem>>, %arg8: memref<8x225xbf16, #tpu.memory_space<vmem>>, %arg9: memref<400x120xbf16, #tpu.memory_space<vmem>>, %arg10: memref<1x120xf32, #tpu.memory_space<vmem>>, %arg11: memref<120x84xbf16, #tpu.memory_space<vmem>>, %arg12: memref<1x84xf32, #tpu.memory_space<vmem>>, %arg13: memref<84x10xbf16, #tpu.memory_space<vmem>>, %arg14: memref<1x10xf32, #tpu.memory_space<vmem>>, %arg15: memref<8x10xf32, #tpu.memory_space<vmem>>) attributes {dimension_semantics = [#tpu.dimension_semantics<parallel>], iteration_bounds = array<i64: 2>, scalar_prefetch = 0 : i64, scratch_operands = 0 : i64, tpu.core_type = #tpu.core_type<tc>, window_params = [{transform_indices = @transform_0, window_bounds = array<i64: 256, 96>}, {pipeline_mode = #tpu.pipeline_mode<synchronous>, transform_indices = @transform_1, window_bounds = array<i64: 480, 168>}, {pipeline_mode = #tpu.pipeline_mode<synchronous>, transform_indices = @transform_2, window_bounds = array<i64: 1, 168>}, {pipeline_mode = #tpu.pipeline_mode<synchronous>, transform_indices = @transform_3, window_bounds = array<i64: 420, 160>}, {pipeline_mode = #tpu.pipeline_mode<synchronous>, transform_indices = @transform_4, window_bounds = array<i64: 1, 160>}, {pipeline_mode = #tpu.pipeline_mode<synchronous>, transform_indices = @transform_5, window_bounds = array<i64: 168, 84>}, {pipeline_mode = #tpu.pipeline_mode<synchronous>, transform_indices = @transform_6, window_bounds = array<i64: 160, 80>}, {pipeline_mode = #tpu.pipeline_mode<synchronous>, transform_indices = @transform_7, window_bounds = array<i64: 8, 225>}, {pipeline_mode = #tpu.pipeline_mode<synchronous>, transform_indices = @transform_8, window_bounds = array<i64: 400, 120>}, {pipeline_mode = #tpu.pipeline_mode<synchronous>, transform_indices = @transform_9, window_bounds = array<i64: 1, 120>}, {pipeline_mode = #tpu.pipeline_mode<synchronous>, transform_indices = @transform_10, window_bounds = array<i64: 120, 84>}, {pipeline_mode = #tpu.pipeline_mode<synchronous>, transform_indices = @transform_11, window_bounds = array<i64: 1, 84>}, {pipeline_mode = #tpu.pipeline_mode<synchronous>, transform_indices = @transform_12, window_bounds = array<i64: 84, 10>}, {pipeline_mode = #tpu.pipeline_mode<synchronous>, transform_indices = @transform_13, window_bounds = array<i64: 1, 10>}, {transform_indices = @transform_14, window_bounds = array<i64: 8, 10>}]} {
    %c0 = arith.constant 0 : index
    %c0_0 = arith.constant 0 : index
    %0 = vector.load %arg1[%c0, %c0_0] : memref<256x96xf32, #tpu.memory_space<vmem>>, vector<256x96xf32>
    %1 = vector.extract_strided_slice %0 {offsets = [0, 0], sizes = [252, 96], strides = [1, 1]} : vector<256x96xf32> to vector<252x96xf32>
    %2 = vector.extract_strided_slice %0 {offsets = [1, 0], sizes = [252, 96], strides = [1, 1]} : vector<256x96xf32> to vector<252x96xf32>
    %3 = vector.extract_strided_slice %0 {offsets = [2, 0], sizes = [252, 96], strides = [1, 1]} : vector<256x96xf32> to vector<252x96xf32>
    %4 = vector.extract_strided_slice %0 {offsets = [3, 0], sizes = [252, 96], strides = [1, 1]} : vector<256x96xf32> to vector<252x96xf32>
    %5 = vector.extract_strided_slice %0 {offsets = [4, 0], sizes = [252, 96], strides = [1, 1]} : vector<256x96xf32> to vector<252x96xf32>
    %6 = tpu.concatenate %1, %2, %3, %4, %5 in 1 : vector<252x96xf32>, vector<252x96xf32>, vector<252x96xf32>, vector<252x96xf32>, vector<252x96xf32> -> vector<252x480xf32>
    %7 = arith.truncf %6 : vector<252x480xf32> to vector<252x480xbf16>
    %c0_1 = arith.constant 0 : index
    %c0_2 = arith.constant 0 : index
    %8 = vector.load %arg2[%c0_1, %c0_2] : memref<480x168xbf16, #tpu.memory_space<vmem>>, vector<480x168xbf16>
    %cst = arith.constant dense<0.000000e+00> : vector<252x168xf32>
    %9 = tpu.matmul %7, %8, %cst {dimension_numbers = #tpu.dot_dimension_numbers<[1], [0], [0], [1], [0, 0, 1, 1], [], []>} : vector<252x480xbf16>, vector<480x168xbf16>, vector<252x168xf32> -> vector<252x168xf32>
    %c0_3 = arith.constant 0 : index
    %c0_4 = arith.constant 0 : index
    %10 = vector.load %arg3[%c0_3, %c0_4] : memref<1x168xf32, #tpu.memory_space<vmem>>, vector<1x168xf32>
    %11 = vector.broadcast %10 : vector<1x168xf32> to vector<252x168xf32>
    %12 = arith.addf %9, %11 : vector<252x168xf32>
    %13 = math.tanh %12 : vector<252x168xf32>
    %14 = arith.truncf %13 : vector<252x168xf32> to vector<252x168xbf16>
    %c0_5 = arith.constant 0 : index
    %c0_6 = arith.constant 0 : index
    %15 = vector.load %arg6[%c0_5, %c0_6] : memref<168x84xbf16, #tpu.memory_space<vmem>>, vector<168x84xbf16>
    %cst_7 = arith.constant dense<0.000000e+00> : vector<252x84xf32>
    %16 = tpu.matmul %14, %15, %cst_7 {dimension_numbers = #tpu.dot_dimension_numbers<[1], [0], [0], [1], [0, 0, 1, 1], [], []>} : vector<252x168xbf16>, vector<168x84xbf16>, vector<252x84xf32> -> vector<252x84xf32>
    %17 = vector.extract_strided_slice %16 {offsets = [0, 0], sizes = [251, 84], strides = [1, 1]} : vector<252x84xf32> to vector<251x84xf32>
    %18 = vector.extract_strided_slice %16 {offsets = [1, 0], sizes = [251, 84], strides = [1, 1]} : vector<252x84xf32> to vector<251x84xf32>
    %19 = arith.addf %17, %18 : vector<251x84xf32>
    %cst_8 = arith.constant 5.000000e-01 : f32
    %20 = vector.broadcast %cst_8 : f32 to vector<251x84xf32>
    %21 = arith.mulf %20, %19 : vector<251x84xf32>
    %22 = vector.extract_strided_slice %21 {offsets = [0, 0], sizes = [243, 84], strides = [1, 1]} : vector<251x84xf32> to vector<243x84xf32>
    %23 = vector.extract_strided_slice %21 {offsets = [2, 0], sizes = [243, 84], strides = [1, 1]} : vector<251x84xf32> to vector<243x84xf32>
    %24 = vector.extract_strided_slice %21 {offsets = [4, 0], sizes = [243, 84], strides = [1, 1]} : vector<251x84xf32> to vector<243x84xf32>
    %25 = vector.extract_strided_slice %21 {offsets = [6, 0], sizes = [243, 84], strides = [1, 1]} : vector<251x84xf32> to vector<243x84xf32>
    %26 = vector.extract_strided_slice %21 {offsets = [8, 0], sizes = [243, 84], strides = [1, 1]} : vector<251x84xf32> to vector<243x84xf32>
    %27 = tpu.concatenate %22, %23, %24, %25, %26 in 1 : vector<243x84xf32>, vector<243x84xf32>, vector<243x84xf32>, vector<243x84xf32>, vector<243x84xf32> -> vector<243x420xf32>
    %28 = arith.truncf %27 : vector<243x420xf32> to vector<243x420xbf16>
    %c0_9 = arith.constant 0 : index
    %c0_10 = arith.constant 0 : index
    %29 = vector.load %arg4[%c0_9, %c0_10] : memref<420x160xbf16, #tpu.memory_space<vmem>>, vector<420x160xbf16>
    %cst_11 = arith.constant dense<0.000000e+00> : vector<243x160xf32>
    %30 = tpu.matmul %28, %29, %cst_11 {dimension_numbers = #tpu.dot_dimension_numbers<[1], [0], [0], [1], [0, 0, 1, 1], [], []>} : vector<243x420xbf16>, vector<420x160xbf16>, vector<243x160xf32> -> vector<243x160xf32>
    %c0_12 = arith.constant 0 : index
    %c0_13 = arith.constant 0 : index
    %31 = vector.load %arg5[%c0_12, %c0_13] : memref<1x160xf32, #tpu.memory_space<vmem>>, vector<1x160xf32>
    %32 = vector.broadcast %31 : vector<1x160xf32> to vector<243x160xf32>
    %33 = arith.addf %30, %32 : vector<243x160xf32>
    %34 = math.tanh %33 : vector<243x160xf32>
    %35 = arith.truncf %34 : vector<243x160xf32> to vector<243x160xbf16>
    %c0_14 = arith.constant 0 : index
    %c0_15 = arith.constant 0 : index
    %36 = vector.load %arg7[%c0_14, %c0_15] : memref<160x80xbf16, #tpu.memory_space<vmem>>, vector<160x80xbf16>
    %cst_16 = arith.constant dense<0.000000e+00> : vector<243x80xf32>
    %37 = tpu.matmul %35, %36, %cst_16 {dimension_numbers = #tpu.dot_dimension_numbers<[1], [0], [0], [1], [0, 0, 1, 1], [], []>} : vector<243x160xbf16>, vector<160x80xbf16>, vector<243x80xf32> -> vector<243x80xf32>
    %38 = vector.extract_strided_slice %37 {offsets = [0, 0], sizes = [241, 80], strides = [1, 1]} : vector<243x80xf32> to vector<241x80xf32>
    %39 = vector.extract_strided_slice %37 {offsets = [2, 0], sizes = [241, 80], strides = [1, 1]} : vector<243x80xf32> to vector<241x80xf32>
    %40 = arith.addf %38, %39 : vector<241x80xf32>
    %cst_17 = arith.constant 5.000000e-01 : f32
    %41 = vector.broadcast %cst_17 : f32 to vector<241x80xf32>
    %42 = arith.mulf %41, %40 : vector<241x80xf32>
    %43 = vector.extract_strided_slice %42 {offsets = [0, 0], sizes = [225, 80], strides = [1, 1]} : vector<241x80xf32> to vector<225x80xf32>
    %44 = vector.extract_strided_slice %42 {offsets = [4, 0], sizes = [225, 80], strides = [1, 1]} : vector<241x80xf32> to vector<225x80xf32>
    %45 = vector.extract_strided_slice %42 {offsets = [8, 0], sizes = [225, 80], strides = [1, 1]} : vector<241x80xf32> to vector<225x80xf32>
    %46 = vector.extract_strided_slice %42 {offsets = [12, 0], sizes = [225, 80], strides = [1, 1]} : vector<241x80xf32> to vector<225x80xf32>
    %47 = vector.extract_strided_slice %42 {offsets = [16, 0], sizes = [225, 80], strides = [1, 1]} : vector<241x80xf32> to vector<225x80xf32>
    %48 = tpu.concatenate %43, %44, %45, %46, %47 in 1 : vector<225x80xf32>, vector<225x80xf32>, vector<225x80xf32>, vector<225x80xf32>, vector<225x80xf32> -> vector<225x400xf32>
    %49 = arith.truncf %48 : vector<225x400xf32> to vector<225x400xbf16>
    %c0_18 = arith.constant 0 : index
    %c0_19 = arith.constant 0 : index
    %50 = vector.load %arg8[%c0_18, %c0_19] : memref<8x225xbf16, #tpu.memory_space<vmem>>, vector<8x225xbf16>
    %cst_20 = arith.constant dense<0.000000e+00> : vector<8x400xf32>
    %51 = tpu.matmul %50, %49, %cst_20 {dimension_numbers = #tpu.dot_dimension_numbers<[1], [0], [0], [1], [0, 0, 1, 1], [], []>} : vector<8x225xbf16>, vector<225x400xbf16>, vector<8x400xf32> -> vector<8x400xf32>
    %52 = arith.truncf %51 : vector<8x400xf32> to vector<8x400xbf16>
    %c0_21 = arith.constant 0 : index
    %c0_22 = arith.constant 0 : index
    %53 = vector.load %arg9[%c0_21, %c0_22] : memref<400x120xbf16, #tpu.memory_space<vmem>>, vector<400x120xbf16>
    %cst_23 = arith.constant dense<0.000000e+00> : vector<8x120xf32>
    %54 = tpu.matmul %52, %53, %cst_23 {dimension_numbers = #tpu.dot_dimension_numbers<[1], [0], [0], [1], [0, 0, 1, 1], [], []>} : vector<8x400xbf16>, vector<400x120xbf16>, vector<8x120xf32> -> vector<8x120xf32>
    %c0_24 = arith.constant 0 : index
    %c0_25 = arith.constant 0 : index
    %55 = vector.load %arg10[%c0_24, %c0_25] : memref<1x120xf32, #tpu.memory_space<vmem>>, vector<1x120xf32>
    %56 = vector.broadcast %55 : vector<1x120xf32> to vector<8x120xf32>
    %57 = arith.addf %54, %56 : vector<8x120xf32>
    %58 = math.tanh %57 : vector<8x120xf32>
    %59 = arith.truncf %58 : vector<8x120xf32> to vector<8x120xbf16>
    %c0_26 = arith.constant 0 : index
    %c0_27 = arith.constant 0 : index
    %60 = vector.load %arg11[%c0_26, %c0_27] : memref<120x84xbf16, #tpu.memory_space<vmem>>, vector<120x84xbf16>
    %cst_28 = arith.constant dense<0.000000e+00> : vector<8x84xf32>
    %61 = tpu.matmul %59, %60, %cst_28 {dimension_numbers = #tpu.dot_dimension_numbers<[1], [0], [0], [1], [0, 0, 1, 1], [], []>} : vector<8x120xbf16>, vector<120x84xbf16>, vector<8x84xf32> -> vector<8x84xf32>
    %c0_29 = arith.constant 0 : index
    %c0_30 = arith.constant 0 : index
    %62 = vector.load %arg12[%c0_29, %c0_30] : memref<1x84xf32, #tpu.memory_space<vmem>>, vector<1x84xf32>
    %63 = vector.broadcast %62 : vector<1x84xf32> to vector<8x84xf32>
    %64 = arith.addf %61, %63 : vector<8x84xf32>
    %65 = math.tanh %64 : vector<8x84xf32>
    %66 = arith.truncf %65 : vector<8x84xf32> to vector<8x84xbf16>
    %c0_31 = arith.constant 0 : index
    %c0_32 = arith.constant 0 : index
    %67 = vector.load %arg13[%c0_31, %c0_32] : memref<84x10xbf16, #tpu.memory_space<vmem>>, vector<84x10xbf16>
    %cst_33 = arith.constant dense<0.000000e+00> : vector<8x10xf32>
    %68 = tpu.matmul %66, %67, %cst_33 {dimension_numbers = #tpu.dot_dimension_numbers<[1], [0], [0], [1], [0, 0, 1, 1], [], []>} : vector<8x84xbf16>, vector<84x10xbf16>, vector<8x10xf32> -> vector<8x10xf32>
    %c0_34 = arith.constant 0 : index
    %c0_35 = arith.constant 0 : index
    %69 = vector.load %arg14[%c0_34, %c0_35] : memref<1x10xf32, #tpu.memory_space<vmem>>, vector<1x10xf32>
    %70 = vector.broadcast %69 : vector<1x10xf32> to vector<8x10xf32>
    %71 = arith.addf %68, %70 : vector<8x10xf32>
    %c0_36 = arith.constant 0 : index
    %c0_37 = arith.constant 0 : index
    %72 = vector.load %arg15[%c0_36, %c0_37] : memref<8x10xf32, #tpu.memory_space<vmem>>, vector<8x10xf32>
    tpu.vector_store %arg15[%c0_36, %c0_37], %71 {strides = array<i32>} : memref<8x10xf32, #tpu.memory_space<vmem>>, vector<8x10xf32>,
    return
  }
  func.func @transform_0(%arg0: i32) -> (i32, i32) {
    %c0_i32 = arith.constant 0 : i32
    %c0_i32_0 = arith.constant 0 : i32
    return %arg0, %c0_i32 : i32, i32
  }
  func.func @transform_1(%arg0: i32) -> (i32, i32) {
    %c0_i32 = arith.constant 0 : i32
    %c0_i32_0 = arith.constant 0 : i32
    %c0_i32_1 = arith.constant 0 : i32
    return %c0_i32, %c0_i32_0 : i32, i32
  }
  func.func @transform_2(%arg0: i32) -> (i32, i32) {
    %c0_i32 = arith.constant 0 : i32
    %c0_i32_0 = arith.constant 0 : i32
    %c0_i32_1 = arith.constant 0 : i32
    return %c0_i32, %c0_i32_0 : i32, i32
  }
  func.func @transform_3(%arg0: i32) -> (i32, i32) {
    %c0_i32 = arith.constant 0 : i32
    %c0_i32_0 = arith.constant 0 : i32
    %c0_i32_1 = arith.constant 0 : i32
    return %c0_i32, %c0_i32_0 : i32, i32
  }
  func.func @transform_4(%arg0: i32) -> (i32, i32) {
    %c0_i32 = arith.constant 0 : i32
    %c0_i32_0 = arith.constant 0 : i32
    %c0_i32_1 = arith.constant 0 : i32
    return %c0_i32, %c0_i32_0 : i32, i32
  }
  func.func @transform_5(%arg0: i32) -> (i32, i32) {
    %c0_i32 = arith.constant 0 : i32
    %c0_i32_0 = arith.constant 0 : i32
    %c0_i32_1 = arith.constant 0 : i32
    return %c0_i32, %c0_i32_0 : i32, i32
  }
  func.func @transform_6(%arg0: i32) -> (i32, i32) {
    %c0_i32 = arith.constant 0 : i32
    %c0_i32_0 = arith.constant 0 : i32
    %c0_i32_1 = arith.constant 0 : i32
    return %c0_i32, %c0_i32_0 : i32, i32
  }
  func.func @transform_7(%arg0: i32) -> (i32, i32) {
    %c0_i32 = arith.constant 0 : i32
    %c0_i32_0 = arith.constant 0 : i32
    %c0_i32_1 = arith.constant 0 : i32
    return %c0_i32, %c0_i32_0 : i32, i32
  }
  func.func @transform_8(%arg0: i32) -> (i32, i32) {
    %c0_i32 = arith.constant 0 : i32
    %c0_i32_0 = arith.constant 0 : i32
    %c0_i32_1 = arith.constant 0 : i32
    return %c0_i32, %c0_i32_0 : i32, i32
  }
  func.func @transform_9(%arg0: i32) -> (i32, i32) {
    %c0_i32 = arith.constant 0 : i32
    %c0_i32_0 = arith.constant 0 : i32
    %c0_i32_1 = arith.constant 0 : i32
    return %c0_i32, %c0_i32_0 : i32, i32
  }
  func.func @transform_10(%arg0: i32) -> (i32, i32) {
    %c0_i32 = arith.constant 0 : i32
    %c0_i32_0 = arith.constant 0 : i32
    %c0_i32_1 = arith.constant 0 : i32
    return %c0_i32, %c0_i32_0 : i32, i32
  }
  func.func @transform_11(%arg0: i32) -> (i32, i32) {
    %c0_i32 = arith.constant 0 : i32
    %c0_i32_0 = arith.constant 0 : i32
    %c0_i32_1 = arith.constant 0 : i32
    return %c0_i32, %c0_i32_0 : i32, i32
  }
  func.func @transform_12(%arg0: i32) -> (i32, i32) {
    %c0_i32 = arith.constant 0 : i32
    %c0_i32_0 = arith.constant 0 : i32
    %c0_i32_1 = arith.constant 0 : i32
    return %c0_i32, %c0_i32_0 : i32, i32
  }
  func.func @transform_13(%arg0: i32) -> (i32, i32) {
    %c0_i32 = arith.constant 0 : i32
    %c0_i32_0 = arith.constant 0 : i32
    %c0_i32_1 = arith.constant 0 : i32
    return %c0_i32, %c0_i32_0 : i32, i32
  }
  func.func @transform_14(%arg0: i32) -> (i32, i32) {
    %c0_i32 = arith.constant 0 : i32
    %c0_i32_0 = arith.constant 0 : i32
    return %arg0, %c0_i32 : i32, i32
  }
}

</mosaic_0001>

<llo_original>
// kernel: tile.13
$region0: #{tile.13}
  #allocation0 [shape = 's32[1]{0}', space=sflag, size = 0x4, scoped, tag = 'scoped memory for tile.13']
  %s0 = inlined_call_operand.vmem [shape: f32[6], index: 0, kind: input, shape index: {}]
  %s1 = inlined_call_operand.vmem [shape: f32[28,6], index: 1, kind: output, shape index: {}]
  // Predicated region
  $region2: #{tile.13} parent=0 // pred_check
    _
  $region3: #{tile.13} parent=0 // pred_check_branch
    %3 = sbr.rel (0) target = $region5
  $region4: #{tile.13} parent=0 // pred_region
    _
  $region5: #{tile.13} parent=0 // pred_fallthru
    _
  %v4 = vld [vmem:[%s0] ss:$0 sm:$0xff]
  %5 = vst [vmem:[%s1] sm:$0xff] %v4
  %s6 = scalar_lea.vmem %s1, 8
  %7 = vst [vmem:[%s6] sm:$0xff] %v4
  %s8 = scalar_lea.vmem %s1, 16
  %9 = vst [vmem:[%s8] sm:$0xff] %v4
  %s10 = scalar_lea.vmem %s1, 24
  %11 = vst [vmem:[%s10] sm:$0xff] %v4

// kernel: tile.14
$region0: #{tile.14}
  %s0 = inlined_call_operand.vmem [shape: f32[28,6], index: 0, kind: input, shape index: {}]
  %s1 = inlined_call_operand.vmem [shape: f32[1,168], index: 1, kind: output, shape index: {}]
  $region1: #{tile.14} parent=0
    #allocation0 [shape = 'u8[8192]{0}', space=vmem, size = 0x2000, scoped, tag = 'scoped mem for output reshape']
    %v2 = vld [vmem:[%s0] sm:$0x1]
    %vm3 = vcmask 48128
    %4 = vst.msk [vmem:[#allocation0] sm:$0x1] %vm3, %v2
    %s5 = scalar_lea.vmem %s0, 21
    %v6 = vld [vmem:[%s5] sm:$0x1]
    %s7 = scalar_lea.vmem %s0, 21
    %v8 = vld [vmem:[%s7] sm:$0x1]
    %vm9 = vcmask 15360
    %v10 = vsel %vm9, %v8, %v6
    %11 = vrot.lane.b32.xlu0 %v10, 126
    %v12 = vpop.permute.xlu0 %11
    %vm13 = vcmask 31744
    %s14 = scalar_lea.vmem [#allocation0], 8
    %15 = vst.msk [vmem:[%s14] sm:$0x1] %vm13, %v12
    %vm16 = vcmask 1048560
    %17 = vst.msk [vmem:[#allocation0] sm:$0x1] %vm16, %v12
    %s18 = scalar_lea.vmem %s0, 20
    %v19 = vld [vmem:[%s18] sm:$0x1]
    %20 = vrot.lane.b32.xlu0 %v19, 120
    %v21 = vpop.permute.xlu0 %20
    %vm22 = vcmask 1032128
    %23 = vst.msk [vmem:[#allocation0] sm:$0x1] %vm22, %v21
    %s24 = scalar_lea.vmem %s0, 19
    %v25 = vld [vmem:[%s24] sm:$0x1]
    %26 = vrot.lane.b32.xlu0 %v25, 114
    %v27 = vpop.permute.xlu0 %26
    %vm28 = vcmask 982928
    %29 = vst.msk [vmem:[#allocation0] sm:$0x1] %vm28, %v27
    %s30 = scalar_lea.vmem %s0, 18
    %v31 = vld [vmem:[%s30] sm:$0x1]
    %32 = vrot.lane.b32.xlu0 %v31, 108
    %v33 = vpop.permute.xlu0 %32
    %vm34 = vcmask 933728
    %35 = vst.msk [vmem:[#allocation0] sm:$0x1] %vm34, %v33
    %s36 = scalar_lea.vmem %s0, 17
    %v37 = vld [vmem:[%s36] sm:$0x1]
    %38 = vrot.lane.b32.xlu0 %v37, 102
    %v39 = vpop.permute.xlu0 %38
    %vm40 = vcmask 884528
    %41 = vst.msk [vmem:[#allocation0] sm:$0x1] %vm40, %v39
    %s42 = scalar_lea.vmem %s0, 16
    %v43 = vld [vmem:[%s42] sm:$0x1]
    %44 = vrot.lane.b32.xlu0 %v43, 96
    %v45 = vpop.permute.xlu0 %44
    %vm46 = vcmask 835328
    %47 = vst.msk [vmem:[#allocation0] sm:$0x1] %vm46, %v45
    %s48 = scalar_lea.vmem %s0, 15
    %v49 = vld [vmem:[%s48] sm:$0x1]
    %50 = vrot.lane.b32.xlu0 %v49, 90
    %v51 = vpop.permute.xlu0 %50
    %vm52 = vcmask 786128
    %53 = vst.msk [vmem:[#allocation0] sm:$0x1] %vm52, %v51
    %s54 = scalar_lea.vmem %s0, 14
    %v55 = vld [vmem:[%s54] sm:$0x1]
    %56 = vrot.lane.b32.xlu0 %v55, 84
    %v57 = vpop.permute.xlu0 %56
    %vm58 = vcmask 736928
    %59 = vst.msk [vmem:[#allocation0] sm:$0x1] %vm58, %v57
    %s60 = scalar_lea.vmem %s0, 13
    %v61 = vld [vmem:[%s60] sm:$0x1]
    %62 = vrot.lane.b32.xlu0 %v61, 78
    %v63 = vpop.permute.xlu0 %62
    %vm64 = vcmask 687728
    %65 = vst.msk [vmem:[#allocation0] sm:$0x1] %vm64, %v63
    %s66 = scalar_lea.vmem %s0, 12
    %v67 = vld [vmem:[%s66] sm:$0x1]
    %68 = vrot.lane.b32.xlu0 %v67, 72
    %v69 = vpop.permute.xlu0 %68
    %vm70 = vcmask 638528
    %71 = vst.msk [vmem:[#allocation0] sm:$0x1] %vm70, %v69
    %s72 = scalar_lea.vmem %s0, 11
    %v73 = vld [vmem:[%s72] sm:$0x1]
    %74 = vrot.lane.b32.xlu0 %v73, 66
    %v75 = vpop.permute.xlu0 %74
    %vm76 = vcmask 589328
    %77 = vst.msk [vmem:[#allocation0] sm:$0x1] %vm76, %v75
    %s78 = scalar_lea.vmem %s0, 10
    %v79 = vld [vmem:[%s78] sm:$0x1]
    %80 = vrot.lane.b32.xlu0 %v79, 60
    %v81 = vpop.permute.xlu0 %80
    %vm82 = vcmask 540128
    %83 = vst.msk [vmem:[#allocation0] sm:$0x1] %vm82, %v81
    %s84 = scalar_lea.vmem %s0, 9
    %v85 = vld [vmem:[%s84] sm:$0x1]
    %86 = vrot.lane.b32.xlu0 %v85, 54
    %v87 = vpop.permute.xlu0 %86
    %vm88 = vcmask 490928
    %89 = vst.msk [vmem:[#allocation0] sm:$0x1] %vm88, %v87
    %s90 = scalar_lea.vmem %s0, 8
    %v91 = vld [vmem:[%s90] sm:$0x1]
    %92 = vrot.lane.b32.xlu0 %v91, 48
    %v93 = vpop.permute.xlu0 %92
    %vm94 = vcmask 441728
    %95 = vst.msk [vmem:[#allocation0] sm:$0x1] %vm94, %v93
    %s96 = scalar_lea.vmem %s0, 7
    %v97 = vld [vmem:[%s96] sm:$0x1]
    %98 = vrot.lane.b32.xlu0 %v97, 42
    %v99 = vpop.permute.xlu0 %98
    %vm100 = vcmask 392528
    %101 = vst.msk [vmem:[#allocation0] sm:$0x1] %vm100, %v99
    %s102 = scalar_lea.vmem %s0, 6
    %v103 = vld [vmem:[%s102] sm:$0x1]
    %104 = vrot.lane.b32.xlu0 %v103, 36
    %v105 = vpop.permute.xlu0 %104
    %vm106 = vcmask 343328
    %107 = vst.msk [vmem:[#allocation0] sm:$0x1] %vm106, %v105
    %s108 = scalar_lea.vmem %s0, 27
    %v109 = vld [vmem:[%s108] sm:$0x1]
    %110 = vrot.lane.b32.xlu0 %v109, 34
    %v111 = vpop.permute.xlu0 %110
    %vm112 = vcmask 326928
    %s113 = scalar_lea.vmem [#allocation0], 8
    %114 = vst.msk [vmem:[%s113] sm:$0x1] %vm112, %v111
    %s115 = scalar_lea.vmem %s0, 5
    %v116 = vld [vmem:[%s115] sm:$0x1]
    %117 = vrot.lane.b32.xlu0 %v116, 30
    %v118 = vpop.permute.xlu0 %117
    %vm119 = vcmask 294128
    %120 = vst.msk [vmem:[#allocation0] sm:$0x1] %vm119, %v118
    %s121 = scalar_lea.vmem %s0, 26
    %v122 = vld [vmem:[%s121] sm:$0x1]
    %123 = vrot.lane.b32.xlu0 %v122, 28
    %v124 = vpop.permute.xlu0 %123
    %vm125 = vcmask 277728
    %s126 = scalar_lea.vmem [#allocation0], 8
    %127 = vst.msk [vmem:[%s126] sm:$0x1] %vm125, %v124
    %s128 = scalar_lea.vmem %s0, 4
    %v129 = vld [vmem:[%s128] sm:$0x1]
    %130 = vrot.lane.b32.xlu0 %v129, 24
    %v131 = vpop.permute.xlu0 %130
    %vm132 = vcmask 244928
    %133 = vst.msk [vmem:[#allocation0] sm:$0x1] %vm132, %v131
    %s134 = scalar_lea.vmem %s0, 25
    %v135 = vld [vmem:[%s134] sm:$0x1]
    %136 = vrot.lane.b32.xlu0 %v135, 22
    %v137 = vpop.permute.xlu0 %136
    %vm138 = vcmask 228528
    %s139 = scalar_lea.vmem [#allocation0], 8
    %140 = vst.msk [vmem:[%s139] sm:$0x1] %vm138, %v137
    %s141 = scalar_lea.vmem %s0, 3
    %v142 = vld [vmem:[%s141] sm:$0x1]
    %143 = vrot.lane.b32.xlu0 %v142, 18
    %v144 = vpop.permute.xlu0 %143
    %vm145 = vcmask 195728
    %146 = vst.msk [vmem:[#allocation0] sm:$0x1] %vm145, %v144
    %s147 = scalar_lea.vmem %s0, 24
    %v148 = vld [vmem:[%s147] sm:$0x1]
    %149 = vrot.lane.b32.xlu0 %v148, 16
    %v150 = vpop.permute.xlu0 %149
    %vm151 = vcmask 179328
    %s152 = scalar_lea.vmem [#allocation0], 8
    %153 = vst.msk [vmem:[%s152] sm:$0x1] %vm151, %v150
    %s154 = scalar_lea.vmem %s0, 2
    %v155 = vld [vmem:[%s154] sm:$0x1]
    %156 = vrot.lane.b32.xlu0 %v155, 12
    %v157 = vpop.permute.xlu0 %156
    %vm158 = vcmask 146528
    %159 = vst.msk [vmem:[#allocation0] sm:$0x1] %vm158, %v157
    %s160 = scalar_lea.vmem %s0, 23
    %v161 = vld [vmem:[%s160] sm:$0x1]
    %162 = vrot.lane.b32.xlu0 %v161, 10
    %v163 = vpop.permute.xlu0 %162
    %vm164 = vcmask 130128
    %s165 = scalar_lea.vmem [#allocation0], 8
    %166 = vst.msk [vmem:[%s165] sm:$0x1] %vm164, %v163
    %s167 = scalar_lea.vmem %s0, 1
    %v168 = vld [vmem:[%s167] sm:$0x1]
    %169 = vrot.lane.b32.xlu0 %v168, 6
    %v170 = vpop.permute.xlu0 %169
    %vm171 = vcmask 97328
    %172 = vst.msk [vmem:[#allocation0] sm:$0x1] %vm171, %v170
    %s173 = scalar_lea.vmem %s0, 22
    %v174 = vld [vmem:[%s173] sm:$0x1]
    %175 = vrot.lane.b32.xlu0 %v174, 4
    %v176 = vpop.permute.xlu0 %175
    %vm177 = vcmask 80928
    %s178 = scalar_lea.vmem [#allocation0], 8
    %179 = vst.msk [vmem:[%s178] sm:$0x1] %vm177, %v176
    %s181 = sshll.u32 1, 1
    %s182 = ssub.s32 %s181, 1
    %v184 = vld [vmem:[#allocation0] sm:%s182]
    %s185 = sshll.u32 1, 1
    %s186 = ssub.s32 %s185, 1
    %187 = vst [vmem:[%s1] sm:%s186] %v184
    %s188 = scalar_lea.vmem [#allocation0], 8
    %v189 = vld [vmem:[%s188] sm:%s182]
    %s190 = sshll.u32 1, 1
    %s191 = ssub.s32 %s190, 1
    %s192 = scalar_lea.vmem %s1, 1
    %193 = vst [vmem:[%s192] sm:%s191] %v189

// kernel: tile.18
$region0: #{tile.18}
  #allocation0 [shape = 's32[1]{0}', space=sflag, size = 0x4, scoped, tag = 'scoped memory for tile.18']
  %s0 = inlined_call_operand.vmem [shape: f32[16], index: 0, kind: input, shape index: {}]
  %s1 = inlined_call_operand.vmem [shape: f32[10,16], index: 1, kind: output, shape index: {}]
  // Predicated region
  $region2: #{tile.18} parent=0 // pred_check
    _
  $region3: #{tile.18} parent=0 // pred_check_branch
    %3 = sbr.rel (0) target = $region5
  $region4: #{tile.18} parent=0 // pred_region
    _
  $region5: #{tile.18} parent=0 // pred_fallthru
    _
  %v4 = vld [vmem:[%s0] ss:$0 sm:$0xff]
  %5 = vst [vmem:[%s1] sm:$0xff] %v4
  %s6 = scalar_lea.vmem %s1, 8
  %7 = vst [vmem:[%s6] sm:$0xff] %v4

// kernel: tile.19
$region0: #{tile.19}
  %s0 = inlined_call_operand.vmem [shape: f32[10,16], index: 0, kind: input, shape index: {}]
  %s1 = inlined_call_operand.vmem [shape: f32[1,160], index: 1, kind: output, shape index: {}]
  $region1: #{tile.19} parent=0
    #allocation0 [shape = 'u8[8192]{0}', space=vmem, size = 0x2000, scoped, tag = 'scoped mem for output reshape']
    %s2 = smov 3
    %v3 = vld [vmem:[%s0] ss:$8 sm:%s2]
    %vm4 = vcmask 130048
    %5 = vst.msk [vmem:[#allocation0] ss:$8 sm:$0x3] %vm4, %v3
    %s6 = scalar_lea.vmem %s0, 7
    %v7 = vld [vmem:[%s6] sm:$0x1]
    %8 = vrot.lane.b32.xlu0 %v7, 112
    %v9 = vpop.permute.xlu0 %8
    %vm10 = vcmask 1048448
    %11 = vst.msk [vmem:[#allocation0] sm:$0x1] %vm10, %v9
    %s12 = scalar_lea.vmem %s0, 6
    %v13 = vld [vmem:[%s12] sm:$0x1]
    %14 = vrot.lane.b32.xlu0 %v13, 96
    %v15 = vpop.permute.xlu0 %14
    %vm16 = vcmask 917248
    %17 = vst.msk [vmem:[#allocation0] sm:$0x1] %vm16, %v15
    %s18 = scalar_lea.vmem %s0, 5
    %v19 = vld [vmem:[%s18] sm:$0x1]
    %20 = vrot.lane.b32.xlu0 %v19, 80
    %v21 = vpop.permute.xlu0 %20
    %vm22 = vcmask 786048
    %23 = vst.msk [vmem:[#allocation0] sm:$0x1] %vm22, %v21
    %s24 = scalar_lea.vmem %s0, 4
    %v25 = vld [vmem:[%s24] sm:$0x1]
    %26 = vrot.lane.b32.xlu0 %v25, 64
    %v27 = vpop.permute.xlu0 %26
    %vm28 = vcmask 654848
    %29 = vst.msk [vmem:[#allocation0] sm:$0x1] %vm28, %v27
    %s30 = scalar_lea.vmem %s0, 3
    %v31 = vld [vmem:[%s30] sm:$0x1]
    %32 = vrot.lane.b32.xlu0 %v31, 48
    %v33 = vpop.permute.xlu0 %32
    %vm34 = vcmask 523648
    %35 = vst.msk [vmem:[#allocation0] sm:$0x1] %vm34, %v33
    %s36 = scalar_lea.vmem %s0, 2
    %v37 = vld [vmem:[%s36] sm:$0x1]
    %38 = vrot.lane.b32.xlu0 %v37, 32
    %v39 = vpop.permute.xlu0 %38
    %vm40 = vcmask 392448
    %41 = vst.msk [vmem:[#allocation0] sm:$0x1] %vm40, %v39
    %s42 = scalar_lea.vmem %s0, 1
    %s43 = smov 3
    %v44 = vld [vmem:[%s42] ss:$8 sm:%s43]
    %45 = vrot.lane.b32.xlu0 %v44, 16
    %v46 = vpop.permute.xlu0 %45
    %vm47 = vcmask 261248
    %48 = vst.msk [vmem:[#allocation0] ss:$8 sm:$0x3] %vm47, %v46
    %s50 = sshll.u32 1, 1
    %s51 = ssub.s32 %s50, 1
    %v53 = vld [vmem:[#allocation0] sm:%s51]
    %s54 = sshll.u32 1, 1
    %s55 = ssub.s32 %s54, 1
    %56 = vst [vmem:[%s1] sm:%s55] %v53
    %s57 = scalar_lea.vmem [#allocation0], 8
    %v58 = vld [vmem:[%s57] sm:%s51]
    %s59 = sshll.u32 1, 1
    %s60 = ssub.s32 %s59, 1
    %s61 = scalar_lea.vmem %s1, 1
    %62 = vst [vmem:[%s61] sm:%s60] %v58

// kernel: lenet_forward.1
$region0: #{lenet_forward.1}
  #allocation0 [shape = 'u32[]', space=smem, size = 0x4, offset = 0x4, fixed_abs, tag = 'smem constant byte address 0x4 - core index']
  #allocation1 [shape = 'u32[144,128]{1,0:T(1,128)}', space=vmem, size = 0x12000, scoped, tag = 'internal scratch']
  %s0 = inlined_call_operand.vmem [shape: f32[512,96], index: 0, kind: input, shape index: {}]
  %s1 = inlined_call_operand.vmem [shape: bf16[480,168], index: 1, kind: input, shape index: {}]
  %s2 = inlined_call_operand.vmem [shape: f32[1,168], index: 2, kind: input, shape index: {}]
  %s3 = inlined_call_operand.vmem [shape: bf16[420,160], index: 3, kind: input, shape index: {}]
  %s4 = inlined_call_operand.vmem [shape: f32[1,160], index: 4, kind: input, shape index: {}]
  %s5 = inlined_call_operand.vmem [shape: bf16[168,84], index: 5, kind: input, shape index: {}]
  %s6 = inlined_call_operand.vmem [shape: bf16[160,80], index: 6, kind: input, shape index: {}]
  %s7 = inlined_call_operand.vmem [shape: bf16[8,225], index: 7, kind: input, shape index: {}]
  %s8 = inlined_call_operand.vmem [shape: bf16[400,120], index: 8, kind: input, shape index: {}]
  %s9 = inlined_call_operand.vmem [shape: f32[1,120], index: 9, kind: input, shape index: {}]
  %s10 = inlined_call_operand.vmem [shape: bf16[120,84], index: 10, kind: input, shape index: {}]
  %s11 = inlined_call_operand.vmem [shape: f32[1,84], index: 11, kind: input, shape index: {}]
  %s12 = inlined_call_operand.vmem [shape: bf16[84,10], index: 12, kind: input, shape index: {}]
  %s13 = inlined_call_operand.vmem [shape: f32[1,10], index: 13, kind: input, shape index: {}]
  %s14 = inlined_call_operand.hbm [shape: f32[16,10], index: 14, kind: output, shape index: {}]
  %s15 = sld [smem:[#allocation0]]
  $region89: #{lenet_forward.1} parent=0
    _
  %s17 = ssub.s32 1, %s15
  %s18 = scalar_select 0, %s17, %s15
  $region1: #{lenet_forward.1} parent=0
    #allocation2 [shape = 'u8[8192]{0}', space=vmem, size = 0x2000, scoped, tag = 'output window, operand 0']
    #allocation3 [shape = 's32[2]{0}', space=sflag, size = 0x8, scoped, tag = 'scoped memory for lenet_forward.1']
    %19 = vsyncpa [#allocation3], 0
    %s20 = scalar_lea.sflag [#allocation3], 1
    %21 = vsyncpa %s20, 0
    loop: start=0, step=1, limit=4
    $region2: #{lenet_forward.1} parent=1 // loop_pre_header
      _
    $region3: #{lenet_forward.1} parent=1 // loop_header
      %s23 = sphi 0, %s27
      %p24 = scmp.ge.s32.totalorder %s23, 4
      %s33 = sphi 0, %s35
      %s36 = sphi 0, %s33
      %s37 = sphi 0, %s36
      %s53 = sphi 0, %s37
      %s57 = sphi 0, %s57
      %s59 = sphi 0, %s57
      %s60 = sphi 0, %s59
      %s74 = sphi 0, %s60
      %s78 = sphi 0, %s78
      %s80 = sphi 0, %s78
      %s81 = sphi 0, %s80
      %s95 = sphi 0, %s81
      %s99 = sphi 0, %s99
      %s101 = sphi 0, %s99
      %s102 = sphi 0, %s101
      %s116 = sphi 0, %s102
      %s120 = sphi 0, %s120
      %s122 = sphi 0, %s120
      %s123 = sphi 0, %s122
      %s137 = sphi 0, %s123
      %s141 = sphi 0, %s141
      %s143 = sphi 0, %s141
      %s144 = sphi 0, %s143
      %s158 = sphi 0, %s144
      %s162 = sphi 0, %s162
      %s164 = sphi 0, %s162
      %s165 = sphi 0, %s164
      %s179 = sphi 0, %s165
      %s183 = sphi 0, %s183
      %s185 = sphi 0, %s183
      %s186 = sphi 0, %s185
      %s200 = sphi 0, %s186
      %s204 = sphi 0, %s204
      %s206 = sphi 0, %s204
      %s207 = sphi 0, %s206
      %s221 = sphi 0, %s207
      %s225 = sphi 0, %s225
      %s227 = sphi 0, %s225
      %s228 = sphi 0, %s227
      %s242 = sphi 0, %s228
      %s246 = sphi 0, %s246
      %s248 = sphi 0, %s246
      %s249 = sphi 0, %s248
      %s263 = sphi 0, %s249
      %s267 = sphi 0, %s267
      %s269 = sphi 0, %s267
      %s270 = sphi 0, %s269
      %s284 = sphi 0, %s270
      %s288 = sphi 0, %s288
      %s290 = sphi 0, %s288
      %s291 = sphi 0, %s290
      %s305 = sphi 0, %s291
      %s309 = sphi 0, %s309
      %s311 = sphi 0, %s309
      %s312 = sphi 0, %s311
      %s326 = sphi 0, %s312
      %s332 = sphi 0, %s334
      %s335 = sphi 0, %s332
      %s336 = sphi 0, %s335
      %s352 = sphi 0, %s336
    $region4: #{lenet_forward.1} parent=1 // loop_header_branch
      %26 = sbr.rel (%p24) target = $region8
    $region5: #{lenet_forward.1} parent=1 // loop_body
      %s28 = ssub.s32 %s23, 1
      %s29 = ssub.s32 %s23, 2
      %s30 = sadd.s32 %s23, 1
      %s31 = ssub.s32 %s23, %s30
      %p32 = scmp.eq.s32.totalorder %s31, 0
      %s34 = sadd.s32 %s33, 1
      %s35 = scalar_select %p32, %s33, %s34
      %p38 = pneg %p32
      %p39 = scmp.eq.s32.totalorder %s23, 1
      %p40 = por %p38, %p39
      %p41 = scmp.ne.s32.totalorder %s33, %s36
      %p42 = scmp.eq.s32.totalorder %s23, 0
      %p43 = por %p41, %p42
      %p44 = scmp.ne.s32.totalorder %s33, %s36
      %p45 = scmp.eq.s32.totalorder %s28, 1
      %p46 = por %p44, %p45
      %p47 = scmp.ne.s32.totalorder %s36, %s37
      %p48 = scmp.eq.s32.totalorder %s28, 0
      %p49 = por %p47, %p48
      %p50 = scmp.ne.s32.totalorder %s36, %s37
      %p51 = scmp.eq.s32.totalorder %s29, 1
      %p52 = por %p50, %p51
      %p54 = scmp.ne.s32.totalorder %s37, %s53
      %p55 = scmp.eq.s32.totalorder %s29, 0
      %p56 = por %p54, %p55
      %s58 = sadd.s32 %s57, 1
      %p61 = scmp.eq.s32.totalorder %s23, 1
      %p62 = scmp.ne.s32.totalorder %s57, %s59
      %p63 = scmp.eq.s32.totalorder %s23, 0
      %p64 = por %p62, %p63
      %p65 = scmp.ne.s32.totalorder %s57, %s59
      %p66 = scmp.eq.s32.totalorder %s28, 1
      %p67 = por %p65, %p66
      %p68 = scmp.ne.s32.totalorder %s59, %s60
      %p69 = scmp.eq.s32.totalorder %s28, 0
      %p70 = por %p68, %p69
      %p71 = scmp.ne.s32.totalorder %s59, %s60
      %p72 = scmp.eq.s32.totalorder %s29, 1
      %p73 = por %p71, %p72
      %p75 = scmp.ne.s32.totalorder %s60, %s74
      %p76 = scmp.eq.s32.totalorder %s29, 0
      %p77 = por %p75, %p76
      %s79 = sadd.s32 %s78, 1
      %p82 = scmp.eq.s32.totalorder %s23, 1
      %p83 = scmp.ne.s32.totalorder %s78, %s80
      %p84 = scmp.eq.s32.totalorder %s23, 0
      %p85 = por %p83, %p84
      %p86 = scmp.ne.s32.totalorder %s78, %s80
      %p87 = scmp.eq.s32.totalorder %s28, 1
      %p88 = por %p86, %p87
      %p89 = scmp.ne.s32.totalorder %s80, %s81
      %p90 = scmp.eq.s32.totalorder %s28, 0
      %p91 = por %p89, %p90
      %p92 = scmp.ne.s32.totalorder %s80, %s81
      %p93 = scmp.eq.s32.totalorder %s29, 1
      %p94 = por %p92, %p93
      %p96 = scmp.ne.s32.totalorder %s81, %s95
      %p97 = scmp.eq.s32.totalorder %s29, 0
      %p98 = por %p96, %p97
      %s100 = sadd.s32 %s99, 1
      %p103 = scmp.eq.s32.totalorder %s23, 1
      %p104 = scmp.ne.s32.totalorder %s99, %s101
      %p105 = scmp.eq.s32.totalorder %s23, 0
      %p106 = por %p104, %p105
      %p107 = scmp.ne.s32.totalorder %s99, %s101
      %p108 = scmp.eq.s32.totalorder %s28, 1
      %p109 = por %p107, %p108
      %p110 = scmp.ne.s32.totalorder %s101, %s102
      %p111 = scmp.eq.s32.totalorder %s28, 0
      %p112 = por %p110, %p111
      %p113 = scmp.ne.s32.totalorder %s101, %s102
      %p114 = scmp.eq.s32.totalorder %s29, 1
      %p115 = por %p113, %p114
      %p117 = scmp.ne.s32.totalorder %s102, %s116
      %p118 = scmp.eq.s32.totalorder %s29, 0
      %p119 = por %p117, %p118
      %s121 = sadd.s32 %s120, 1
      %p124 = scmp.eq.s32.totalorder %s23, 1
      %p125 = scmp.ne.s32.totalorder %s120, %s122
      %p126 = scmp.eq.s32.totalorder %s23, 0
      %p127 = por %p125, %p126
      %p128 = scmp.ne.s32.totalorder %s120, %s122
      %p129 = scmp.eq.s32.totalorder %s28, 1
      %p130 = por %p128, %p129
      %p131 = scmp.ne.s32.totalorder %s122, %s123
      %p132 = scmp.eq.s32.totalorder %s28, 0
      %p133 = por %p131, %p132
      %p134 = scmp.ne.s32.totalorder %s122, %s123
      %p135 = scmp.eq.s32.totalorder %s29, 1
      %p136 = por %p134, %p135
      %p138 = scmp.ne.s32.totalorder %s123, %s137
      %p139 = scmp.eq.s32.totalorder %s29, 0
      %p140 = por %p138, %p139
      %s142 = sadd.s32 %s141, 1
      %p145 = scmp.eq.s32.totalorder %s23, 1
      %p146 = scmp.ne.s32.totalorder %s141, %s143
      %p147 = scmp.eq.s32.totalorder %s23, 0
      %p148 = por %p146, %p147
      %p149 = scmp.ne.s32.totalorder %s141, %s143
      %p150 = scmp.eq.s32.totalorder %s28, 1
      %p151 = por %p149, %p150
      %p152 = scmp.ne.s32.totalorder %s143, %s144
      %p153 = scmp.eq.s32.totalorder %s28, 0
      %p154 = por %p152, %p153
      %p155 = scmp.ne.s32.totalorder %s143, %s144
      %p156 = scmp.eq.s32.totalorder %s29, 1
      %p157 = por %p155, %p156
      %p159 = scmp.ne.s32.totalorder %s144, %s158
      %p160 = scmp.eq.s32.totalorder %s29, 0
      %p161 = por %p159, %p160
      %s163 = sadd.s32 %s162, 1
      %p166 = scmp.eq.s32.totalorder %s23, 1
      %p167 = scmp.ne.s32.totalorder %s162, %s164
      %p168 = scmp.eq.s32.totalorder %s23, 0
      %p169 = por %p167, %p168
      %p170 = scmp.ne.s32.totalorder %s162, %s164
      %p171 = scmp.eq.s32.totalorder %s28, 1
      %p172 = por %p170, %p171
      %p173 = scmp.ne.s32.totalorder %s164, %s165
      %p174 = scmp.eq.s32.totalorder %s28, 0
      %p175 = por %p173, %p174
      %p176 = scmp.ne.s32.totalorder %s164, %s165
      %p177 = scmp.eq.s32.totalorder %s29, 1
      %p178 = por %p176, %p177
      %p180 = scmp.ne.s32.totalorder %s165, %s179
      %p181 = scmp.eq.s32.totalorder %s29, 0
      %p182 = por %p180, %p181
      %s184 = sadd.s32 %s183, 1
      %p187 = scmp.eq.s32.totalorder %s23, 1
      %p188 = scmp.ne.s32.totalorder %s183, %s185
      %p189 = scmp.eq.s32.totalorder %s23, 0
      %p190 = por %p188, %p189
      %p191 = scmp.ne.s32.totalorder %s183, %s185
      %p192 = scmp.eq.s32.totalorder %s28, 1
      %p193 = por %p191, %p192
      %p194 = scmp.ne.s32.totalorder %s185, %s186
      %p195 = scmp.eq.s32.totalorder %s28, 0
      %p196 = por %p194, %p195
      %p197 = scmp.ne.s32.totalorder %s185, %s186
      %p198 = scmp.eq.s32.totalorder %s29, 1
      %p199 = por %p197, %p198
      %p201 = scmp.ne.s32.totalorder %s186, %s200
      %p202 = scmp.eq.s32.totalorder %s29, 0
      %p203 = por %p201, %p202
      %s205 = sadd.s32 %s204, 1
      %p208 = scmp.eq.s32.totalorder %s23, 1
      %p209 = scmp.ne.s32.totalorder %s204, %s206
      %p210 = scmp.eq.s32.totalorder %s23, 0
      %p211 = por %p209, %p210
      %p212 = scmp.ne.s32.totalorder %s204, %s206
      %p213 = scmp.eq.s32.totalorder %s28, 1
      %p214 = por %p212, %p213
      %p215 = scmp.ne.s32.totalorder %s206, %s207
      %p216 = scmp.eq.s32.totalorder %s28, 0
      %p217 = por %p215, %p216
      %p218 = scmp.ne.s32.totalorder %s206, %s207
      %p219 = scmp.eq.s32.totalorder %s29, 1
      %p220 = por %p218, %p219
      %p222 = scmp.ne.s32.totalorder %s207, %s221
      %p223 = scmp.eq.s32.totalorder %s29, 0
      %p224 = por %p222, %p223
      %s226 = sadd.s32 %s225, 1
      %p229 = scmp.eq.s32.totalorder %s23, 1
      %p230 = scmp.ne.s32.totalorder %s225, %s227
      %p231 = scmp.eq.s32.totalorder %s23, 0
      %p232 = por %p230, %p231
      %p233 = scmp.ne.s32.totalorder %s225, %s227
      %p234 = scmp.eq.s32.totalorder %s28, 1
      %p235 = por %p233, %p234
      %p236 = scmp.ne.s32.totalorder %s227, %s228
      %p237 = scmp.eq.s32.totalorder %s28, 0
      %p238 = por %p236, %p237
      %p239 = scmp.ne.s32.totalorder %s227, %s228
      %p240 = scmp.eq.s32.totalorder %s29, 1
      %p241 = por %p239, %p240
      %p243 = scmp.ne.s32.totalorder %s228, %s242
      %p244 = scmp.eq.s32.totalorder %s29, 0
      %p245 = por %p243, %p244
      %s247 = sadd.s32 %s246, 1
      %p250 = scmp.eq.s32.totalorder %s23, 1
      %p251 = scmp.ne.s32.totalorder %s246, %s248
      %p252 = scmp.eq.s32.totalorder %s23, 0
      %p253 = por %p251, %p252
      %p254 = scmp.ne.s32.totalorder %s246, %s248
      %p255 = scmp.eq.s32.totalorder %s28, 1
      %p256 = por %p254, %p255
      %p257 = scmp.ne.s32.totalorder %s248, %s249
      %p258 = scmp.eq.s32.totalorder %s28, 0
      %p259 = por %p257, %p258
      %p260 = scmp.ne.s32.totalorder %s248, %s249
      %p261 = scmp.eq.s32.totalorder %s29, 1
      %p262 = por %p260, %p261
      %p264 = scmp.ne.s32.totalorder %s249, %s263
      %p265 = scmp.eq.s32.totalorder %s29, 0
      %p266 = por %p264, %p265
      %s268 = sadd.s32 %s267, 1
      %p271 = scmp.eq.s32.totalorder %s23, 1
      %p272 = scmp.ne.s32.totalorder %s267, %s269
      %p273 = scmp.eq.s32.totalorder %s23, 0
      %p274 = por %p272, %p273
      %p275 = scmp.ne.s32.totalorder %s267, %s269
      %p276 = scmp.eq.s32.totalorder %s28, 1
      %p277 = por %p275, %p276
      %p278 = scmp.ne.s32.totalorder %s269, %s270
      %p279 = scmp.eq.s32.totalorder %s28, 0
      %p280 = por %p278, %p279
      %p281 = scmp.ne.s32.totalorder %s269, %s270
      %p282 = scmp.eq.s32.totalorder %s29, 1
      %p283 = por %p281, %p282
      %p285 = scmp.ne.s32.totalorder %s270, %s284
      %p286 = scmp.eq.s32.totalorder %s29, 0
      %p287 = por %p285, %p286
      %s289 = sadd.s32 %s288, 1
      %p292 = scmp.eq.s32.totalorder %s23, 1
      %p293 = scmp.ne.s32.totalorder %s288, %s290
      %p294 = scmp.eq.s32.totalorder %s23, 0
      %p295 = por %p293, %p294
      %p296 = scmp.ne.s32.totalorder %s288, %s290
      %p297 = scmp.eq.s32.totalorder %s28, 1
      %p298 = por %p296, %p297
      %p299 = scmp.ne.s32.totalorder %s290, %s291
      %p300 = scmp.eq.s32.totalorder %s28, 0
      %p301 = por %p299, %p300
      %p302 = scmp.ne.s32.totalorder %s290, %s291
      %p303 = scmp.eq.s32.totalorder %s29, 1
      %p304 = por %p302, %p303
      %p306 = scmp.ne.s32.totalorder %s291, %s305
      %p307 = scmp.eq.s32.totalorder %s29, 0
      %p308 = por %p306, %p307
      %s310 = sadd.s32 %s309, 1
      %p313 = scmp.eq.s32.totalorder %s23, 1
      %p314 = scmp.ne.s32.totalorder %s309, %s311
      %p315 = scmp.eq.s32.totalorder %s23, 0
      %p316 = por %p314, %p315
      %p317 = scmp.ne.s32.totalorder %s309, %s311
      %p318 = scmp.eq.s32.totalorder %s28, 1
      %p319 = por %p317, %p318
      %p320 = scmp.ne.s32.totalorder %s311, %s312
      %p321 = scmp.eq.s32.totalorder %s28, 0
      %p322 = por %p320, %p321
      %p323 = scmp.ne.s32.totalorder %s311, %s312
      %p324 = scmp.eq.s32.totalorder %s29, 1
      %p325 = por %p323, %p324
      %p327 = scmp.ne.s32.totalorder %s312, %s326
      %p328 = scmp.eq.s32.totalorder %s29, 0
      %p329 = por %p327, %p328
      %s330 = ssub.s32 %s23, %s30
      %p331 = scmp.eq.s32.totalorder %s330, 0
      %s333 = sadd.s32 %s332, 1
      %s334 = scalar_select %p331, %s332, %s333
      %p337 = pneg %p331
      %p338 = scmp.eq.s32.totalorder %s23, 1
      %p339 = por %p337, %p338
      %p340 = scmp.ne.s32.totalorder %s332, %s335
      %p341 = scmp.eq.s32.totalorder %s23, 0
      %p342 = por %p340, %p341
      %p343 = scmp.ne.s32.totalorder %s332, %s335
      %p344 = scmp.eq.s32.totalorder %s28, 1
      %p345 = por %p343, %p344
      %p346 = scmp.ne.s32.totalorder %s335, %s336
      %p347 = scmp.eq.s32.totalorder %s28, 0
      %p348 = por %p346, %p347
      %p349 = scmp.ne.s32.totalorder %s335, %s336
      %p350 = scmp.eq.s32.totalorder %s29, 1
      %p351 = por %p349, %p350
      %p353 = scmp.ne.s32.totalorder %s336, %s352
      %p354 = scmp.eq.s32.totalorder %s29, 0
      %p355 = por %p353, %p354
      %p356 = scmp.le.s32.totalorder 1, %s23
      %p357 = scmp.lt.s32.totalorder %s23, 3
      %p358 = pnand %p356, %p357
      %p359 = pneg %p358
      // Predicated region
      $region9: #{lenet_forward.1} parent=5 // pred_check
        _
      $region10: #{lenet_forward.1} parent=5 // pred_check_branch
        %361 = sbr.rel (%p358) target = $region12
      $region11: #{lenet_forward.1} parent=5 // pred_region
        %s362 = ssub.s32 %s23, 1
        // Predicated region
        $region13: #{lenet_forward.1} parent=11 // pred_check
          %p363 = pneg %p70
        $region14: #{lenet_forward.1} parent=11 // pred_check_branch
          %365 = sbr.rel (%p363) target = $region16
        $region15: #{lenet_forward.1} parent=11 // pred_region
          _
        $region16: #{lenet_forward.1} parent=11 // pred_fallthru
          _
        // Predicated region
        $region17: #{lenet_forward.1} parent=11 // pred_check
          %p366 = pneg %p91
        $region18: #{lenet_forward.1} parent=11 // pred_check_branch
          %368 = sbr.rel (%p366) target = $region20
        $region19: #{lenet_forward.1} parent=11 // pred_region
          _
        $region20: #{lenet_forward.1} parent=11 // pred_fallthru
          _
        // Predicated region
        $region21: #{lenet_forward.1} parent=11 // pred_check
          %p369 = pneg %p112
        $region22: #{lenet_forward.1} parent=11 // pred_check_branch
          %371 = sbr.rel (%p369) target = $region24
        $region23: #{lenet_forward.1} parent=11 // pred_region
          _
        $region24: #{lenet_forward.1} parent=11 // pred_fallthru
          _
        // Predicated region
        $region25: #{lenet_forward.1} parent=11 // pred_check
          %p372 = pneg %p133
        $region26: #{lenet_forward.1} parent=11 // pred_check_branch
          %374 = sbr.rel (%p372) target = $region28
        $region27: #{lenet_forward.1} parent=11 // pred_region
          _
        $region28: #{lenet_forward.1} parent=11 // pred_fallthru
          _
        // Predicated region
        $region29: #{lenet_forward.1} parent=11 // pred_check
          %p375 = pneg %p154
        $region30: #{lenet_forward.1} parent=11 // pred_check_branch
          %377 = sbr.rel (%p375) target = $region32
        $region31: #{lenet_forward.1} parent=11 // pred_region
          _
        $region32: #{lenet_forward.1} parent=11 // pred_fallthru
          _
        // Predicated region
        $region33: #{lenet_forward.1} parent=11 // pred_check
          %p378 = pneg %p175
        $region34: #{lenet_forward.1} parent=11 // pred_check_branch
          %380 = sbr.rel (%p378) target = $region36
        $region35: #{lenet_forward.1} parent=11 // pred_region
          _
        $region36: #{lenet_forward.1} parent=11 // pred_fallthru
          _
        // Predicated region
        $region37: #{lenet_forward.1} parent=11 // pred_check
          %p381 = pneg %p196
        $region38: #{lenet_forward.1} parent=11 // pred_check_branch
          %383 = sbr.rel (%p381) target = $region40
        $region39: #{lenet_forward.1} parent=11 // pred_region
          _
        $region40: #{lenet_forward.1} parent=11 // pred_fallthru
          _
        // Predicated region
        $region41: #{lenet_forward.1} parent=11 // pred_check
          %p384 = pneg %p217
        $region42: #{lenet_forward.1} parent=11 // pred_check_branch
          %386 = sbr.rel (%p384) target = $region44
        $region43: #{lenet_forward.1} parent=11 // pred_region
          _
        $region44: #{lenet_forward.1} parent=11 // pred_fallthru
          _
        // Predicated region
        $region45: #{lenet_forward.1} parent=11 // pred_check
          %p387 = pneg %p238
        $region46: #{lenet_forward.1} parent=11 // pred_check_branch
          %389 = sbr.rel (%p387) target = $region48
        $region47: #{lenet_forward.1} parent=11 // pred_region
          _
        $region48: #{lenet_forward.1} parent=11 // pred_fallthru
          _
        // Predicated region
        $region49: #{lenet_forward.1} parent=11 // pred_check
          %p390 = pneg %p259
        $region50: #{lenet_forward.1} parent=11 // pred_check_branch
          %392 = sbr.rel (%p390) target = $region52
        $region51: #{lenet_forward.1} parent=11 // pred_region
          _
        $region52: #{lenet_forward.1} parent=11 // pred_fallthru
          _
        // Predicated region
        $region53: #{lenet_forward.1} parent=11 // pred_check
          %p393 = pneg %p280
        $region54: #{lenet_forward.1} parent=11 // pred_check_branch
          %395 = sbr.rel (%p393) target = $region56
        $region55: #{lenet_forward.1} parent=11 // pred_region
          _
        $region56: #{lenet_forward.1} parent=11 // pred_fallthru
          _
        // Predicated region
        $region57: #{lenet_forward.1} parent=11 // pred_check
          %p396 = pneg %p301
        $region58: #{lenet_forward.1} parent=11 // pred_check_branch
          %398 = sbr.rel (%p396) target = $region60
        $region59: #{lenet_forward.1} parent=11 // pred_region
          _
        $region60: #{lenet_forward.1} parent=11 // pred_fallthru
          _
        // Predicated region
        $region61: #{lenet_forward.1} parent=11 // pred_check
          %p399 = pneg %p322
        $region62: #{lenet_forward.1} parent=11 // pred_check_branch
          %401 = sbr.rel (%p399) target = $region64
        $region63: #{lenet_forward.1} parent=11 // pred_region
          _
        $region64: #{lenet_forward.1} parent=11 // pred_fallthru
          _
      $region12: #{lenet_forward.1} parent=5 // pred_fallthru
        _
      %p402 = scmp.lt.s32.totalorder %s23, 2
      // Predicated region
      $region65: #{lenet_forward.1} parent=5 // pred_check
        %p403 = pneg %p402
      $region66: #{lenet_forward.1} parent=5 // pred_check_branch
        %405 = sbr.rel (%p403) target = $region68
      $region67: #{lenet_forward.1} parent=5 // pred_region
        // Predicated region
        $region69: #{lenet_forward.1} parent=67 // pred_check
          %p406 = pneg %p43
        $region70: #{lenet_forward.1} parent=67 // pred_check_branch
          %408 = sbr.rel (%p406) target = $region72
        $region71: #{lenet_forward.1} parent=67 // pred_region
          %s409 = smul.u32 32, %s23
          %p410 = scmp.lt.s32.totalorder %s409, 63
          %s411 = scalar_select %p410, %s409, 63
          %s412 = smul.addr %s411, 8
          %s413 = scalar_lea.vmem %s0, %s412
          %s414 = smul.u32 32, %s23
        $region72: #{lenet_forward.1} parent=67 // pred_fallthru
          _
      $region68: #{lenet_forward.1} parent=5 // pred_fallthru
        _
      %p415 = scmp.le.s32.totalorder 1, %s23
      %p416 = scmp.lt.s32.totalorder %s23, 3
      %p417 = pnand %p415, %p416
      %p418 = pneg %p417
      // Predicated region
      $region73: #{lenet_forward.1} parent=5 // pred_check
        _
      $region74: #{lenet_forward.1} parent=5 // pred_check_branch
        %420 = sbr.rel (%p417) target = $region76
      $region75: #{lenet_forward.1} parent=5 // pred_region
        %s421 = ssub.s32 %s23, 1
        %s422 = smul.u32 32, %s28
        %p423 = scmp.lt.s32.totalorder %s422, 63
        %s424 = scalar_select %p423, %s422, 63
        %s425 = smul.addr %s424, 8
        %s426 = scalar_lea.vmem %s0, %s425
        %p427 = pneg %p49
        %p428 = pneg %p46
        %p429 = pneg %p70
        %p430 = pneg %p67
        %p431 = pneg %p91
        %p432 = pneg %p88
        %p433 = pneg %p112
        %p434 = pneg %p109
        %p435 = pneg %p133
        %p436 = pneg %p130
        %p437 = pneg %p154
        %p438 = pneg %p151
        %p439 = pneg %p175
        %p440 = pneg %p172
        %p441 = pneg %p196
        %p442 = pneg %p193
        %p443 = pneg %p217
        %p444 = pneg %p214
        %p445 = pneg %p238
        %p446 = pneg %p235
        %p447 = pneg %p259
        %p448 = pneg %p256
        %p449 = pneg %p280
        %p450 = pneg %p277
        %p451 = pneg %p301
        %p452 = pneg %p298
        %p453 = pneg %p322
        %p454 = pneg %p319
        %p455 = pneg %p348
        %p456 = pneg %p345
        %s457 = sand.u32 %s335, 1
        %s458 = scalar_lea.sflag [#allocation3], %s457
        %s459 = sand.u32 %s335, 1
        %s460 = smul.addr %s459, 8
        %s461 = scalar_lea.vmem [#allocation2], %s460
        %s462 = smul.u32 32, %s28
        %p463 = scmp.lt.s32.totalorder %s462, 63
        %s464 = scalar_select %p463, %s462, 63
        %s465 = smul.addr %s464, 8
        %s466 = scalar_lea.vmem %s0, %s465
        %s467 = smul.u32 32, %s28
        %v469 = vld [vmem:[%s466] sm:$0xff]
        %v470 = vld [vmem:[%s466 + $0x8] sm:$0xff]
        %v471 = vld [vmem:[%s466 + $0x10] sm:$0xff]
        %v472 = vld [vmem:[%s466 + $0x18] sm:$0xff]
        %v473 = vld [vmem:[%s466 + $0x20] sm:$0xff]
        %v474 = vld [vmem:[%s466 + $0x28] sm:$0xff]
        %v475 = vld [vmem:[%s466 + $0x30] sm:$0xff]
        %v476 = vld [vmem:[%s466 + $0x38] sm:$0xff]
        %v477 = vld [vmem:[%s466 + $0x40] sm:$0xff]
        %v478 = vld [vmem:[%s466 + $0x48] sm:$0xff]
        %v479 = vld [vmem:[%s466 + $0x50] sm:$0xff]
        %v480 = vld [vmem:[%s466 + $0x58] sm:$0xff]
        %v481 = vld [vmem:[%s466 + $0x60] sm:$0xff]
        %v482 = vld [vmem:[%s466 + $0x68] sm:$0xff]
        %v483 = vld [vmem:[%s466 + $0x70] sm:$0xff]
        %v484 = vld [vmem:[%s466 + $0x78] sm:$0xff]
        %v485 = vld [vmem:[%s466 + $0x80] sm:$0xff]
        %v486 = vld [vmem:[%s466 + $0x88] sm:$0xff]
        %v487 = vld [vmem:[%s466 + $0x90] sm:$0xff]
        %v488 = vld [vmem:[%s466 + $0x98] sm:$0xff]
        %v489 = vld [vmem:[%s466 + $0xa0] sm:$0xff]
        %v490 = vld [vmem:[%s466 + $0xa8] sm:$0xff]
        %v491 = vld [vmem:[%s466 + $0xb0] sm:$0xff]
        %v492 = vld [vmem:[%s466 + $0xb8] sm:$0xff]
        %v493 = vld [vmem:[%s466 + $0xc0] sm:$0xff]
        %v494 = vld [vmem:[%s466 + $0xc8] sm:$0xff]
        %v495 = vld [vmem:[%s466 + $0xd0] sm:$0xff]
        %v496 = vld [vmem:[%s466 + $0xd8] sm:$0xff]
        %v497 = vld [vmem:[%s466 + $0xe0] sm:$0xff]
        %v498 = vld [vmem:[%s466 + $0xe8] sm:$0xff]
        %v499 = vld [vmem:[%s466 + $0xf0] sm:$0xff]
        %v500 = vld [vmem:[%s466 + $0xf8] sm:$0xff]
        %vm533 = vcmask 1046528
        %v534 = vrot.slane %v469, 1
        %v535 = vrot.slane %v470, 1
        %v536 = vsel %vm533, %v534, %v535
        %v537 = vrot.slane %v471, 1
        %v538 = vsel %vm533, %v535, %v537
        %v539 = vrot.slane %v472, 1
        %v540 = vsel %vm533, %v537, %v539
        %v541 = vrot.slane %v473, 1
        %v542 = vsel %vm533, %v539, %v541
        %v543 = vrot.slane %v474, 1
        %v544 = vsel %vm533, %v541, %v543
        %v545 = vrot.slane %v475, 1
        %v546 = vsel %vm533, %v543, %v545
        %v547 = vrot.slane %v476, 1
        %v548 = vsel %vm533, %v545, %v547
        %v549 = vrot.slane %v477, 1
        %v550 = vsel %vm533, %v547, %v549
        %v551 = vrot.slane %v478, 1
        %v552 = vsel %vm533, %v549, %v551
        %v553 = vrot.slane %v479, 1
        %v554 = vsel %vm533, %v551, %v553
        %v555 = vrot.slane %v480, 1
        %v556 = vsel %vm533, %v553, %v555
        %v557 = vrot.slane %v481, 1
        %v558 = vsel %vm533, %v555, %v557
        %v559 = vrot.slane %v482, 1
        %v560 = vsel %vm533, %v557, %v559
        %v561 = vrot.slane %v483, 1
        %v562 = vsel %vm533, %v559, %v561
        %v563 = vrot.slane %v484, 1
        %v564 = vsel %vm533, %v561, %v563
        %v565 = vrot.slane %v485, 1
        %v566 = vsel %vm533, %v563, %v565
        %v567 = vrot.slane %v486, 1
        %v568 = vsel %vm533, %v565, %v567
        %v569 = vrot.slane %v487, 1
        %v570 = vsel %vm533, %v567, %v569
        %v571 = vrot.slane %v488, 1
        %v572 = vsel %vm533, %v569, %v571
        %v573 = vrot.slane %v489, 1
        %v574 = vsel %vm533, %v571, %v573
        %v575 = vrot.slane %v490, 1
        %v576 = vsel %vm533, %v573, %v575
        %v577 = vrot.slane %v491, 1
        %v578 = vsel %vm533, %v575, %v577
        %v579 = vrot.slane %v492, 1
        %v580 = vsel %vm533, %v577, %v579
        %v581 = vrot.slane %v493, 1
        %v582 = vsel %vm533, %v579, %v581
        %v583 = vrot.slane %v494, 1
        %v584 = vsel %vm533, %v581, %v583
        %v585 = vrot.slane %v495, 1
        %v586 = vsel %vm533, %v583, %v585
        %v587 = vrot.slane %v496, 1
        %v588 = vsel %vm533, %v585, %v587
        %v589 = vrot.slane %v497, 1
        %v590 = vsel %vm533, %v587, %v589
        %v591 = vrot.slane %v498, 1
        %v592 = vsel %vm533, %v589, %v591
        %v593 = vrot.slane %v499, 1
        %v594 = vsel %vm533, %v591, %v593
        %v595 = vrot.slane %v500, 1
        %v596 = vsel %vm533, %v593, %v595
        %597 = vrot.lane.b32.xlu0 %v536, 96
        %v598 = vpop.permute.xlu0 %597
        %599 = vrot.lane.b32.xlu0 %v538, 96
        %v600 = vpop.permute.xlu0 %599
        %601 = vrot.lane.b32.xlu0 %v540, 96
        %v602 = vpop.permute.xlu0 %601
        %603 = vrot.lane.b32.xlu0 %v542, 96
        %v604 = vpop.permute.xlu0 %603
        %605 = vrot.lane.b32.xlu0 %v544, 96
        %v606 = vpop.permute.xlu0 %605
        %607 = vrot.lane.b32.xlu0 %v546, 96
        %v608 = vpop.permute.xlu0 %607
        %609 = vrot.lane.b32.xlu0 %v548, 96
        %v610 = vpop.permute.xlu0 %609
        %611 = vrot.lane.b32.xlu0 %v550, 96
        %v612 = vpop.permute.xlu0 %611
        %613 = vrot.lane.b32.xlu0 %v552, 96
        %v614 = vpop.permute.xlu0 %613
        %615 = vrot.lane.b32.xlu0 %v554, 96
        %v616 = vpop.permute.xlu0 %615
        %617 = vrot.lane.b32.xlu0 %v556, 96
        %v618 = vpop.permute.xlu0 %617
        %619 = vrot.lane.b32.xlu0 %v558, 96
        %v620 = vpop.permute.xlu0 %619
        %621 = vrot.lane.b32.xlu0 %v560, 96
        %v622 = vpop.permute.xlu0 %621
        %623 = vrot.lane.b32.xlu0 %v562, 96
        %v624 = vpop.permute.xlu0 %623
        %625 = vrot.lane.b32.xlu0 %v564, 96
        %v626 = vpop.permute.xlu0 %625
        %627 = vrot.lane.b32.xlu0 %v566, 96
        %v628 = vpop.permute.xlu0 %627
        %629 = vrot.lane.b32.xlu0 %v568, 96
        %v630 = vpop.permute.xlu0 %629
        %631 = vrot.lane.b32.xlu0 %v570, 96
        %v632 = vpop.permute.xlu0 %631
        %633 = vrot.lane.b32.xlu0 %v572, 96
        %v634 = vpop.permute.xlu0 %633
        %635 = vrot.lane.b32.xlu0 %v574, 96
        %v636 = vpop.permute.xlu0 %635
        %637 = vrot.lane.b32.xlu0 %v576, 96
        %v638 = vpop.permute.xlu0 %637
        %639 = vrot.lane.b32.xlu0 %v578, 96
        %v640 = vpop.permute.xlu0 %639
        %641 = vrot.lane.b32.xlu0 %v580, 96
        %v642 = vpop.permute.xlu0 %641
        %643 = vrot.lane.b32.xlu0 %v582, 96
        %v644 = vpop.permute.xlu0 %643
        %645 = vrot.lane.b32.xlu0 %v584, 96
        %v646 = vpop.permute.xlu0 %645
        %647 = vrot.lane.b32.xlu0 %v586, 96
        %v648 = vpop.permute.xlu0 %647
        %649 = vrot.lane.b32.xlu0 %v588, 96
        %v650 = vpop.permute.xlu0 %649
        %651 = vrot.lane.b32.xlu0 %v590, 96
        %v652 = vpop.permute.xlu0 %651
        %653 = vrot.lane.b32.xlu0 %v592, 96
        %v654 = vpop.permute.xlu0 %653
        %655 = vrot.lane.b32.xlu0 %v594, 96
        %v656 = vpop.permute.xlu0 %655
        %657 = vrot.lane.b32.xlu0 %v596, 96
        %v658 = vpop.permute.xlu0 %657
        %659 = vrot.lane.b32.xlu0 %v595, 96
        %v660 = vpop.permute.xlu0 %659
        %vm693 = vcmask 1045504
        %v694 = vrot.slane %v469, 2
        %v695 = vrot.slane %v470, 2
        %v696 = vsel %vm693, %v694, %v695
        %v697 = vrot.slane %v471, 2
        %v698 = vsel %vm693, %v695, %v697
        %v699 = vrot.slane %v472, 2
        %v700 = vsel %vm693, %v697, %v699
        %v701 = vrot.slane %v473, 2
        %v702 = vsel %vm693, %v699, %v701
        %v703 = vrot.slane %v474, 2
        %v704 = vsel %vm693, %v701, %v703
        %v705 = vrot.slane %v475, 2
        %v706 = vsel %vm693, %v703, %v705
        %v707 = vrot.slane %v476, 2
        %v708 = vsel %vm693, %v705, %v707
        %v709 = vrot.slane %v477, 2
        %v710 = vsel %vm693, %v707, %v709
        %v711 = vrot.slane %v478, 2
        %v712 = vsel %vm693, %v709, %v711
        %v713 = vrot.slane %v479, 2
        %v714 = vsel %vm693, %v711, %v713
        %v715 = vrot.slane %v480, 2
        %v716 = vsel %vm693, %v713, %v715
        %v717 = vrot.slane %v481, 2
        %v718 = vsel %vm693, %v715, %v717
        %v719 = vrot.slane %v482, 2
        %v720 = vsel %vm693, %v717, %v719
        %v721 = vrot.slane %v483, 2
        %v722 = vsel %vm693, %v719, %v721
        %v723 = vrot.slane %v484, 2
        %v724 = vsel %vm693, %v721, %v723
        %v725 = vrot.slane %v485, 2
        %v726 = vsel %vm693, %v723, %v725
        %v727 = vrot.slane %v486, 2
        %v728 = vsel %vm693, %v725, %v727
        %v729 = vrot.slane %v487, 2
        %v730 = vsel %vm693, %v727, %v729
        %v731 = vrot.slane %v488, 2
        %v732 = vsel %vm693, %v729, %v731
        %v733 = vrot.slane %v489, 2
        %v734 = vsel %vm693, %v731, %v733
        %v735 = vrot.slane %v490, 2
        %v736 = vsel %vm693, %v733, %v735
        %v737 = vrot.slane %v491, 2
        %v738 = vsel %vm693, %v735, %v737
        %v739 = vrot.slane %v492, 2
        %v740 = vsel %vm693, %v737, %v739
        %v741 = vrot.slane %v493, 2
        %v742 = vsel %vm693, %v739, %v741
        %v743 = vrot.slane %v494, 2
        %v744 = vsel %vm693, %v741, %v743
        %v745 = vrot.slane %v495, 2
        %v746 = vsel %vm693, %v743, %v745
        %v747 = vrot.slane %v496, 2
        %v748 = vsel %vm693, %v745, %v747
        %v749 = vrot.slane %v497, 2
        %v750 = vsel %vm693, %v747, %v749
        %v751 = vrot.slane %v498, 2
        %v752 = vsel %vm693, %v749, %v751
        %v753 = vrot.slane %v499, 2
        %v754 = vsel %vm693, %v751, %v753
        %v755 = vrot.slane %v500, 2
        %v756 = vsel %vm693, %v753, %v755
        %757 = vrot.lane.b32.xlu0 %v696, 64
        %v758 = vpop.permute.xlu0 %757
        %759 = vrot.lane.b32.xlu0 %v698, 64
        %v760 = vpop.permute.xlu0 %759
        %761 = vrot.lane.b32.xlu0 %v700, 64
        %v762 = vpop.permute.xlu0 %761
        %763 = vrot.lane.b32.xlu0 %v702, 64
        %v764 = vpop.permute.xlu0 %763
        %765 = vrot.lane.b32.xlu0 %v704, 64
        %v766 = vpop.permute.xlu0 %765
        %767 = vrot.lane.b32.xlu0 %v706, 64
        %v768 = vpop.permute.xlu0 %767
        %769 = vrot.lane.b32.xlu0 %v708, 64
        %v770 = vpop.permute.xlu0 %769
        %771 = vrot.lane.b32.xlu0 %v710, 64
        %v772 = vpop.permute.xlu0 %771
        %773 = vrot.lane.b32.xlu0 %v712, 64
        %v774 = vpop.permute.xlu0 %773
        %775 = vrot.lane.b32.xlu0 %v714, 64
        %v776 = vpop.permute.xlu0 %775
        %777 = vrot.lane.b32.xlu0 %v716, 64
        %v778 = vpop.permute.xlu0 %777
        %779 = vrot.lane.b32.xlu0 %v718, 64
        %v780 = vpop.permute.xlu0 %779
        %781 = vrot.lane.b32.xlu0 %v720, 64
        %v782 = vpop.permute.xlu0 %781
        %783 = vrot.lane.b32.xlu0 %v722, 64
        %v784 = vpop.permute.xlu0 %783
        %785 = vrot.lane.b32.xlu0 %v724, 64
        %v786 = vpop.permute.xlu0 %785
        %787 = vrot.lane.b32.xlu0 %v726, 64
        %v788 = vpop.permute.xlu0 %787
        %789 = vrot.lane.b32.xlu0 %v728, 64
        %v790 = vpop.permute.xlu0 %789
        %791 = vrot.lane.b32.xlu0 %v730, 64
        %v792 = vpop.permute.xlu0 %791
        %793 = vrot.lane.b32.xlu0 %v732, 64
        %v794 = vpop.permute.xlu0 %793
        %795 = vrot.lane.b32.xlu0 %v734, 64
        %v796 = vpop.permute.xlu0 %795
        %797 = vrot.lane.b32.xlu0 %v736, 64
        %v798 = vpop.permute.xlu0 %797
        %799 = vrot.lane.b32.xlu0 %v738, 64
        %v800 = vpop.permute.xlu0 %799
        %801 = vrot.lane.b32.xlu0 %v740, 64
        %v802 = vpop.permute.xlu0 %801
        %803 = vrot.lane.b32.xlu0 %v742, 64
        %v804 = vpop.permute.xlu0 %803
        %805 = vrot.lane.b32.xlu0 %v744, 64
        %v806 = vpop.permute.xlu0 %805
        %807 = vrot.lane.b32.xlu0 %v746, 64
        %v808 = vpop.permute.xlu0 %807
        %809 = vrot.lane.b32.xlu0 %v748, 64
        %v810 = vpop.permute.xlu0 %809
        %811 = vrot.lane.b32.xlu0 %v750, 64
        %v812 = vpop.permute.xlu0 %811
        %813 = vrot.lane.b32.xlu0 %v752, 64
        %v814 = vpop.permute.xlu0 %813
        %815 = vrot.lane.b32.xlu0 %v754, 64
        %v816 = vpop.permute.xlu0 %815
        %817 = vrot.lane.b32.xlu0 %v756, 64
        %v818 = vpop.permute.xlu0 %817
        %819 = vrot.lane.b32.xlu0 %v755, 64
        %v820 = vpop.permute.xlu0 %819
        %vm853 = vcmask 1044480
        %v854 = vrot.slane %v469, 3
        %v855 = vrot.slane %v470, 3
        %v856 = vsel %vm853, %v854, %v855
        %v857 = vrot.slane %v471, 3
        %v858 = vsel %vm853, %v855, %v857
        %v859 = vrot.slane %v472, 3
        %v860 = vsel %vm853, %v857, %v859
        %v861 = vrot.slane %v473, 3
        %v862 = vsel %vm853, %v859, %v861
        %v863 = vrot.slane %v474, 3
        %v864 = vsel %vm853, %v861, %v863
        %v865 = vrot.slane %v475, 3
        %v866 = vsel %vm853, %v863, %v865
        %v867 = vrot.slane %v476, 3
        %v868 = vsel %vm853, %v865, %v867
        %v869 = vrot.slane %v477, 3
        %v870 = vsel %vm853, %v867, %v869
        %v871 = vrot.slane %v478, 3
        %v872 = vsel %vm853, %v869, %v871
        %v873 = vrot.slane %v479, 3
        %v874 = vsel %vm853, %v871, %v873
        %v875 = vrot.slane %v480, 3
        %v876 = vsel %vm853, %v873, %v875
        %v877 = vrot.slane %v481, 3
        %v878 = vsel %vm853, %v875, %v877
        %v879 = vrot.slane %v482, 3
        %v880 = vsel %vm853, %v877, %v879
        %v881 = vrot.slane %v483, 3
        %v882 = vsel %vm853, %v879, %v881
        %v883 = vrot.slane %v484, 3
        %v884 = vsel %vm853, %v881, %v883
        %v885 = vrot.slane %v485, 3
        %v886 = vsel %vm853, %v883, %v885
        %v887 = vrot.slane %v486, 3
        %v888 = vsel %vm853, %v885, %v887
        %v889 = vrot.slane %v487, 3
        %v890 = vsel %vm853, %v887, %v889
        %v891 = vrot.slane %v488, 3
        %v892 = vsel %vm853, %v889, %v891
        %v893 = vrot.slane %v489, 3
        %v894 = vsel %vm853, %v891, %v893
        %v895 = vrot.slane %v490, 3
        %v896 = vsel %vm853, %v893, %v895
        %v897 = vrot.slane %v491, 3
        %v898 = vsel %vm853, %v895, %v897
        %v899 = vrot.slane %v492, 3
        %v900 = vsel %vm853, %v897, %v899
        %v901 = vrot.slane %v493, 3
        %v902 = vsel %vm853, %v899, %v901
        %v903 = vrot.slane %v494, 3
        %v904 = vsel %vm853, %v901, %v903
        %v905 = vrot.slane %v495, 3
        %v906 = vsel %vm853, %v903, %v905
        %v907 = vrot.slane %v496, 3
        %v908 = vsel %vm853, %v905, %v907
        %v909 = vrot.slane %v497, 3
        %v910 = vsel %vm853, %v907, %v909
        %v911 = vrot.slane %v498, 3
        %v912 = vsel %vm853, %v909, %v911
        %v913 = vrot.slane %v499, 3
        %v914 = vsel %vm853, %v911, %v913
        %v915 = vrot.slane %v500, 3
        %v916 = vsel %vm853, %v913, %v915
        %917 = vrot.lane.b32.xlu0 %v856, 32
        %v918 = vpop.permute.xlu0 %917
        %919 = vrot.lane.b32.xlu0 %v858, 32
        %v920 = vpop.permute.xlu0 %919
        %921 = vrot.lane.b32.xlu0 %v860, 32
        %v922 = vpop.permute.xlu0 %921
        %923 = vrot.lane.b32.xlu0 %v862, 32
        %v924 = vpop.permute.xlu0 %923
        %925 = vrot.lane.b32.xlu0 %v864, 32
        %v926 = vpop.permute.xlu0 %925
        %927 = vrot.lane.b32.xlu0 %v866, 32
        %v928 = vpop.permute.xlu0 %927
        %929 = vrot.lane.b32.xlu0 %v868, 32
        %v930 = vpop.permute.xlu0 %929
        %931 = vrot.lane.b32.xlu0 %v870, 32
        %v932 = vpop.permute.xlu0 %931
        %933 = vrot.lane.b32.xlu0 %v872, 32
        %v934 = vpop.permute.xlu0 %933
        %935 = vrot.lane.b32.xlu0 %v874, 32
        %v936 = vpop.permute.xlu0 %935
        %937 = vrot.lane.b32.xlu0 %v876, 32
        %v938 = vpop.permute.xlu0 %937
        %939 = vrot.lane.b32.xlu0 %v878, 32
        %v940 = vpop.permute.xlu0 %939
        %941 = vrot.lane.b32.xlu0 %v880, 32
        %v942 = vpop.permute.xlu0 %941
        %943 = vrot.lane.b32.xlu0 %v882, 32
        %v944 = vpop.permute.xlu0 %943
        %945 = vrot.lane.b32.xlu0 %v884, 32
        %v946 = vpop.permute.xlu0 %945
        %947 = vrot.lane.b32.xlu0 %v886, 32
        %v948 = vpop.permute.xlu0 %947
        %949 = vrot.lane.b32.xlu0 %v888, 32
        %v950 = vpop.permute.xlu0 %949
        %951 = vrot.lane.b32.xlu0 %v890, 32
        %v952 = vpop.permute.xlu0 %951
        %953 = vrot.lane.b32.xlu0 %v892, 32
        %v954 = vpop.permute.xlu0 %953
        %955 = vrot.lane.b32.xlu0 %v894, 32
        %v956 = vpop.permute.xlu0 %955
        %957 = vrot.lane.b32.xlu0 %v896, 32
        %v958 = vpop.permute.xlu0 %957
        %959 = vrot.lane.b32.xlu0 %v898, 32
        %v960 = vpop.permute.xlu0 %959
        %961 = vrot.lane.b32.xlu0 %v900, 32
        %v962 = vpop.permute.xlu0 %961
        %963 = vrot.lane.b32.xlu0 %v902, 32
        %v964 = vpop.permute.xlu0 %963
        %965 = vrot.lane.b32.xlu0 %v904, 32
        %v966 = vpop.permute.xlu0 %965
        %967 = vrot.lane.b32.xlu0 %v906, 32
        %v968 = vpop.permute.xlu0 %967
        %969 = vrot.lane.b32.xlu0 %v908, 32
        %v970 = vpop.permute.xlu0 %969
        %971 = vrot.lane.b32.xlu0 %v910, 32
        %v972 = vpop.permute.xlu0 %971
        %973 = vrot.lane.b32.xlu0 %v912, 32
        %v974 = vpop.permute.xlu0 %973
        %975 = vrot.lane.b32.xlu0 %v914, 32
        %v976 = vpop.permute.xlu0 %975
        %977 = vrot.lane.b32.xlu0 %v916, 32
        %v978 = vpop.permute.xlu0 %977
        %979 = vrot.lane.b32.xlu0 %v915, 32
        %v980 = vpop.permute.xlu0 %979
        %vm1013 = vcmask 1043456
        %v1014 = vrot.slane %v469, 4
        %v1015 = vrot.slane %v470, 4
        %v1016 = vsel %vm1013, %v1014, %v1015
        %v1017 = vrot.slane %v471, 4
        %v1018 = vsel %vm1013, %v1015, %v1017
        %v1019 = vrot.slane %v472, 4
        %v1020 = vsel %vm1013, %v1017, %v1019
        %v1021 = vrot.slane %v473, 4
        %v1022 = vsel %vm1013, %v1019, %v1021
        %v1023 = vrot.slane %v474, 4
        %v1024 = vsel %vm1013, %v1021, %v1023
        %v1025 = vrot.slane %v475, 4
        %v1026 = vsel %vm1013, %v1023, %v1025
        %v1027 = vrot.slane %v476, 4
        %v1028 = vsel %vm1013, %v1025, %v1027
        %v1029 = vrot.slane %v477, 4
        %v1030 = vsel %vm1013, %v1027, %v1029
        %v1031 = vrot.slane %v478, 4
        %v1032 = vsel %vm1013, %v1029, %v1031
        %v1033 = vrot.slane %v479, 4
        %v1034 = vsel %vm1013, %v1031, %v1033
        %v1035 = vrot.slane %v480, 4
        %v1036 = vsel %vm1013, %v1033, %v1035
        %v1037 = vrot.slane %v481, 4
        %v1038 = vsel %vm1013, %v1035, %v1037
        %v1039 = vrot.slane %v482, 4
        %v1040 = vsel %vm1013, %v1037, %v1039
        %v1041 = vrot.slane %v483, 4
        %v1042 = vsel %vm1013, %v1039, %v1041
        %v1043 = vrot.slane %v484, 4
        %v1044 = vsel %vm1013, %v1041, %v1043
        %v1045 = vrot.slane %v485, 4
        %v1046 = vsel %vm1013, %v1043, %v1045
        %v1047 = vrot.slane %v486, 4
        %v1048 = vsel %vm1013, %v1045, %v1047
        %v1049 = vrot.slane %v487, 4
        %v1050 = vsel %vm1013, %v1047, %v1049
        %v1051 = vrot.slane %v488, 4
        %v1052 = vsel %vm1013, %v1049, %v1051
        %v1053 = vrot.slane %v489, 4
        %v1054 = vsel %vm1013, %v1051, %v1053
        %v1055 = vrot.slane %v490, 4
        %v1056 = vsel %vm1013, %v1053, %v1055
        %v1057 = vrot.slane %v491, 4
        %v1058 = vsel %vm1013, %v1055, %v1057
        %v1059 = vrot.slane %v492, 4
        %v1060 = vsel %vm1013, %v1057, %v1059
        %v1061 = vrot.slane %v493, 4
        %v1062 = vsel %vm1013, %v1059, %v1061
        %v1063 = vrot.slane %v494, 4
        %v1064 = vsel %vm1013, %v1061, %v1063
        %v1065 = vrot.slane %v495, 4
        %v1066 = vsel %vm1013, %v1063, %v1065
        %v1067 = vrot.slane %v496, 4
        %v1068 = vsel %vm1013, %v1065, %v1067
        %v1069 = vrot.slane %v497, 4
        %v1070 = vsel %vm1013, %v1067, %v1069
        %v1071 = vrot.slane %v498, 4
        %v1072 = vsel %vm1013, %v1069, %v1071
        %v1073 = vrot.slane %v499, 4
        %v1074 = vsel %vm1013, %v1071, %v1073
        %v1075 = vrot.slane %v500, 4
        %v1076 = vsel %vm1013, %v1073, %v1075
        %vm1109 = vcmask 785408
        %v1110 = vsel %vm1109, %v469, %v598
        %v1111 = vsel %vm1109, %v470, %v600
        %v1112 = vsel %vm1109, %v471, %v602
        %v1113 = vsel %vm1109, %v472, %v604
        %v1114 = vsel %vm1109, %v473, %v606
        %v1115 = vsel %vm1109, %v474, %v608
        %v1116 = vsel %vm1109, %v475, %v610
        %v1117 = vsel %vm1109, %v476, %v612
        %v1118 = vsel %vm1109, %v477, %v614
        %v1119 = vsel %vm1109, %v478, %v616
        %v1120 = vsel %vm1109, %v479, %v618
        %v1121 = vsel %vm1109, %v480, %v620
        %v1122 = vsel %vm1109, %v481, %v622
        %v1123 = vsel %vm1109, %v482, %v624
        %v1124 = vsel %vm1109, %v483, %v626
        %v1125 = vsel %vm1109, %v484, %v628
        %v1126 = vsel %vm1109, %v485, %v630
        %v1127 = vsel %vm1109, %v486, %v632
        %v1128 = vsel %vm1109, %v487, %v634
        %v1129 = vsel %vm1109, %v488, %v636
        %v1130 = vsel %vm1109, %v489, %v638
        %v1131 = vsel %vm1109, %v490, %v640
        %v1132 = vsel %vm1109, %v491, %v642
        %v1133 = vsel %vm1109, %v492, %v644
        %v1134 = vsel %vm1109, %v493, %v646
        %v1135 = vsel %vm1109, %v494, %v648
        %v1136 = vsel %vm1109, %v495, %v650
        %v1137 = vsel %vm1109, %v496, %v652
        %v1138 = vsel %vm1109, %v497, %v654
        %v1139 = vsel %vm1109, %v498, %v656
        %v1140 = vsel %vm1109, %v499, %v658
        %v1141 = vsel %vm1109, %v500, %v660
        %vm1142 = vcmask 523264
        %v1143 = vsel %vm1142, %v598, %v758
        %v1144 = vsel %vm1142, %v600, %v760
        %v1145 = vsel %vm1142, %v602, %v762
        %v1146 = vsel %vm1142, %v604, %v764
        %v1147 = vsel %vm1142, %v606, %v766
        %v1148 = vsel %vm1142, %v608, %v768
        %v1149 = vsel %vm1142, %v610, %v770
        %v1150 = vsel %vm1142, %v612, %v772
        %v1151 = vsel %vm1142, %v614, %v774
        %v1152 = vsel %vm1142, %v616, %v776
        %v1153 = vsel %vm1142, %v618, %v778
        %v1154 = vsel %vm1142, %v620, %v780
        %v1155 = vsel %vm1142, %v622, %v782
        %v1156 = vsel %vm1142, %v624, %v784
        %v1157 = vsel %vm1142, %v626, %v786
        %v1158 = vsel %vm1142, %v628, %v788
        %v1159 = vsel %vm1142, %v630, %v790
        %v1160 = vsel %vm1142, %v632, %v792
        %v1161 = vsel %vm1142, %v634, %v794
        %v1162 = vsel %vm1142, %v636, %v796
        %v1163 = vsel %vm1142, %v638, %v798
        %v1164 = vsel %vm1142, %v640, %v800
        %v1165 = vsel %vm1142, %v642, %v802
        %v1166 = vsel %vm1142, %v644, %v804
        %v1167 = vsel %vm1142, %v646, %v806
        %v1168 = vsel %vm1142, %v648, %v808
        %v1169 = vsel %vm1142, %v650, %v810
        %v1170 = vsel %vm1142, %v652, %v812
        %v1171 = vsel %vm1142, %v654, %v814
        %v1172 = vsel %vm1142, %v656, %v816
        %v1173 = vsel %vm1142, %v658, %v818
        %v1174 = vsel %vm1142, %v660, %v820
        %vm1175 = vcmask 261120
        %v1176 = vsel %vm1175, %v758, %v918
        %v1177 = vsel %vm1175, %v760, %v920
        %v1178 = vsel %vm1175, %v762, %v922
        %v1179 = vsel %vm1175, %v764, %v924
        %v1180 = vsel %vm1175, %v766, %v926
        %v1181 = vsel %vm1175, %v768, %v928
        %v1182 = vsel %vm1175, %v770, %v930
        %v1183 = vsel %vm1175, %v772, %v932
        %v1184 = vsel %vm1175, %v774, %v934
        %v1185 = vsel %vm1175, %v776, %v936
        %v1186 = vsel %vm1175, %v778, %v938
        %v1187 = vsel %vm1175, %v780, %v940
        %v1188 = vsel %vm1175, %v782, %v942
        %v1189 = vsel %vm1175, %v784, %v944
        %v1190 = vsel %vm1175, %v786, %v946
        %v1191 = vsel %vm1175, %v788, %v948
        %v1192 = vsel %vm1175, %v790, %v950
        %v1193 = vsel %vm1175, %v792, %v952
        %v1194 = vsel %vm1175, %v794, %v954
        %v1195 = vsel %vm1175, %v796, %v956
        %v1196 = vsel %vm1175, %v798, %v958
        %v1197 = vsel %vm1175, %v800, %v960
        %v1198 = vsel %vm1175, %v802, %v962
        %v1199 = vsel %vm1175, %v804, %v964
        %v1200 = vsel %vm1175, %v806, %v966
        %v1201 = vsel %vm1175, %v808, %v968
        %v1202 = vsel %vm1175, %v810, %v970
        %v1203 = vsel %vm1175, %v812, %v972
        %v1204 = vsel %vm1175, %v814, %v974
        %v1205 = vsel %vm1175, %v816, %v976
        %v1206 = vsel %vm1175, %v818, %v978
        %v1207 = vsel %vm1175, %v820, %v980
        %v1208 = vpack.c.bf16 %v1111, %v1110
        %v1209 = vpack.c.bf16 %v1144, %v1143
        %v1210 = vpack.c.bf16 %v1177, %v1176
        %v1211 = vpack.c.bf16 %v1018, %v1016
        %v1212 = vpack.c.bf16 %v1113, %v1112
        %v1213 = vpack.c.bf16 %v1146, %v1145
        %v1214 = vpack.c.bf16 %v1179, %v1178
        %v1215 = vpack.c.bf16 %v1022, %v1020
        %v1216 = vpack.c.bf16 %v1115, %v1114
        %v1217 = vpack.c.bf16 %v1148, %v1147
        %v1218 = vpack.c.bf16 %v1181, %v1180
        %v1219 = vpack.c.bf16 %v1026, %v1024
        %v1220 = vpack.c.bf16 %v1117, %v1116
        %v1221 = vpack.c.bf16 %v1150, %v1149
        %v1222 = vpack.c.bf16 %v1183, %v1182
        %v1223 = vpack.c.bf16 %v1030, %v1028
        %v1224 = vpack.c.bf16 %v1119, %v1118
        %v1225 = vpack.c.bf16 %v1152, %v1151
        %v1226 = vpack.c.bf16 %v1185, %v1184
        %v1227 = vpack.c.bf16 %v1034, %v1032
        %v1228 = vpack.c.bf16 %v1121, %v1120
        %v1229 = vpack.c.bf16 %v1154, %v1153
        %v1230 = vpack.c.bf16 %v1187, %v1186
        %v1231 = vpack.c.bf16 %v1038, %v1036
        %v1232 = vpack.c.bf16 %v1123, %v1122
        %v1233 = vpack.c.bf16 %v1156, %v1155
        %v1234 = vpack.c.bf16 %v1189, %v1188
        %v1235 = vpack.c.bf16 %v1042, %v1040
        %v1236 = vpack.c.bf16 %v1125, %v1124
        %v1237 = vpack.c.bf16 %v1158, %v1157
        %v1238 = vpack.c.bf16 %v1191, %v1190
        %v1239 = vpack.c.bf16 %v1046, %v1044
        %v1240 = vpack.c.bf16 %v1127, %v1126
        %v1241 = vpack.c.bf16 %v1160, %v1159
        %v1242 = vpack.c.bf16 %v1193, %v1192
        %v1243 = vpack.c.bf16 %v1050, %v1048
        %v1244 = vpack.c.bf16 %v1129, %v1128
        %v1245 = vpack.c.bf16 %v1162, %v1161
        %v1246 = vpack.c.bf16 %v1195, %v1194
        %v1247 = vpack.c.bf16 %v1054, %v1052
        %v1248 = vpack.c.bf16 %v1131, %v1130
        %v1249 = vpack.c.bf16 %v1164, %v1163
        %v1250 = vpack.c.bf16 %v1197, %v1196
        %v1251 = vpack.c.bf16 %v1058, %v1056
        %v1252 = vpack.c.bf16 %v1133, %v1132
        %v1253 = vpack.c.bf16 %v1166, %v1165
        %v1254 = vpack.c.bf16 %v1199, %v1198
        %v1255 = vpack.c.bf16 %v1062, %v1060
        %v1256 = vpack.c.bf16 %v1135, %v1134
        %v1257 = vpack.c.bf16 %v1168, %v1167
        %v1258 = vpack.c.bf16 %v1201, %v1200
        %v1259 = vpack.c.bf16 %v1066, %v1064
        %v1260 = vpack.c.bf16 %v1137, %v1136
        %v1261 = vpack.c.bf16 %v1170, %v1169
        %v1262 = vpack.c.bf16 %v1203, %v1202
        %v1263 = vpack.c.bf16 %v1070, %v1068
        %v1264 = vpack.c.bf16 %v1139, %v1138
        %v1265 = vpack.c.bf16 %v1172, %v1171
        %v1266 = vpack.c.bf16 %v1205, %v1204
        %v1267 = vpack.c.bf16 %v1074, %v1072
        %v1268 = vpack.c.bf16 %v1141, %v1140
        %v1269 = vpack.c.bf16 %v1174, %v1173
        %v1270 = vpack.c.bf16 %v1207, %v1206
        %v1271 = vpack.c.bf16 %v1075, %v1076
        %v1272 = vld [vmem:[%s1] sm:$0xff]
        %v1273 = vld [vmem:[%s1 + $0x8] sm:$0xff]
        %v1274 = vld [vmem:[%s1 + $0x10] sm:$0xff]
        %v1275 = vld [vmem:[%s1 + $0x18] sm:$0xff]
        %v1276 = vld [vmem:[%s1 + $0x20] sm:$0xff]
        %v1277 = vld [vmem:[%s1 + $0x28] sm:$0xff]
        %v1278 = vld [vmem:[%s1 + $0x30] sm:$0xff]
        %v1279 = vld [vmem:[%s1 + $0x38] sm:$0xff]
        %v1280 = vld [vmem:[%s1 + $0x40] sm:$0xff]
        %v1281 = vld [vmem:[%s1 + $0x48] sm:$0xff]
        %v1282 = vld [vmem:[%s1 + $0x50] sm:$0xff]
        %v1283 = vld [vmem:[%s1 + $0x58] sm:$0xff]
        %v1284 = vld [vmem:[%s1 + $0x60] sm:$0xff]
        %v1285 = vld [vmem:[%s1 + $0x68] sm:$0xff]
        %v1286 = vld [vmem:[%s1 + $0x70] sm:$0xff]
        %v1287 = vld [vmem:[%s1 + $0x78] sm:$0xff]
        %v1288 = vld [vmem:[%s1 + $0x80] sm:$0xff]
        %v1289 = vld [vmem:[%s1 + $0x88] sm:$0xff]
        %v1290 = vld [vmem:[%s1 + $0x90] sm:$0xff]
        %v1291 = vld [vmem:[%s1 + $0x98] sm:$0xff]
        %v1292 = vld [vmem:[%s1 + $0xa0] sm:$0xff]
        %v1293 = vld [vmem:[%s1 + $0xa8] sm:$0xff]
        %v1294 = vld [vmem:[%s1 + $0xb0] sm:$0xff]
        %v1295 = vld [vmem:[%s1 + $0xb8] sm:$0xff]
        %v1296 = vld [vmem:[%s1 + $0xc0] sm:$0xff]
        %v1297 = vld [vmem:[%s1 + $0xc8] sm:$0xff]
        %v1298 = vld [vmem:[%s1 + $0xd0] sm:$0xff]
        %v1299 = vld [vmem:[%s1 + $0xd8] sm:$0xff]
        %v1300 = vld [vmem:[%s1 + $0xe0] sm:$0xff]
        %v1301 = vld [vmem:[%s1 + $0xe8] sm:$0xff]
        %v1302 = vld [vmem:[%s1 + $0xf0] sm:$0xff]
        %v1303 = vld [vmem:[%s1 + $0xf8] sm:$0xff]
        %v1304 = vld [vmem:[%s1 + $0x100] sm:$0xff]
        %v1305 = vld [vmem:[%s1 + $0x108] sm:$0xff]
        %v1306 = vld [vmem:[%s1 + $0x110] sm:$0xff]
        %v1307 = vld [vmem:[%s1 + $0x118] sm:$0xff]
        %v1308 = vld [vmem:[%s1 + $0x120] sm:$0xff]
        %v1309 = vld [vmem:[%s1 + $0x128] sm:$0xff]
        %v1310 = vld [vmem:[%s1 + $0x130] sm:$0xff]
        %v1311 = vld [vmem:[%s1 + $0x138] sm:$0xff]
        %v1312 = vld [vmem:[%s1 + $0x140] sm:$0xff]
        %v1313 = vld [vmem:[%s1 + $0x148] sm:$0xff]
        %v1314 = vld [vmem:[%s1 + $0x150] sm:$0xff]
        %v1315 = vld [vmem:[%s1 + $0x158] sm:$0xff]
        %v1316 = vld [vmem:[%s1 + $0x160] sm:$0xff]
        %v1317 = vld [vmem:[%s1 + $0x168] sm:$0xff]
        %v1318 = vld [vmem:[%s1 + $0x170] sm:$0xff]
        %v1319 = vld [vmem:[%s1 + $0x178] sm:$0xff]
        %v1320 = vld [vmem:[%s1 + $0x180] sm:$0xff]
        %v1321 = vld [vmem:[%s1 + $0x188] sm:$0xff]
        %v1322 = vld [vmem:[%s1 + $0x190] sm:$0xff]
        %v1323 = vld [vmem:[%s1 + $0x198] sm:$0xff]
        %v1324 = vld [vmem:[%s1 + $0x1a0] sm:$0xff]
        %v1325 = vld [vmem:[%s1 + $0x1a8] sm:$0xff]
        %v1326 = vld [vmem:[%s1 + $0x1b0] sm:$0xff]
        %v1327 = vld [vmem:[%s1 + $0x1b8] sm:$0xff]
        %v1328 = vld [vmem:[%s1 + $0x1c0] sm:$0xff]
        %v1329 = vld [vmem:[%s1 + $0x1c8] sm:$0xff]
        %v1330 = vld [vmem:[%s1 + $0x1d0] sm:$0xff]
        %v1331 = vld [vmem:[%s1 + $0x1d8] sm:$0xff]
        %v1332 = vld [vmem:[%s2] sm:$0x3]
        %v1334 = vlaneseq
        %v1335 = vshrl.u32 %v1334, 7
        %v1336 = vsub.s32 0, %v1335
        %v1337 = vrot.slane %v1332, %v1336
        %v1338 = vlaneseq
        %v1339 = vshrl.u32 %v1338, 7
        %v1340 = vsub.s32 1, %v1339
        %v1341 = vrot.slane %v1332, %v1340
        %v1404 = vunpack.c.l.b16 %v1272
        %v1405 = vunpack.c.h.b16 %v1272
        %v1406 = vunpack.c.l.b16 %v1273
        %v1407 = vunpack.c.h.b16 %v1273
        %v1408 = vunpack.c.l.b16 %v1274
        %v1409 = vunpack.c.h.b16 %v1274
        %v1410 = vunpack.c.l.b16 %v1275
        %v1411 = vunpack.c.h.b16 %v1275
        %v1412 = vunpack.c.l.b16 %v1276
        %v1413 = vunpack.c.h.b16 %v1276
        %v1414 = vunpack.c.l.b16 %v1277
        %v1415 = vunpack.c.h.b16 %v1277
        %v1416 = vunpack.c.l.b16 %v1278
        %v1417 = vunpack.c.h.b16 %v1278
        %v1418 = vunpack.c.l.b16 %v1279
        %v1419 = vunpack.c.h.b16 %v1279
        %v1420 = vunpack.c.l.b16 %v1280
        %v1421 = vunpack.c.h.b16 %v1280
        %v1422 = vunpack.c.l.b16 %v1281
        %v1423 = vunpack.c.h.b16 %v1281
        %v1424 = vunpack.c.l.b16 %v1282
        %v1425 = vunpack.c.h.b16 %v1282
        %v1426 = vunpack.c.l.b16 %v1283
        %v1427 = vunpack.c.h.b16 %v1283
        %v1428 = vunpack.c.l.b16 %v1284
        %v1429 = vunpack.c.h.b16 %v1284
        %v1430 = vunpack.c.l.b16 %v1285
        %v1431 = vunpack.c.h.b16 %v1285
        %v1432 = vunpack.c.l.b16 %v1286
        %v1433 = vunpack.c.h.b16 %v1286
        %v1434 = vunpack.c.l.b16 %v1287
        %v1435 = vunpack.c.h.b16 %v1287
        %v1436 = vunpack.c.l.b16 %v1288
        %v1437 = vunpack.c.h.b16 %v1288
        %v1438 = vunpack.c.l.b16 %v1289
        %v1439 = vunpack.c.h.b16 %v1289
        %v1440 = vunpack.c.l.b16 %v1290
        %v1441 = vunpack.c.h.b16 %v1290
        %v1442 = vunpack.c.l.b16 %v1291
        %v1443 = vunpack.c.h.b16 %v1291
        %v1444 = vunpack.c.l.b16 %v1292
        %v1445 = vunpack.c.h.b16 %v1292
        %v1446 = vunpack.c.l.b16 %v1293
        %v1447 = vunpack.c.h.b16 %v1293
        %v1448 = vunpack.c.l.b16 %v1294
        %v1449 = vunpack.c.h.b16 %v1294
        %v1450 = vunpack.c.l.b16 %v1295
        %v1451 = vunpack.c.h.b16 %v1295
        %v1452 = vunpack.c.l.b16 %v1296
        %v1453 = vunpack.c.h.b16 %v1296
        %v1454 = vunpack.c.l.b16 %v1297
        %v1455 = vunpack.c.h.b16 %v1297
        %v1456 = vunpack.c.l.b16 %v1298
        %v1457 = vunpack.c.h.b16 %v1298
        %v1458 = vunpack.c.l.b16 %v1299
        %v1459 = vunpack.c.h.b16 %v1299
        %v1460 = vunpack.c.l.b16 %v1300
        %v1461 = vunpack.c.h.b16 %v1300
        %v1462 = vunpack.c.l.b16 %v1301
        %v1463 = vunpack.c.h.b16 %v1301
        %v1464 = vunpack.c.l.b16 %v1302
        %v1465 = vunpack.c.h.b16 %v1302
        %v1466 = vunpack.c.l.b16 %v1303
        %v1467 = vunpack.c.h.b16 %v1303
        %v1468 = vunpack.c.l.b16 %v1304
        %v1469 = vunpack.c.h.b16 %v1304
        %v1470 = vunpack.c.l.b16 %v1305
        %v1471 = vunpack.c.h.b16 %v1305
        %v1472 = vunpack.c.l.b16 %v1306
        %v1473 = vunpack.c.h.b16 %v1306
        %v1474 = vunpack.c.l.b16 %v1307
        %v1475 = vunpack.c.h.b16 %v1307
        %v1476 = vunpack.c.l.b16 %v1308
        %v1477 = vunpack.c.h.b16 %v1308
        %v1478 = vunpack.c.l.b16 %v1309
        %v1479 = vunpack.c.h.b16 %v1309
        %v1480 = vunpack.c.l.b16 %v1310
        %v1481 = vunpack.c.h.b16 %v1310
        %v1482 = vunpack.c.l.b16 %v1311
        %v1483 = vunpack.c.h.b16 %v1311
        %v1484 = vunpack.c.l.b16 %v1312
        %v1485 = vunpack.c.h.b16 %v1312
        %v1486 = vunpack.c.l.b16 %v1313
        %v1487 = vunpack.c.h.b16 %v1313
        %v1488 = vunpack.c.l.b16 %v1314
        %v1489 = vunpack.c.h.b16 %v1314
        %v1490 = vunpack.c.l.b16 %v1315
        %v1491 = vunpack.c.h.b16 %v1315
        %v1492 = vunpack.c.l.b16 %v1316
        %v1493 = vunpack.c.h.b16 %v1316
        %v1494 = vunpack.c.l.b16 %v1317
        %v1495 = vunpack.c.h.b16 %v1317
        %v1496 = vunpack.c.l.b16 %v1318
        %v1497 = vunpack.c.h.b16 %v1318
        %v1498 = vunpack.c.l.b16 %v1319
        %v1499 = vunpack.c.h.b16 %v1319
        %v1500 = vunpack.c.l.b16 %v1320
        %v1501 = vunpack.c.h.b16 %v1320
        %v1502 = vunpack.c.l.b16 %v1321
        %v1503 = vunpack.c.h.b16 %v1321
        %v1504 = vunpack.c.l.b16 %v1322
        %v1505 = vunpack.c.h.b16 %v1322
        %v1506 = vunpack.c.l.b16 %v1323
        %v1507 = vunpack.c.h.b16 %v1323
        %v1508 = vunpack.c.l.b16 %v1324
        %v1509 = vunpack.c.h.b16 %v1324
        %v1510 = vunpack.c.l.b16 %v1325
        %v1511 = vunpack.c.h.b16 %v1325
        %v1512 = vunpack.c.l.b16 %v1326
        %v1513 = vunpack.c.h.b16 %v1326
        %v1514 = vunpack.c.l.b16 %v1327
        %v1515 = vunpack.c.h.b16 %v1327
        %v1516 = vunpack.c.l.b16 %v1328
        %v1517 = vunpack.c.h.b16 %v1328
        %v1518 = vunpack.c.l.b16 %v1329
        %v1519 = vunpack.c.h.b16 %v1329
        %v1520 = vunpack.c.l.b16 %v1330
        %v1521 = vunpack.c.h.b16 %v1330
        %v1522 = vunpack.c.l.b16 %v1331
        %v1523 = vunpack.c.h.b16 %v1331
        %v1524 = vpack.c.b16 %v1406, %v1404
        %v1525 = vpack.c.b16 %v1407, %v1405
        %v1526 = vpack.c.b16 %v1410, %v1408
        %v1527 = vpack.c.b16 %v1411, %v1409
        %v1528 = vpack.c.b16 %v1414, %v1412
        %v1529 = vpack.c.b16 %v1415, %v1413
        %v1530 = vpack.c.b16 %v1418, %v1416
        %v1531 = vpack.c.b16 %v1419, %v1417
        %v1532 = vpack.c.b16 %v1422, %v1420
        %v1533 = vpack.c.b16 %v1423, %v1421
        %v1534 = vpack.c.b16 %v1426, %v1424
        %v1535 = vpack.c.b16 %v1427, %v1425
        %v1536 = vpack.c.b16 %v1430, %v1428
        %v1537 = vpack.c.b16 %v1431, %v1429
        %v1538 = vpack.c.b16 %v1434, %v1432
        %v1539 = vpack.c.b16 %v1435, %v1433
        %v1540 = vpack.c.b16 %v1438, %v1436
        %v1541 = vpack.c.b16 %v1439, %v1437
        %v1542 = vpack.c.b16 %v1442, %v1440
        %v1543 = vpack.c.b16 %v1443, %v1441
        %v1544 = vpack.c.b16 %v1446, %v1444
        %v1545 = vpack.c.b16 %v1447, %v1445
        %v1546 = vpack.c.b16 %v1450, %v1448
        %v1547 = vpack.c.b16 %v1451, %v1449
        %v1548 = vpack.c.b16 %v1454, %v1452
        %v1549 = vpack.c.b16 %v1455, %v1453
        %v1550 = vpack.c.b16 %v1458, %v1456
        %v1551 = vpack.c.b16 %v1459, %v1457
        %v1552 = vpack.c.b16 %v1462, %v1460
        %v1553 = vpack.c.b16 %v1463, %v1461
        %v1554 = vpack.c.b16 %v1466, %v1464
        %v1555 = vpack.c.b16 %v1467, %v1465
        %v1556 = vpack.c.b16 %v1470, %v1468
        %v1557 = vpack.c.b16 %v1471, %v1469
        %v1558 = vpack.c.b16 %v1474, %v1472
        %v1559 = vpack.c.b16 %v1475, %v1473
        %v1560 = vpack.c.b16 %v1478, %v1476
        %v1561 = vpack.c.b16 %v1479, %v1477
        %v1562 = vpack.c.b16 %v1482, %v1480
        %v1563 = vpack.c.b16 %v1483, %v1481
        %v1564 = vpack.c.b16 %v1486, %v1484
        %v1565 = vpack.c.b16 %v1487, %v1485
        %v1566 = vpack.c.b16 %v1490, %v1488
        %v1567 = vpack.c.b16 %v1491, %v1489
        %v1568 = vpack.c.b16 %v1494, %v1492
        %v1569 = vpack.c.b16 %v1495, %v1493
        %v1570 = vpack.c.b16 %v1498, %v1496
        %v1571 = vpack.c.b16 %v1499, %v1497
        %v1572 = vpack.c.b16 %v1502, %v1500
        %v1573 = vpack.c.b16 %v1503, %v1501
        %v1574 = vpack.c.b16 %v1506, %v1504
        %v1575 = vpack.c.b16 %v1507, %v1505
        %v1576 = vpack.c.b16 %v1510, %v1508
        %v1577 = vpack.c.b16 %v1511, %v1509
        %v1578 = vpack.c.b16 %v1514, %v1512
        %v1579 = vpack.c.b16 %v1515, %v1513
        %v1580 = vpack.c.b16 %v1518, %v1516
        %v1581 = vpack.c.b16 %v1519, %v1517
        %v1582 = vpack.c.b16 %v1522, %v1520
        %v1583 = vpack.c.b16 %v1523, %v1521
        %v1645 = vsel %vm1109, %v1211, 0
        %v1648 = vsel %vm1109, %v1215, 0
        %v1651 = vsel %vm1109, %v1219, 0
        %v1654 = vsel %vm1109, %v1223, 0
        %v1657 = vsel %vm1109, %v1227, 0
        %v1660 = vsel %vm1109, %v1231, 0
        %v1663 = vsel %vm1109, %v1235, 0
        %v1666 = vsel %vm1109, %v1239, 0
        %v1669 = vsel %vm1109, %v1243, 0
        %v1672 = vsel %vm1109, %v1247, 0
        %v1675 = vsel %vm1109, %v1251, 0
        %v1678 = vsel %vm1109, %v1255, 0
        %v1681 = vsel %vm1109, %v1259, 0
        %v1684 = vsel %vm1109, %v1263, 0
        %v1687 = vsel %vm1109, %v1267, 0
        %v1690 = vsel %vm1109, %v1271, 0
        %1692 = vmatprep.subr.bf16.mxu0 %v1539
        %1693 = vmatpush1.bf16.msra.mxu0 %v1538
        %1694 = vmatprep.subr.bf16.mxu0 %v1537
        %1695 = vmatpush1.bf16.msra.mxu0 %v1536
        %1696 = vmatprep.subr.bf16.mxu0 %v1535
        %1697 = vmatpush1.bf16.msra.mxu0 %v1534
        %1698 = vmatprep.subr.bf16.mxu0 %v1533
        %1699 = vmatpush1.bf16.msra.mxu0 %v1532
        %1700 = vmatprep.subr.bf16.mxu0 %v1531
        %1701 = vmatpush1.bf16.msra.mxu0 %v1530
        %1702 = vmatprep.subr.bf16.mxu0 %v1529
        %1703 = vmatpush1.bf16.msra.mxu0 %v1528
        %1704 = vmatprep.subr.bf16.mxu0 %v1527
        %1705 = vmatpush1.bf16.msra.mxu0 %v1526
        %1706 = vmatprep.subr.bf16.mxu0 %v1525
        %1707 = vmatpush1.bf16.msra.mxu0 %v1524
        %1708 = vmatprep.subr.bf16.mxu0 %v1555
        %1709 = vmatpush2.bf16.msra.mxu0 %v1554
        %1710 = vmatprep.subr.bf16.mxu0 %v1553
        %1711 = vmatpush2.bf16.msra.mxu0 %v1552
        %1712 = vmatprep.subr.bf16.mxu0 %v1551
        %1713 = vmatpush2.bf16.msra.mxu0 %v1550
        %1714 = vmatprep.subr.bf16.mxu0 %v1549
        %1715 = vmatpush2.bf16.msra.mxu0 %v1548
        %1716 = vmatprep.subr.bf16.mxu0 %v1547
        %1717 = vmatpush2.bf16.msra.mxu0 %v1546
        %1718 = vmatprep.subr.bf16.mxu0 %v1545
        %1719 = vmatpush2.bf16.msra.mxu0 %v1544
        %1720 = vmatprep.subr.bf16.mxu0 %v1543
        %1721 = vmatpush2.bf16.msra.mxu0 %v1542
        %1722 = vmatprep.subr.bf16.mxu0 %v1541
        %1723 = vmatpush2.bf16.msra.mxu0 %v1540
        %1724 = vmatprep.mubr.bf16.mxu0 %v1209
        %1725 = vmatmul.mubr.bf16.gmra.mxu0 %v1208
        %v1726 = vpop.f32.mrf.mxu0
        %v1727 = vadd.f32 %v1337, %v1726
        %v1728 = vpop.f32.mrf.mxu0
        %v1729 = vadd.f32 %v1341, %v1728
        %v1730 = vpop.f32.mrf.mxu0
        %v1731 = vadd.f32 %v1337, %v1730
        %v1732 = vpop.f32.mrf.mxu0
        %v1733 = vadd.f32 %v1341, %v1732
        %1734 = vmatprep.mubr.bf16.mxu0 %v1213
        %1735 = vmatmul.mubr.bf16.gmra.mxu0 %v1212
        %v1736 = vpop.f32.mrf.mxu0
        %v1737 = vadd.f32 %v1337, %v1736
        %v1738 = vpop.f32.mrf.mxu0
        %v1739 = vadd.f32 %v1341, %v1738
        %v1740 = vpop.f32.mrf.mxu0
        %v1741 = vadd.f32 %v1337, %v1740
        %v1742 = vpop.f32.mrf.mxu0
        %v1743 = vadd.f32 %v1341, %v1742
        %1744 = vmatprep.mubr.bf16.mxu0 %v1217
        %1745 = vmatmul.mubr.bf16.gmra.mxu0 %v1216
        %v1746 = vpop.f32.mrf.mxu0
        %v1747 = vadd.f32 %v1337, %v1746
        %v1748 = vpop.f32.mrf.mxu0
        %v1749 = vadd.f32 %v1341, %v1748
        %v1750 = vpop.f32.mrf.mxu0
        %v1751 = vadd.f32 %v1337, %v1750
        %v1752 = vpop.f32.mrf.mxu0
        %v1753 = vadd.f32 %v1341, %v1752
        %1754 = vmatprep.mubr.bf16.mxu0 %v1221
        %1755 = vmatmul.mubr.bf16.gmra.mxu0 %v1220
        %v1756 = vpop.f32.mrf.mxu0
        %v1757 = vadd.f32 %v1337, %v1756
        %v1758 = vpop.f32.mrf.mxu0
        %v1759 = vadd.f32 %v1341, %v1758
        %v1760 = vpop.f32.mrf.mxu0
        %v1761 = vadd.f32 %v1337, %v1760
        %v1762 = vpop.f32.mrf.mxu0
        %v1763 = vadd.f32 %v1341, %v1762
        %1764 = vmatprep.mubr.bf16.mxu0 %v1225
        %1765 = vmatmul.mubr.bf16.gmra.mxu0 %v1224
        %v1766 = vpop.f32.mrf.mxu0
        %v1767 = vadd.f32 %v1337, %v1766
        %v1768 = vpop.f32.mrf.mxu0
        %v1769 = vadd.f32 %v1341, %v1768
        %v1770 = vpop.f32.mrf.mxu0
        %v1771 = vadd.f32 %v1337, %v1770
        %v1772 = vpop.f32.mrf.mxu0
        %v1773 = vadd.f32 %v1341, %v1772
        %1774 = vmatprep.mubr.bf16.mxu0 %v1229
        %1775 = vmatmul.mubr.bf16.gmra.mxu0 %v1228
        %v1776 = vpop.f32.mrf.mxu0
        %v1777 = vadd.f32 %v1337, %v1776
        %v1778 = vpop.f32.mrf.mxu0
        %v1779 = vadd.f32 %v1341, %v1778
        %v1780 = vpop.f32.mrf.mxu0
        %v1781 = vadd.f32 %v1337, %v1780
        %v1782 = vpop.f32.mrf.mxu0
        %v1783 = vadd.f32 %v1341, %v1782
        %1784 = vmatprep.mubr.bf16.mxu0 %v1233
        %1785 = vmatmul.mubr.bf16.gmra.mxu0 %v1232
        %v1786 = vpop.f32.mrf.mxu0
        %v1787 = vadd.f32 %v1337, %v1786
        %v1788 = vpop.f32.mrf.mxu0
        %v1789 = vadd.f32 %v1341, %v1788
        %v1790 = vpop.f32.mrf.mxu0
        %v1791 = vadd.f32 %v1337, %v1790
        %v1792 = vpop.f32.mrf.mxu0
        %v1793 = vadd.f32 %v1341, %v1792
        %1794 = vmatprep.mubr.bf16.mxu0 %v1237
        %1795 = vmatmul.mubr.bf16.gmra.mxu0 %v1236
        %v1796 = vpop.f32.mrf.mxu0
        %v1797 = vadd.f32 %v1337, %v1796
        %v1798 = vpop.f32.mrf.mxu0
        %v1799 = vadd.f32 %v1341, %v1798
        %v1800 = vpop.f32.mrf.mxu0
        %v1801 = vadd.f32 %v1337, %v1800
        %v1802 = vpop.f32.mrf.mxu0
        %v1803 = vadd.f32 %v1341, %v1802
        %1804 = vmatprep.mubr.bf16.mxu0 %v1241
        %1805 = vmatmul.mubr.bf16.gmra.mxu0 %v1240
        %v1806 = vpop.f32.mrf.mxu0
        %v1807 = vadd.f32 %v1337, %v1806
        %v1808 = vpop.f32.mrf.mxu0
        %v1809 = vadd.f32 %v1341, %v1808
        %v1810 = vpop.f32.mrf.mxu0
        %v1811 = vadd.f32 %v1337, %v1810
        %v1812 = vpop.f32.mrf.mxu0
        %v1813 = vadd.f32 %v1341, %v1812
        %1814 = vmatprep.mubr.bf16.mxu0 %v1245
        %1815 = vmatmul.mubr.bf16.gmra.mxu0 %v1244
        %v1816 = vpop.f32.mrf.mxu0
        %v1817 = vadd.f32 %v1337, %v1816
        %v1818 = vpop.f32.mrf.mxu0
        %v1819 = vadd.f32 %v1341, %v1818
        %v1820 = vpop.f32.mrf.mxu0
        %v1821 = vadd.f32 %v1337, %v1820
        %v1822 = vpop.f32.mrf.mxu0
        %v1823 = vadd.f32 %v1341, %v1822
        %1824 = vmatprep.mubr.bf16.mxu0 %v1249
        %1825 = vmatmul.mubr.bf16.gmra.mxu0 %v1248
        %v1826 = vpop.f32.mrf.mxu0
        %v1827 = vadd.f32 %v1337, %v1826
        %v1828 = vpop.f32.mrf.mxu0
        %v1829 = vadd.f32 %v1341, %v1828
        %v1830 = vpop.f32.mrf.mxu0
        %v1831 = vadd.f32 %v1337, %v1830
        %v1832 = vpop.f32.mrf.mxu0
        %v1833 = vadd.f32 %v1341, %v1832
        %1834 = vmatprep.mubr.bf16.mxu0 %v1253
        %1835 = vmatmul.mubr.bf16.gmra.mxu0 %v1252
        %v1836 = vpop.f32.mrf.mxu0
        %v1837 = vadd.f32 %v1337, %v1836
        %v1838 = vpop.f32.mrf.mxu0
        %v1839 = vadd.f32 %v1341, %v1838
        %v1840 = vpop.f32.mrf.mxu0
        %v1841 = vadd.f32 %v1337, %v1840
        %v1842 = vpop.f32.mrf.mxu0
        %v1843 = vadd.f32 %v1341, %v1842
        %1844 = vmatprep.mubr.bf16.mxu0 %v1257
        %1845 = vmatmul.mubr.bf16.gmra.mxu0 %v1256
        %v1846 = vpop.f32.mrf.mxu0
        %v1847 = vadd.f32 %v1337, %v1846
        %v1848 = vpop.f32.mrf.mxu0
        %v1849 = vadd.f32 %v1341, %v1848
        %v1850 = vpop.f32.mrf.mxu0
        %v1851 = vadd.f32 %v1337, %v1850
        %v1852 = vpop.f32.mrf.mxu0
        %v1853 = vadd.f32 %v1341, %v1852
        %1854 = vmatprep.mubr.bf16.mxu0 %v1261
        %1855 = vmatmul.mubr.bf16.gmra.mxu0 %v1260
        %v1856 = vpop.f32.mrf.mxu0
        %v1857 = vadd.f32 %v1337, %v1856
        %v1858 = vpop.f32.mrf.mxu0
        %v1859 = vadd.f32 %v1341, %v1858
        %v1860 = vpop.f32.mrf.mxu0
        %v1861 = vadd.f32 %v1337, %v1860
        %v1862 = vpop.f32.mrf.mxu0
        %v1863 = vadd.f32 %v1341, %v1862
        %1864 = vmatprep.mubr.bf16.mxu0 %v1265
        %1865 = vmatmul.mubr.bf16.gmra.mxu0 %v1264
        %v1866 = vpop.f32.mrf.mxu0
        %v1867 = vadd.f32 %v1337, %v1866
        %v1868 = vpop.f32.mrf.mxu0
        %v1869 = vadd.f32 %v1341, %v1868
        %v1870 = vpop.f32.mrf.mxu0
        %v1871 = vadd.f32 %v1337, %v1870
        %v1872 = vpop.f32.mrf.mxu0
        %v1873 = vadd.f32 %v1341, %v1872
        %1874 = vmatprep.mubr.bf16.mxu0 %v1269
        %1875 = vmatmul.mubr.bf16.gmra.mxu0 %v1268
        %v1876 = vpop.f32.mrf.mxu0
        %v1877 = vadd.f32 %v1337, %v1876
        %v1878 = vpop.f32.mrf.mxu0
        %v1879 = vadd.f32 %v1341, %v1878
        %v1880 = vpop.f32.mrf.mxu0
        %v1881 = vadd.f32 %v1337, %v1880
        %v1882 = vpop.f32.mrf.mxu0
        %v1883 = vadd.f32 %v1341, %v1882
        %1884 = vdwg.mxu0
        %1885 = vmatprep.subr.bf16.mxu0 %v1571
        %1886 = vmatpush1.bf16.msra.mxu0 %v1570
        %1887 = vmatprep.subr.bf16.mxu0 %v1569
        %1888 = vmatpush1.bf16.msra.mxu0 %v1568
        %1889 = vmatprep.subr.bf16.mxu0 %v1567
        %1890 = vmatpush1.bf16.msra.mxu0 %v1566
        %1891 = vmatprep.subr.bf16.mxu0 %v1565
        %1892 = vmatpush1.bf16.msra.mxu0 %v1564
        %1893 = vmatprep.subr.bf16.mxu0 %v1563
        %1894 = vmatpush1.bf16.msra.mxu0 %v1562
        %1895 = vmatprep.subr.bf16.mxu0 %v1561
        %1896 = vmatpush1.bf16.msra.mxu0 %v1560
        %1897 = vmatprep.subr.bf16.mxu0 %v1559
        %1898 = vmatpush1.bf16.msra.mxu0 %v1558
        %1899 = vmatprep.subr.bf16.mxu0 %v1557
        %1900 = vmatpush1.bf16.msra.mxu0 %v1556
        %1901 = vmatprep.subr.bf16.mxu0 0
        %1902 = vmatpush2.bf16.msra.mxu0 0
        %1903 = vmatprep.subr.bf16.mxu0 0
        %1904 = vmatpush2.bf16.msra.mxu0 0
        %1905 = vmatprep.subr.bf16.mxu0 %v1583
        %1906 = vmatpush2.bf16.msra.mxu0 %v1582
        %1907 = vmatprep.subr.bf16.mxu0 %v1581
        %1908 = vmatpush2.bf16.msra.mxu0 %v1580
        %1909 = vmatprep.subr.bf16.mxu0 %v1579
        %1910 = vmatpush2.bf16.msra.mxu0 %v1578
        %1911 = vmatprep.subr.bf16.mxu0 %v1577
        %1912 = vmatpush2.bf16.msra.mxu0 %v1576
        %1913 = vmatprep.subr.bf16.mxu0 %v1575
        %1914 = vmatpush2.bf16.msra.mxu0 %v1574
        %1915 = vmatprep.subr.bf16.mxu0 %v1573
        %1916 = vmatpush2.bf16.msra.mxu0 %v1572
        %1917 = vmatprep.mubr.bf16.mxu0 %v1645
        %1918 = vmatmul.mubr.bf16.gmra.mxu0 %v1210
        %v1919 = vpop.f32.mrf.mxu0
        %v1920 = vadd.f32 %v1727, %v1919
        %v1921 = vpop.f32.mrf.mxu0
        %v1922 = vadd.f32 %v1729, %v1921
        %v1923 = vpop.f32.mrf.mxu0
        %v1924 = vadd.f32 %v1731, %v1923
        %v1925 = vpop.f32.mrf.mxu0
        %v1926 = vadd.f32 %v1733, %v1925
        %1927 = vmatprep.mubr.bf16.mxu0 %v1648
        %1928 = vmatmul.mubr.bf16.gmra.mxu0 %v1214
        %v1929 = vpop.f32.mrf.mxu0
        %v1930 = vadd.f32 %v1737, %v1929
        %v1931 = vpop.f32.mrf.mxu0
        %v1932 = vadd.f32 %v1739, %v1931
        %v1933 = vpop.f32.mrf.mxu0
        %v1934 = vadd.f32 %v1741, %v1933
        %v1935 = vpop.f32.mrf.mxu0
        %v1936 = vadd.f32 %v1743, %v1935
        %1937 = vmatprep.mubr.bf16.mxu0 %v1651
        %1938 = vmatmul.mubr.bf16.gmra.mxu0 %v1218
        %v1939 = vpop.f32.mrf.mxu0
        %v1940 = vadd.f32 %v1747, %v1939
        %v1941 = vpop.f32.mrf.mxu0
        %v1942 = vadd.f32 %v1749, %v1941
        %v1943 = vpop.f32.mrf.mxu0
        %v1944 = vadd.f32 %v1751, %v1943
        %v1945 = vpop.f32.mrf.mxu0
        %v1946 = vadd.f32 %v1753, %v1945
        %1947 = vmatprep.mubr.bf16.mxu0 %v1654
        %1948 = vmatmul.mubr.bf16.gmra.mxu0 %v1222
        %v1949 = vpop.f32.mrf.mxu0
        %v1950 = vadd.f32 %v1757, %v1949
        %v1951 = vpop.f32.mrf.mxu0
        %v1952 = vadd.f32 %v1759, %v1951
        %v1953 = vpop.f32.mrf.mxu0
        %v1954 = vadd.f32 %v1761, %v1953
        %v1955 = vpop.f32.mrf.mxu0
        %v1956 = vadd.f32 %v1763, %v1955
        %1957 = vmatprep.mubr.bf16.mxu0 %v1657
        %1958 = vmatmul.mubr.bf16.gmra.mxu0 %v1226
        %v1959 = vpop.f32.mrf.mxu0
        %v1960 = vadd.f32 %v1767, %v1959
        %v1961 = vpop.f32.mrf.mxu0
        %v1962 = vadd.f32 %v1769, %v1961
        %v1963 = vpop.f32.mrf.mxu0
        %v1964 = vadd.f32 %v1771, %v1963
        %v1965 = vpop.f32.mrf.mxu0
        %v1966 = vadd.f32 %v1773, %v1965
        %1967 = vmatprep.mubr.bf16.mxu0 %v1660
        %1968 = vmatmul.mubr.bf16.gmra.mxu0 %v1230
        %v1969 = vpop.f32.mrf.mxu0
        %v1970 = vadd.f32 %v1777, %v1969
        %v1971 = vpop.f32.mrf.mxu0
        %v1972 = vadd.f32 %v1779, %v1971
        %v1973 = vpop.f32.mrf.mxu0
        %v1974 = vadd.f32 %v1781, %v1973
        %v1975 = vpop.f32.mrf.mxu0
        %v1976 = vadd.f32 %v1783, %v1975
        %1977 = vmatprep.mubr.bf16.mxu0 %v1663
        %1978 = vmatmul.mubr.bf16.gmra.mxu0 %v1234
        %v1979 = vpop.f32.mrf.mxu0
        %v1980 = vadd.f32 %v1787, %v1979
        %v1981 = vpop.f32.mrf.mxu0
        %v1982 = vadd.f32 %v1789, %v1981
        %v1983 = vpop.f32.mrf.mxu0
        %v1984 = vadd.f32 %v1791, %v1983
        %v1985 = vpop.f32.mrf.mxu0
        %v1986 = vadd.f32 %v1793, %v1985
        %1987 = vmatprep.mubr.bf16.mxu0 %v1666
        %1988 = vmatmul.mubr.bf16.gmra.mxu0 %v1238
        %v1989 = vpop.f32.mrf.mxu0
        %v1990 = vadd.f32 %v1797, %v1989
        %v1991 = vpop.f32.mrf.mxu0
        %v1992 = vadd.f32 %v1799, %v1991
        %v1993 = vpop.f32.mrf.mxu0
        %v1994 = vadd.f32 %v1801, %v1993
        %v1995 = vpop.f32.mrf.mxu0
        %v1996 = vadd.f32 %v1803, %v1995
        %1997 = vmatprep.mubr.bf16.mxu0 %v1669
        %1998 = vmatmul.mubr.bf16.gmra.mxu0 %v1242
        %v1999 = vpop.f32.mrf.mxu0
        %v2000 = vadd.f32 %v1807, %v1999
        %v2001 = vpop.f32.mrf.mxu0
        %v2002 = vadd.f32 %v1809, %v2001
        %v2003 = vpop.f32.mrf.mxu0
        %v2004 = vadd.f32 %v1811, %v2003
        %v2005 = vpop.f32.mrf.mxu0
        %v2006 = vadd.f32 %v1813, %v2005
        %2007 = vmatprep.mubr.bf16.mxu0 %v1672
        %2008 = vmatmul.mubr.bf16.gmra.mxu0 %v1246
        %v2009 = vpop.f32.mrf.mxu0
        %v2010 = vadd.f32 %v1817, %v2009
        %v2011 = vpop.f32.mrf.mxu0
        %v2012 = vadd.f32 %v1819, %v2011
        %v2013 = vpop.f32.mrf.mxu0
        %v2014 = vadd.f32 %v1821, %v2013
        %v2015 = vpop.f32.mrf.mxu0
        %v2016 = vadd.f32 %v1823, %v2015
        %2017 = vmatprep.mubr.bf16.mxu0 %v1675
        %2018 = vmatmul.mubr.bf16.gmra.mxu0 %v1250
        %v2019 = vpop.f32.mrf.mxu0
        %v2020 = vadd.f32 %v1827, %v2019
        %v2021 = vpop.f32.mrf.mxu0
        %v2022 = vadd.f32 %v1829, %v2021
        %v2023 = vpop.f32.mrf.mxu0
        %v2024 = vadd.f32 %v1831, %v2023
        %v2025 = vpop.f32.mrf.mxu0
        %v2026 = vadd.f32 %v1833, %v2025
        %2027 = vmatprep.mubr.bf16.mxu0 %v1678
        %2028 = vmatmul.mubr.bf16.gmra.mxu0 %v1254
        %v2029 = vpop.f32.mrf.mxu0
        %v2030 = vadd.f32 %v1837, %v2029
        %v2031 = vpop.f32.mrf.mxu0
        %v2032 = vadd.f32 %v1839, %v2031
        %v2033 = vpop.f32.mrf.mxu0
        %v2034 = vadd.f32 %v1841, %v2033
        %v2035 = vpop.f32.mrf.mxu0
        %v2036 = vadd.f32 %v1843, %v2035
        %2037 = vmatprep.mubr.bf16.mxu0 %v1681
        %2038 = vmatmul.mubr.bf16.gmra.mxu0 %v1258
        %v2039 = vpop.f32.mrf.mxu0
        %v2040 = vadd.f32 %v1847, %v2039
        %v2041 = vpop.f32.mrf.mxu0
        %v2042 = vadd.f32 %v1849, %v2041
        %v2043 = vpop.f32.mrf.mxu0
        %v2044 = vadd.f32 %v1851, %v2043
        %v2045 = vpop.f32.mrf.mxu0
        %v2046 = vadd.f32 %v1853, %v2045
        %2047 = vmatprep.mubr.bf16.mxu0 %v1684
        %2048 = vmatmul.mubr.bf16.gmra.mxu0 %v1262
        %v2049 = vpop.f32.mrf.mxu0
        %v2050 = vadd.f32 %v1857, %v2049
        %v2051 = vpop.f32.mrf.mxu0
        %v2052 = vadd.f32 %v1859, %v2051
        %v2053 = vpop.f32.mrf.mxu0
        %v2054 = vadd.f32 %v1861, %v2053
        %v2055 = vpop.f32.mrf.mxu0
        %v2056 = vadd.f32 %v1863, %v2055
        %2057 = vmatprep.mubr.bf16.mxu0 %v1687
        %2058 = vmatmul.mubr.bf16.gmra.mxu0 %v1266
        %v2059 = vpop.f32.mrf.mxu0
        %v2060 = vadd.f32 %v1867, %v2059
        %v2061 = vpop.f32.mrf.mxu0
        %v2062 = vadd.f32 %v1869, %v2061
        %v2063 = vpop.f32.mrf.mxu0
        %v2064 = vadd.f32 %v1871, %v2063
        %v2065 = vpop.f32.mrf.mxu0
        %v2066 = vadd.f32 %v1873, %v2065
        %2067 = vmatprep.mubr.bf16.mxu0 %v1690
        %2068 = vmatmul.mubr.bf16.gmra.mxu0 %v1270
        %v2069 = vpop.f32.mrf.mxu0
        %v2070 = vadd.f32 %v1877, %v2069
        %v2071 = vpop.f32.mrf.mxu0
        %v2072 = vadd.f32 %v1879, %v2071
        %v2073 = vpop.f32.mrf.mxu0
        %v2074 = vadd.f32 %v1881, %v2073
        %v2075 = vpop.f32.mrf.mxu0
        %v2076 = vadd.f32 %v1883, %v2075
        %2077 = vdwg.mxu0
        %v2078 = vtanh.pop %v1920
        %v2079 = vtanh.pop %v1922
        %v2080 = vtanh.pop %v1924
        %v2081 = vtanh.pop %v1926
        %v2082 = vtanh.pop %v1930
        %v2083 = vtanh.pop %v1932
        %v2084 = vtanh.pop %v1934
        %v2085 = vtanh.pop %v1936
        %v2086 = vtanh.pop %v1940
        %v2087 = vtanh.pop %v1942
        %v2088 = vtanh.pop %v1944
        %v2089 = vtanh.pop %v1946
        %v2090 = vtanh.pop %v1950
        %v2091 = vtanh.pop %v1952
        %v2092 = vtanh.pop %v1954
        %v2093 = vtanh.pop %v1956
        %v2094 = vtanh.pop %v1960
        %v2095 = vtanh.pop %v1962
        %v2096 = vtanh.pop %v1964
        %v2097 = vtanh.pop %v1966
        %v2098 = vtanh.pop %v1970
        %v2099 = vtanh.pop %v1972
        %v2100 = vtanh.pop %v1974
        %v2101 = vtanh.pop %v1976
        %v2102 = vtanh.pop %v1980
        %v2103 = vtanh.pop %v1982
        %v2104 = vtanh.pop %v1984
        %v2105 = vtanh.pop %v1986
        %v2106 = vtanh.pop %v1990
        %v2107 = vtanh.pop %v1992
        %v2108 = vtanh.pop %v1994
        %v2109 = vtanh.pop %v1996
        %v2110 = vtanh.pop %v2000
        %v2111 = vtanh.pop %v2002
        %v2112 = vtanh.pop %v2004
        %v2113 = vtanh.pop %v2006
        %v2114 = vtanh.pop %v2010
        %v2115 = vtanh.pop %v2012
        %v2116 = vtanh.pop %v2014
        %v2117 = vtanh.pop %v2016
        %v2118 = vtanh.pop %v2020
        %v2119 = vtanh.pop %v2022
        %v2120 = vtanh.pop %v2024
        %v2121 = vtanh.pop %v2026
        %v2122 = vtanh.pop %v2030
        %v2123 = vtanh.pop %v2032
        %v2124 = vtanh.pop %v2034
        %v2125 = vtanh.pop %v2036
        %v2126 = vtanh.pop %v2040
        %v2127 = vtanh.pop %v2042
        %v2128 = vtanh.pop %v2044
        %v2129 = vtanh.pop %v2046
        %v2130 = vtanh.pop %v2050
        %v2131 = vtanh.pop %v2052
        %v2132 = vtanh.pop %v2054
        %v2133 = vtanh.pop %v2056
        %v2134 = vtanh.pop %v2060
        %v2135 = vtanh.pop %v2062
        %v2136 = vtanh.pop %v2064
        %v2137 = vtanh.pop %v2066
        %v2138 = vtanh.pop %v2070
        %v2139 = vtanh.pop %v2072
        %v2140 = vtanh.pop %v2074
        %v2141 = vtanh.pop %v2076
        %v2142 = vpack.c.bf16 %v2080, %v2078
        %v2143 = vpack.c.bf16 %v2081, %v2079
        %v2144 = vpack.c.bf16 %v2084, %v2082
        %v2145 = vpack.c.bf16 %v2085, %v2083
        %v2146 = vpack.c.bf16 %v2088, %v2086
        %v2147 = vpack.c.bf16 %v2089, %v2087
        %v2148 = vpack.c.bf16 %v2092, %v2090
        %v2149 = vpack.c.bf16 %v2093, %v2091
        %v2150 = vpack.c.bf16 %v2096, %v2094
        %v2151 = vpack.c.bf16 %v2097, %v2095
        %v2152 = vpack.c.bf16 %v2100, %v2098
        %v2153 = vpack.c.bf16 %v2101, %v2099
        %v2154 = vpack.c.bf16 %v2104, %v2102
        %v2155 = vpack.c.bf16 %v2105, %v2103
        %v2156 = vpack.c.bf16 %v2108, %v2106
        %v2157 = vpack.c.bf16 %v2109, %v2107
        %v2158 = vpack.c.bf16 %v2112, %v2110
        %v2159 = vpack.c.bf16 %v2113, %v2111
        %v2160 = vpack.c.bf16 %v2116, %v2114
        %v2161 = vpack.c.bf16 %v2117, %v2115
        %v2162 = vpack.c.bf16 %v2120, %v2118
        %v2163 = vpack.c.bf16 %v2121, %v2119
        %v2164 = vpack.c.bf16 %v2124, %v2122
        %v2165 = vpack.c.bf16 %v2125, %v2123
        %v2166 = vpack.c.bf16 %v2128, %v2126
        %v2167 = vpack.c.bf16 %v2129, %v2127
        %v2168 = vpack.c.bf16 %v2132, %v2130
        %v2169 = vpack.c.bf16 %v2133, %v2131
        %v2170 = vpack.c.bf16 %v2136, %v2134
        %v2171 = vpack.c.bf16 %v2137, %v2135
        %v2172 = vpack.c.bf16 %v2140, %v2138
        %v2173 = vpack.c.bf16 %v2141, %v2139
        %v2174 = vld [vmem:[%s5] sm:$0xf]
        %v2175 = vld [vmem:[%s5 + $0x4] sm:$0xf]
        %v2176 = vld [vmem:[%s5 + $0x8] sm:$0xf]
        %v2177 = vld [vmem:[%s5 + $0xc] sm:$0xf]
        %v2178 = vld [vmem:[%s5 + $0x10] sm:$0xf]
        %v2179 = vld [vmem:[%s5 + $0x14] sm:$0xf]
        %v2180 = vld [vmem:[%s5 + $0x18] sm:$0xf]
        %v2181 = vld [vmem:[%s5 + $0x1c] sm:$0xf]
        %v2182 = vld [vmem:[%s5 + $0x20] sm:$0xf]
        %v2183 = vld [vmem:[%s5 + $0x24] sm:$0xf]
        %v2184 = vld [vmem:[%s5 + $0x28] sm:$0xf]
        %v2185 = vld [vmem:[%s5 + $0x2c] sm:$0xf]
        %v2186 = vld [vmem:[%s5 + $0x30] sm:$0xf]
        %v2187 = vld [vmem:[%s5 + $0x34] sm:$0xf]
        %v2188 = vld [vmem:[%s5 + $0x38] sm:$0xf]
        %v2189 = vld [vmem:[%s5 + $0x3c] sm:$0xf]
        %v2190 = vld [vmem:[%s5 + $0x40] sm:$0xf]
        %v2191 = vld [vmem:[%s5 + $0x44] sm:$0xf]
        %v2192 = vld [vmem:[%s5 + $0x48] sm:$0xf]
        %v2193 = vld [vmem:[%s5 + $0x4c] sm:$0xf]
        %v2194 = vld [vmem:[%s5 + $0x50] sm:$0xf]
        %v2216 = vunpack.c.l.b16 %v2174
        %v2217 = vunpack.c.l.b16 %v2175
        %v2218 = vunpack.c.l.b16 %v2176
        %v2219 = vunpack.c.l.b16 %v2177
        %v2220 = vunpack.c.l.b16 %v2178
        %v2221 = vunpack.c.l.b16 %v2179
        %v2222 = vunpack.c.l.b16 %v2180
        %v2223 = vunpack.c.l.b16 %v2181
        %v2224 = vunpack.c.l.b16 %v2182
        %v2225 = vunpack.c.l.b16 %v2183
        %v2226 = vunpack.c.l.b16 %v2184
        %v2227 = vunpack.c.l.b16 %v2185
        %v2228 = vunpack.c.l.b16 %v2186
        %v2229 = vunpack.c.l.b16 %v2187
        %v2230 = vunpack.c.l.b16 %v2188
        %v2231 = vunpack.c.l.b16 %v2189
        %v2232 = vunpack.c.l.b16 %v2190
        %v2233 = vunpack.c.l.b16 %v2191
        %v2234 = vunpack.c.l.b16 %v2192
        %v2235 = vunpack.c.l.b16 %v2193
        %v2236 = vunpack.c.l.b16 %v2194
        %v2237 = vpack.c.b16 %v2217, %v2216
        %v2238 = vpack.c.b16 %v2219, %v2218
        %v2239 = vpack.c.b16 %v2221, %v2220
        %v2240 = vpack.c.b16 %v2223, %v2222
        %v2241 = vpack.c.b16 %v2225, %v2224
        %v2242 = vpack.c.b16 %v2227, %v2226
        %v2243 = vpack.c.b16 %v2229, %v2228
        %v2244 = vpack.c.b16 %v2231, %v2230
        %v2245 = vpack.c.b16 %v2233, %v2232
        %v2246 = vpack.c.b16 %v2235, %v2234
        %v2247 = vpack.c.b16 %v2236, %v2236
        %vm2258 = vcmask 326656
        %v2260 = vsel %vm2258, %v2143, 0
        %v2263 = vsel %vm2258, %v2145, 0
        %v2266 = vsel %vm2258, %v2147, 0
        %v2269 = vsel %vm2258, %v2149, 0
        %v2272 = vsel %vm2258, %v2151, 0
        %v2275 = vsel %vm2258, %v2153, 0
        %v2278 = vsel %vm2258, %v2155, 0
        %v2281 = vsel %vm2258, %v2157, 0
        %v2284 = vsel %vm2258, %v2159, 0
        %v2287 = vsel %vm2258, %v2161, 0
        %v2290 = vsel %vm2258, %v2163, 0
        %v2293 = vsel %vm2258, %v2165, 0
        %v2296 = vsel %vm2258, %v2167, 0
        %v2299 = vsel %vm2258, %v2169, 0
        %v2302 = vsel %vm2258, %v2171, 0
        %v2305 = vsel %vm2258, %v2173, 0
        %v2308 = vsel %vm1013, %v2247, 0
        %2310 = vmatprep.subr.bf16.mxu0 0
        %2311 = vmatpush1.bf16.msra.mxu0 %v2244
        %2312 = vmatprep.subr.bf16.mxu0 0
        %2313 = vmatpush1.bf16.msra.mxu0 %v2243
        %2314 = vmatprep.subr.bf16.mxu0 0
        %2315 = vmatpush1.bf16.msra.mxu0 %v2242
        %2316 = vmatprep.subr.bf16.mxu0 0
        %2317 = vmatpush1.bf16.msra.mxu0 %v2241
        %2318 = vmatprep.subr.bf16.mxu0 0
        %2319 = vmatpush1.bf16.msra.mxu0 %v2240
        %2320 = vmatprep.subr.bf16.mxu0 0
        %2321 = vmatpush1.bf16.msra.mxu0 %v2239
        %2322 = vmatprep.subr.bf16.mxu0 0
        %2323 = vmatpush1.bf16.msra.mxu0 %v2238
        %2324 = vmatprep.subr.bf16.mxu0 0
        %2325 = vmatpush1.bf16.msra.mxu0 %v2237
        %2326 = vmatprep.subr.bf16.mxu0 0
        %2327 = vmatpush2.bf16.msra.mxu0 0
        %2328 = vmatprep.subr.bf16.mxu0 0
        %2329 = vmatpush2.bf16.msra.mxu0 0
        %2330 = vmatprep.subr.bf16.mxu0 0
        %2331 = vmatpush2.bf16.msra.mxu0 0
        %2332 = vmatprep.subr.bf16.mxu0 0
        %2333 = vmatpush2.bf16.msra.mxu0 0
        %2334 = vmatprep.subr.bf16.mxu0 0
        %2335 = vmatpush2.bf16.msra.mxu0 0
        %2336 = vmatprep.subr.bf16.mxu0 0
        %2337 = vmatpush2.bf16.msra.mxu0 %v2308
        %2338 = vmatprep.subr.bf16.mxu0 0
        %2339 = vmatpush2.bf16.msra.mxu0 %v2246
        %2340 = vmatprep.subr.bf16.mxu0 0
        %2341 = vmatpush2.bf16.msra.mxu0 %v2245
        %2342 = vmatprep.mubr.bf16.mxu0 %v2260
        %2343 = vmatmul.mubr.bf16.gmra.mxu0 %v2142
        %v2344 = vpop.f32.mrf.mxu0
        %v2345 = vadd.f32 0.0, %v2344
        %v2346 = vpop.f32.mrf.mxu0
        %v2347 = vpop.f32.mrf.mxu0
        %v2348 = vadd.f32 0.0, %v2347
        %v2349 = vpop.f32.mrf.mxu0
        %2350 = vmatprep.mubr.bf16.mxu0 %v2263
        %2351 = vmatmul.mubr.bf16.gmra.mxu0 %v2144
        %v2352 = vpop.f32.mrf.mxu0
        %v2353 = vadd.f32 0.0, %v2352
        %v2354 = vpop.f32.mrf.mxu0
        %v2355 = vpop.f32.mrf.mxu0
        %v2356 = vadd.f32 0.0, %v2355
        %v2357 = vpop.f32.mrf.mxu0
        %2358 = vmatprep.mubr.bf16.mxu0 %v2266
        %2359 = vmatmul.mubr.bf16.gmra.mxu0 %v2146
        %v2360 = vpop.f32.mrf.mxu0
        %v2361 = vadd.f32 0.0, %v2360
        %v2362 = vpop.f32.mrf.mxu0
        %v2363 = vpop.f32.mrf.mxu0
        %v2364 = vadd.f32 0.0, %v2363
        %v2365 = vpop.f32.mrf.mxu0
        %2366 = vmatprep.mubr.bf16.mxu0 %v2269
        %2367 = vmatmul.mubr.bf16.gmra.mxu0 %v2148
        %v2368 = vpop.f32.mrf.mxu0
        %v2369 = vadd.f32 0.0, %v2368
        %v2370 = vpop.f32.mrf.mxu0
        %v2371 = vpop.f32.mrf.mxu0
        %v2372 = vadd.f32 0.0, %v2371
        %v2373 = vpop.f32.mrf.mxu0
        %2374 = vmatprep.mubr.bf16.mxu0 %v2272
        %2375 = vmatmul.mubr.bf16.gmra.mxu0 %v2150
        %v2376 = vpop.f32.mrf.mxu0
        %v2377 = vadd.f32 0.0, %v2376
        %v2378 = vpop.f32.mrf.mxu0
        %v2379 = vpop.f32.mrf.mxu0
        %v2380 = vadd.f32 0.0, %v2379
        %v2381 = vpop.f32.mrf.mxu0
        %2382 = vmatprep.mubr.bf16.mxu0 %v2275
        %2383 = vmatmul.mubr.bf16.gmra.mxu0 %v2152
        %v2384 = vpop.f32.mrf.mxu0
        %v2385 = vadd.f32 0.0, %v2384
        %v2386 = vpop.f32.mrf.mxu0
        %v2387 = vpop.f32.mrf.mxu0
        %v2388 = vadd.f32 0.0, %v2387
        %v2389 = vpop.f32.mrf.mxu0
        %2390 = vmatprep.mubr.bf16.mxu0 %v2278
        %2391 = vmatmul.mubr.bf16.gmra.mxu0 %v2154
        %v2392 = vpop.f32.mrf.mxu0
        %v2393 = vadd.f32 0.0, %v2392
        %v2394 = vpop.f32.mrf.mxu0
        %v2395 = vpop.f32.mrf.mxu0
        %v2396 = vadd.f32 0.0, %v2395
        %v2397 = vpop.f32.mrf.mxu0
        %2398 = vmatprep.mubr.bf16.mxu0 %v2281
        %2399 = vmatmul.mubr.bf16.gmra.mxu0 %v2156
        %v2400 = vpop.f32.mrf.mxu0
        %v2401 = vadd.f32 0.0, %v2400
        %v2402 = vpop.f32.mrf.mxu0
        %v2403 = vpop.f32.mrf.mxu0
        %v2404 = vadd.f32 0.0, %v2403
        %v2405 = vpop.f32.mrf.mxu0
        %2406 = vmatprep.mubr.bf16.mxu0 %v2284
        %2407 = vmatmul.mubr.bf16.gmra.mxu0 %v2158
        %v2408 = vpop.f32.mrf.mxu0
        %v2409 = vadd.f32 0.0, %v2408
        %v2410 = vpop.f32.mrf.mxu0
        %v2411 = vpop.f32.mrf.mxu0
        %v2412 = vadd.f32 0.0, %v2411
        %v2413 = vpop.f32.mrf.mxu0
        %2414 = vmatprep.mubr.bf16.mxu0 %v2287
        %2415 = vmatmul.mubr.bf16.gmra.mxu0 %v2160
        %v2416 = vpop.f32.mrf.mxu0
        %v2417 = vadd.f32 0.0, %v2416
        %v2418 = vpop.f32.mrf.mxu0
        %v2419 = vpop.f32.mrf.mxu0
        %v2420 = vadd.f32 0.0, %v2419
        %v2421 = vpop.f32.mrf.mxu0
        %2422 = vmatprep.mubr.bf16.mxu0 %v2290
        %2423 = vmatmul.mubr.bf16.gmra.mxu0 %v2162
        %v2424 = vpop.f32.mrf.mxu0
        %v2425 = vadd.f32 0.0, %v2424
        %v2426 = vpop.f32.mrf.mxu0
        %v2427 = vpop.f32.mrf.mxu0
        %v2428 = vadd.f32 0.0, %v2427
        %v2429 = vpop.f32.mrf.mxu0
        %2430 = vmatprep.mubr.bf16.mxu0 %v2293
        %2431 = vmatmul.mubr.bf16.gmra.mxu0 %v2164
        %v2432 = vpop.f32.mrf.mxu0
        %v2433 = vadd.f32 0.0, %v2432
        %v2434 = vpop.f32.mrf.mxu0
        %v2435 = vpop.f32.mrf.mxu0
        %v2436 = vadd.f32 0.0, %v2435
        %v2437 = vpop.f32.mrf.mxu0
        %2438 = vmatprep.mubr.bf16.mxu0 %v2296
        %2439 = vmatmul.mubr.bf16.gmra.mxu0 %v2166
        %v2440 = vpop.f32.mrf.mxu0
        %v2441 = vadd.f32 0.0, %v2440
        %v2442 = vpop.f32.mrf.mxu0
        %v2443 = vpop.f32.mrf.mxu0
        %v2444 = vadd.f32 0.0, %v2443
        %v2445 = vpop.f32.mrf.mxu0
        %2446 = vmatprep.mubr.bf16.mxu0 %v2299
        %2447 = vmatmul.mubr.bf16.gmra.mxu0 %v2168
        %v2448 = vpop.f32.mrf.mxu0
        %v2449 = vadd.f32 0.0, %v2448
        %v2450 = vpop.f32.mrf.mxu0
        %v2451 = vpop.f32.mrf.mxu0
        %v2452 = vadd.f32 0.0, %v2451
        %v2453 = vpop.f32.mrf.mxu0
        %2454 = vmatprep.mubr.bf16.mxu0 %v2302
        %2455 = vmatmul.mubr.bf16.gmra.mxu0 %v2170
        %v2456 = vpop.f32.mrf.mxu0
        %v2457 = vadd.f32 0.0, %v2456
        %v2458 = vpop.f32.mrf.mxu0
        %v2459 = vpop.f32.mrf.mxu0
        %v2460 = vadd.f32 0.0, %v2459
        %v2461 = vpop.f32.mrf.mxu0
        %2462 = vmatprep.mubr.bf16.mxu0 %v2305
        %2463 = vmatmul.mubr.bf16.gmra.mxu0 %v2172
        %v2464 = vpop.f32.mrf.mxu0
        %v2465 = vadd.f32 0.0, %v2464
        %v2466 = vpop.f32.mrf.mxu0
        %v2467 = vpop.f32.mrf.mxu0
        %v2468 = vadd.f32 0.0, %v2467
        %v2469 = vpop.f32.mrf.mxu0
        %2470 = vdwg.mxu0
        %v2503 = vrot.slane %v2345, 1
        %v2504 = vrot.slane %v2348, 1
        %v2505 = vsel %vm533, %v2503, %v2504
        %v2506 = vrot.slane %v2353, 1
        %v2507 = vsel %vm533, %v2504, %v2506
        %v2508 = vrot.slane %v2356, 1
        %v2509 = vsel %vm533, %v2506, %v2508
        %v2510 = vrot.slane %v2361, 1
        %v2511 = vsel %vm533, %v2508, %v2510
        %v2512 = vrot.slane %v2364, 1
        %v2513 = vsel %vm533, %v2510, %v2512
        %v2514 = vrot.slane %v2369, 1
        %v2515 = vsel %vm533, %v2512, %v2514
        %v2516 = vrot.slane %v2372, 1
        %v2517 = vsel %vm533, %v2514, %v2516
        %v2518 = vrot.slane %v2377, 1
        %v2519 = vsel %vm533, %v2516, %v2518
        %v2520 = vrot.slane %v2380, 1
        %v2521 = vsel %vm533, %v2518, %v2520
        %v2522 = vrot.slane %v2385, 1
        %v2523 = vsel %vm533, %v2520, %v2522
        %v2524 = vrot.slane %v2388, 1
        %v2525 = vsel %vm533, %v2522, %v2524
        %v2526 = vrot.slane %v2393, 1
        %v2527 = vsel %vm533, %v2524, %v2526
        %v2528 = vrot.slane %v2396, 1
        %v2529 = vsel %vm533, %v2526, %v2528
        %v2530 = vrot.slane %v2401, 1
        %v2531 = vsel %vm533, %v2528, %v2530
        %v2532 = vrot.slane %v2404, 1
        %v2533 = vsel %vm533, %v2530, %v2532
        %v2534 = vrot.slane %v2409, 1
        %v2535 = vsel %vm533, %v2532, %v2534
        %v2536 = vrot.slane %v2412, 1
        %v2537 = vsel %vm533, %v2534, %v2536
        %v2538 = vrot.slane %v2417, 1
        %v2539 = vsel %vm533, %v2536, %v2538
        %v2540 = vrot.slane %v2420, 1
        %v2541 = vsel %vm533, %v2538, %v2540
        %v2542 = vrot.slane %v2425, 1
        %v2543 = vsel %vm533, %v2540, %v2542
        %v2544 = vrot.slane %v2428, 1
        %v2545 = vsel %vm533, %v2542, %v2544
        %v2546 = vrot.slane %v2433, 1
        %v2547 = vsel %vm533, %v2544, %v2546
        %v2548 = vrot.slane %v2436, 1
        %v2549 = vsel %vm533, %v2546, %v2548
        %v2550 = vrot.slane %v2441, 1
        %v2551 = vsel %vm533, %v2548, %v2550
        %v2552 = vrot.slane %v2444, 1
        %v2553 = vsel %vm533, %v2550, %v2552
        %v2554 = vrot.slane %v2449, 1
        %v2555 = vsel %vm533, %v2552, %v2554
        %v2556 = vrot.slane %v2452, 1
        %v2557 = vsel %vm533, %v2554, %v2556
        %v2558 = vrot.slane %v2457, 1
        %v2559 = vsel %vm533, %v2556, %v2558
        %v2560 = vrot.slane %v2460, 1
        %v2561 = vsel %vm533, %v2558, %v2560
        %v2562 = vrot.slane %v2465, 1
        %v2563 = vsel %vm533, %v2560, %v2562
        %v2564 = vrot.slane %v2468, 1
        %v2565 = vsel %vm533, %v2562, %v2564
        %v2598 = vadd.f32 %v2345, %v2505
        %v2599 = vadd.f32 %v2348, %v2507
        %v2600 = vadd.f32 %v2353, %v2509
        %v2601 = vadd.f32 %v2356, %v2511
        %v2602 = vadd.f32 %v2361, %v2513
        %v2603 = vadd.f32 %v2364, %v2515
        %v2604 = vadd.f32 %v2369, %v2517
        %v2605 = vadd.f32 %v2372, %v2519
        %v2606 = vadd.f32 %v2377, %v2521
        %v2607 = vadd.f32 %v2380, %v2523
        %v2608 = vadd.f32 %v2385, %v2525
        %v2609 = vadd.f32 %v2388, %v2527
        %v2610 = vadd.f32 %v2393, %v2529
        %v2611 = vadd.f32 %v2396, %v2531
        %v2612 = vadd.f32 %v2401, %v2533
        %v2613 = vadd.f32 %v2404, %v2535
        %v2614 = vadd.f32 %v2409, %v2537
        %v2615 = vadd.f32 %v2412, %v2539
        %v2616 = vadd.f32 %v2417, %v2541
        %v2617 = vadd.f32 %v2420, %v2543
        %v2618 = vadd.f32 %v2425, %v2545
        %v2619 = vadd.f32 %v2428, %v2547
        %v2620 = vadd.f32 %v2433, %v2549
        %v2621 = vadd.f32 %v2436, %v2551
        %v2622 = vadd.f32 %v2441, %v2553
        %v2623 = vadd.f32 %v2444, %v2555
        %v2624 = vadd.f32 %v2449, %v2557
        %v2625 = vadd.f32 %v2452, %v2559
        %v2626 = vadd.f32 %v2457, %v2561
        %v2627 = vadd.f32 %v2460, %v2563
        %v2628 = vadd.f32 %v2465, %v2565
        %v2629 = vadd.f32 %v2468, %v2564
        %v2630 = vmul.f32 %v2598, 0.5
        %v2631 = vmul.f32 %v2599, 0.5
        %v2632 = vmul.f32 %v2600, 0.5
        %v2633 = vmul.f32 %v2601, 0.5
        %v2634 = vmul.f32 %v2602, 0.5
        %v2635 = vmul.f32 %v2603, 0.5
        %v2636 = vmul.f32 %v2604, 0.5
        %v2637 = vmul.f32 %v2605, 0.5
        %v2638 = vmul.f32 %v2606, 0.5
        %v2639 = vmul.f32 %v2607, 0.5
        %v2640 = vmul.f32 %v2608, 0.5
        %v2641 = vmul.f32 %v2609, 0.5
        %v2642 = vmul.f32 %v2610, 0.5
        %v2643 = vmul.f32 %v2611, 0.5
        %v2644 = vmul.f32 %v2612, 0.5
        %v2645 = vmul.f32 %v2613, 0.5
        %v2646 = vmul.f32 %v2614, 0.5
        %v2647 = vmul.f32 %v2615, 0.5
        %v2648 = vmul.f32 %v2616, 0.5
        %v2649 = vmul.f32 %v2617, 0.5
        %v2650 = vmul.f32 %v2618, 0.5
        %v2651 = vmul.f32 %v2619, 0.5
        %v2652 = vmul.f32 %v2620, 0.5
        %v2653 = vmul.f32 %v2621, 0.5
        %v2654 = vmul.f32 %v2622, 0.5
        %v2655 = vmul.f32 %v2623, 0.5
        %v2656 = vmul.f32 %v2624, 0.5
        %v2657 = vmul.f32 %v2625, 0.5
        %v2658 = vmul.f32 %v2626, 0.5
        %v2659 = vmul.f32 %v2627, 0.5
        %v2660 = vmul.f32 %v2628, 0.5
        %v2661 = vmul.f32 %v2629, 0.5
        %v2693 = vrot.slane %v2630, 2
        %v2694 = vrot.slane %v2631, 2
        %v2695 = vsel %vm693, %v2693, %v2694
        %v2696 = vrot.slane %v2632, 2
        %v2697 = vsel %vm693, %v2694, %v2696
        %v2698 = vrot.slane %v2633, 2
        %v2699 = vsel %vm693, %v2696, %v2698
        %v2700 = vrot.slane %v2634, 2
        %v2701 = vsel %vm693, %v2698, %v2700
        %v2702 = vrot.slane %v2635, 2
        %v2703 = vsel %vm693, %v2700, %v2702
        %v2704 = vrot.slane %v2636, 2
        %v2705 = vsel %vm693, %v2702, %v2704
        %v2706 = vrot.slane %v2637, 2
        %v2707 = vsel %vm693, %v2704, %v2706
        %v2708 = vrot.slane %v2638, 2
        %v2709 = vsel %vm693, %v2706, %v2708
        %v2710 = vrot.slane %v2639, 2
        %v2711 = vsel %vm693, %v2708, %v2710
        %v2712 = vrot.slane %v2640, 2
        %v2713 = vsel %vm693, %v2710, %v2712
        %v2714 = vrot.slane %v2641, 2
        %v2715 = vsel %vm693, %v2712, %v2714
        %v2716 = vrot.slane %v2642, 2
        %v2717 = vsel %vm693, %v2714, %v2716
        %v2718 = vrot.slane %v2643, 2
        %v2719 = vsel %vm693, %v2716, %v2718
        %v2720 = vrot.slane %v2644, 2
        %v2721 = vsel %vm693, %v2718, %v2720
        %v2722 = vrot.slane %v2645, 2
        %v2723 = vsel %vm693, %v2720, %v2722
        %v2724 = vrot.slane %v2646, 2
        %v2725 = vsel %vm693, %v2722, %v2724
        %v2726 = vrot.slane %v2647, 2
        %v2727 = vsel %vm693, %v2724, %v2726
        %v2728 = vrot.slane %v2648, 2
        %v2729 = vsel %vm693, %v2726, %v2728
        %v2730 = vrot.slane %v2649, 2
        %v2731 = vsel %vm693, %v2728, %v2730
        %v2732 = vrot.slane %v2650, 2
        %v2733 = vsel %vm693, %v2730, %v2732
        %v2734 = vrot.slane %v2651, 2
        %v2735 = vsel %vm693, %v2732, %v2734
        %v2736 = vrot.slane %v2652, 2
        %v2737 = vsel %vm693, %v2734, %v2736
        %v2738 = vrot.slane %v2653, 2
        %v2739 = vsel %vm693, %v2736, %v2738
        %v2740 = vrot.slane %v2654, 2
        %v2741 = vsel %vm693, %v2738, %v2740
        %v2742 = vrot.slane %v2655, 2
        %v2743 = vsel %vm693, %v2740, %v2742
        %v2744 = vrot.slane %v2656, 2
        %v2745 = vsel %vm693, %v2742, %v2744
        %v2746 = vrot.slane %v2657, 2
        %v2747 = vsel %vm693, %v2744, %v2746
        %v2748 = vrot.slane %v2658, 2
        %v2749 = vsel %vm693, %v2746, %v2748
        %v2750 = vrot.slane %v2659, 2
        %v2751 = vsel %vm693, %v2748, %v2750
        %v2752 = vrot.slane %v2660, 2
        %v2753 = vsel %vm693, %v2750, %v2752
        %2754 = vrot.lane.b32.xlu0 %v2695, 84
        %v2755 = vpop.permute.xlu0 %2754
        %2756 = vrot.lane.b32.xlu0 %v2697, 84
        %v2757 = vpop.permute.xlu0 %2756
        %2758 = vrot.lane.b32.xlu0 %v2699, 84
        %v2759 = vpop.permute.xlu0 %2758
        %2760 = vrot.lane.b32.xlu0 %v2701, 84
        %v2761 = vpop.permute.xlu0 %2760
        %2762 = vrot.lane.b32.xlu0 %v2703, 84
        %v2763 = vpop.permute.xlu0 %2762
        %2764 = vrot.lane.b32.xlu0 %v2705, 84
        %v2765 = vpop.permute.xlu0 %2764
        %2766 = vrot.lane.b32.xlu0 %v2707, 84
        %v2767 = vpop.permute.xlu0 %2766
        %2768 = vrot.lane.b32.xlu0 %v2709, 84
        %v2769 = vpop.permute.xlu0 %2768
        %2770 = vrot.lane.b32.xlu0 %v2711, 84
        %v2771 = vpop.permute.xlu0 %2770
        %2772 = vrot.lane.b32.xlu0 %v2713, 84
        %v2773 = vpop.permute.xlu0 %2772
        %2774 = vrot.lane.b32.xlu0 %v2715, 84
        %v2775 = vpop.permute.xlu0 %2774
        %2776 = vrot.lane.b32.xlu0 %v2717, 84
        %v2777 = vpop.permute.xlu0 %2776
        %2778 = vrot.lane.b32.xlu0 %v2719, 84
        %v2779 = vpop.permute.xlu0 %2778
        %2780 = vrot.lane.b32.xlu0 %v2721, 84
        %v2781 = vpop.permute.xlu0 %2780
        %2782 = vrot.lane.b32.xlu0 %v2723, 84
        %v2783 = vpop.permute.xlu0 %2782
        %2784 = vrot.lane.b32.xlu0 %v2725, 84
        %v2785 = vpop.permute.xlu0 %2784
        %2786 = vrot.lane.b32.xlu0 %v2727, 84
        %v2787 = vpop.permute.xlu0 %2786
        %2788 = vrot.lane.b32.xlu0 %v2729, 84
        %v2789 = vpop.permute.xlu0 %2788
        %2790 = vrot.lane.b32.xlu0 %v2731, 84
        %v2791 = vpop.permute.xlu0 %2790
        %2792 = vrot.lane.b32.xlu0 %v2733, 84
        %v2793 = vpop.permute.xlu0 %2792
        %2794 = vrot.lane.b32.xlu0 %v2735, 84
        %v2795 = vpop.permute.xlu0 %2794
        %2796 = vrot.lane.b32.xlu0 %v2737, 84
        %v2797 = vpop.permute.xlu0 %2796
        %2798 = vrot.lane.b32.xlu0 %v2739, 84
        %v2799 = vpop.permute.xlu0 %2798
        %2800 = vrot.lane.b32.xlu0 %v2741, 84
        %v2801 = vpop.permute.xlu0 %2800
        %2802 = vrot.lane.b32.xlu0 %v2743, 84
        %v2803 = vpop.permute.xlu0 %2802
        %2804 = vrot.lane.b32.xlu0 %v2745, 84
        %v2805 = vpop.permute.xlu0 %2804
        %2806 = vrot.lane.b32.xlu0 %v2747, 84
        %v2807 = vpop.permute.xlu0 %2806
        %2808 = vrot.lane.b32.xlu0 %v2749, 84
        %v2809 = vpop.permute.xlu0 %2808
        %2810 = vrot.lane.b32.xlu0 %v2751, 84
        %v2811 = vpop.permute.xlu0 %2810
        %2812 = vrot.lane.b32.xlu0 %v2753, 84
        %v2813 = vpop.permute.xlu0 %2812
        %2814 = vrot.lane.b32.xlu0 %v2752, 84
        %v2815 = vpop.permute.xlu0 %2814
        %v2847 = vrot.slane %v2630, 4
        %v2848 = vrot.slane %v2631, 4
        %v2849 = vsel %vm1013, %v2847, %v2848
        %v2850 = vrot.slane %v2632, 4
        %v2851 = vsel %vm1013, %v2848, %v2850
        %v2852 = vrot.slane %v2633, 4
        %v2853 = vsel %vm1013, %v2850, %v2852
        %v2854 = vrot.slane %v2634, 4
        %v2855 = vsel %vm1013, %v2852, %v2854
        %v2856 = vrot.slane %v2635, 4
        %v2857 = vsel %vm1013, %v2854, %v2856
        %v2858 = vrot.slane %v2636, 4
        %v2859 = vsel %vm1013, %v2856, %v2858
        %v2860 = vrot.slane %v2637, 4
        %v2861 = vsel %vm1013, %v2858, %v2860
        %v2862 = vrot.slane %v2638, 4
        %v2863 = vsel %vm1013, %v2860, %v2862
        %v2864 = vrot.slane %v2639, 4
        %v2865 = vsel %vm1013, %v2862, %v2864
        %v2866 = vrot.slane %v2640, 4
        %v2867 = vsel %vm1013, %v2864, %v2866
        %v2868 = vrot.slane %v2641, 4
        %v2869 = vsel %vm1013, %v2866, %v2868
        %v2870 = vrot.slane %v2642, 4
        %v2871 = vsel %vm1013, %v2868, %v2870
        %v2872 = vrot.slane %v2643, 4
        %v2873 = vsel %vm1013, %v2870, %v2872
        %v2874 = vrot.slane %v2644, 4
        %v2875 = vsel %vm1013, %v2872, %v2874
        %v2876 = vrot.slane %v2645, 4
        %v2877 = vsel %vm1013, %v2874, %v2876
        %v2878 = vrot.slane %v2646, 4
        %v2879 = vsel %vm1013, %v2876, %v2878
        %v2880 = vrot.slane %v2647, 4
        %v2881 = vsel %vm1013, %v2878, %v2880
        %v2882 = vrot.slane %v2648, 4
        %v2883 = vsel %vm1013, %v2880, %v2882
        %v2884 = vrot.slane %v2649, 4
        %v2885 = vsel %vm1013, %v2882, %v2884
        %v2886 = vrot.slane %v2650, 4
        %v2887 = vsel %vm1013, %v2884, %v2886
        %v2888 = vrot.slane %v2651, 4
        %v2889 = vsel %vm1013, %v2886, %v2888
        %v2890 = vrot.slane %v2652, 4
        %v2891 = vsel %vm1013, %v2888, %v2890
        %v2892 = vrot.slane %v2653, 4
        %v2893 = vsel %vm1013, %v2890, %v2892
        %v2894 = vrot.slane %v2654, 4
        %v2895 = vsel %vm1013, %v2892, %v2894
        %v2896 = vrot.slane %v2655, 4
        %v2897 = vsel %vm1013, %v2894, %v2896
        %v2898 = vrot.slane %v2656, 4
        %v2899 = vsel %vm1013, %v2896, %v2898
        %v2900 = vrot.slane %v2657, 4
        %v2901 = vsel %vm1013, %v2898, %v2900
        %v2902 = vrot.slane %v2658, 4
        %v2903 = vsel %vm1013, %v2900, %v2902
        %v2904 = vrot.slane %v2659, 4
        %v2905 = vsel %vm1013, %v2902, %v2904
        %v2906 = vrot.slane %v2660, 4
        %v2907 = vsel %vm1013, %v2904, %v2906
        %2908 = vrot.lane.b32.xlu0 %v2849, 40
        %v2909 = vpop.permute.xlu0 %2908
        %2910 = vrot.lane.b32.xlu0 %v2851, 40
        %v2911 = vpop.permute.xlu0 %2910
        %2912 = vrot.lane.b32.xlu0 %v2853, 40
        %v2913 = vpop.permute.xlu0 %2912
        %2914 = vrot.lane.b32.xlu0 %v2855, 40
        %v2915 = vpop.permute.xlu0 %2914
        %2916 = vrot.lane.b32.xlu0 %v2857, 40
        %v2917 = vpop.permute.xlu0 %2916
        %2918 = vrot.lane.b32.xlu0 %v2859, 40
        %v2919 = vpop.permute.xlu0 %2918
        %2920 = vrot.lane.b32.xlu0 %v2861, 40
        %v2921 = vpop.permute.xlu0 %2920
        %2922 = vrot.lane.b32.xlu0 %v2863, 40
        %v2923 = vpop.permute.xlu0 %2922
        %2924 = vrot.lane.b32.xlu0 %v2865, 40
        %v2925 = vpop.permute.xlu0 %2924
        %2926 = vrot.lane.b32.xlu0 %v2867, 40
        %v2927 = vpop.permute.xlu0 %2926
        %2928 = vrot.lane.b32.xlu0 %v2869, 40
        %v2929 = vpop.permute.xlu0 %2928
        %2930 = vrot.lane.b32.xlu0 %v2871, 40
        %v2931 = vpop.permute.xlu0 %2930
        %2932 = vrot.lane.b32.xlu0 %v2873, 40
        %v2933 = vpop.permute.xlu0 %2932
        %2934 = vrot.lane.b32.xlu0 %v2875, 40
        %v2935 = vpop.permute.xlu0 %2934
        %2936 = vrot.lane.b32.xlu0 %v2877, 40
        %v2937 = vpop.permute.xlu0 %2936
        %2938 = vrot.lane.b32.xlu0 %v2879, 40
        %v2939 = vpop.permute.xlu0 %2938
        %2940 = vrot.lane.b32.xlu0 %v2881, 40
        %v2941 = vpop.permute.xlu0 %2940
        %2942 = vrot.lane.b32.xlu0 %v2883, 40
        %v2943 = vpop.permute.xlu0 %2942
        %2944 = vrot.lane.b32.xlu0 %v2885, 40
        %v2945 = vpop.permute.xlu0 %2944
        %2946 = vrot.lane.b32.xlu0 %v2887, 40
        %v2947 = vpop.permute.xlu0 %2946
        %2948 = vrot.lane.b32.xlu0 %v2889, 40
        %v2949 = vpop.permute.xlu0 %2948
        %2950 = vrot.lane.b32.xlu0 %v2891, 40
        %v2951 = vpop.permute.xlu0 %2950
        %2952 = vrot.lane.b32.xlu0 %v2893, 40
        %v2953 = vpop.permute.xlu0 %2952
        %2954 = vrot.lane.b32.xlu0 %v2895, 40
        %v2955 = vpop.permute.xlu0 %2954
        %2956 = vrot.lane.b32.xlu0 %v2897, 40
        %v2957 = vpop.permute.xlu0 %2956
        %2958 = vrot.lane.b32.xlu0 %v2899, 40
        %v2959 = vpop.permute.xlu0 %2958
        %2960 = vrot.lane.b32.xlu0 %v2901, 40
        %v2961 = vpop.permute.xlu0 %2960
        %2962 = vrot.lane.b32.xlu0 %v2903, 40
        %v2963 = vpop.permute.xlu0 %2962
        %2964 = vrot.lane.b32.xlu0 %v2905, 40
        %v2965 = vpop.permute.xlu0 %2964
        %2966 = vrot.lane.b32.xlu0 %v2907, 40
        %v2967 = vpop.permute.xlu0 %2966
        %2968 = vrot.lane.b32.xlu0 %v2906, 40
        %v2969 = vpop.permute.xlu0 %2968
        %vm3002 = vcmask 1041408
        %v3003 = vrot.slane %v2630, 6
        %v3004 = vrot.slane %v2631, 6
        %v3005 = vsel %vm3002, %v3003, %v3004
        %v3006 = vrot.slane %v2632, 6
        %v3007 = vsel %vm3002, %v3004, %v3006
        %v3008 = vrot.slane %v2633, 6
        %v3009 = vsel %vm3002, %v3006, %v3008
        %v3010 = vrot.slane %v2634, 6
        %v3011 = vsel %vm3002, %v3008, %v3010
        %v3012 = vrot.slane %v2635, 6
        %v3013 = vsel %vm3002, %v3010, %v3012
        %v3014 = vrot.slane %v2636, 6
        %v3015 = vsel %vm3002, %v3012, %v3014
        %v3016 = vrot.slane %v2637, 6
        %v3017 = vsel %vm3002, %v3014, %v3016
        %v3018 = vrot.slane %v2638, 6
        %v3019 = vsel %vm3002, %v3016, %v3018
        %v3020 = vrot.slane %v2639, 6
        %v3021 = vsel %vm3002, %v3018, %v3020
        %v3022 = vrot.slane %v2640, 6
        %v3023 = vsel %vm3002, %v3020, %v3022
        %v3024 = vrot.slane %v2641, 6
        %v3025 = vsel %vm3002, %v3022, %v3024
        %v3026 = vrot.slane %v2642, 6
        %v3027 = vsel %vm3002, %v3024, %v3026
        %v3028 = vrot.slane %v2643, 6
        %v3029 = vsel %vm3002, %v3026, %v3028
        %v3030 = vrot.slane %v2644, 6
        %v3031 = vsel %vm3002, %v3028, %v3030
        %v3032 = vrot.slane %v2645, 6
        %v3033 = vsel %vm3002, %v3030, %v3032
        %v3034 = vrot.slane %v2646, 6
        %v3035 = vsel %vm3002, %v3032, %v3034
        %v3036 = vrot.slane %v2647, 6
        %v3037 = vsel %vm3002, %v3034, %v3036
        %v3038 = vrot.slane %v2648, 6
        %v3039 = vsel %vm3002, %v3036, %v3038
        %v3040 = vrot.slane %v2649, 6
        %v3041 = vsel %vm3002, %v3038, %v3040
        %v3042 = vrot.slane %v2650, 6
        %v3043 = vsel %vm3002, %v3040, %v3042
        %v3044 = vrot.slane %v2651, 6
        %v3045 = vsel %vm3002, %v3042, %v3044
        %v3046 = vrot.slane %v2652, 6
        %v3047 = vsel %vm3002, %v3044, %v3046
        %v3048 = vrot.slane %v2653, 6
        %v3049 = vsel %vm3002, %v3046, %v3048
        %v3050 = vrot.slane %v2654, 6
        %v3051 = vsel %vm3002, %v3048, %v3050
        %v3052 = vrot.slane %v2655, 6
        %v3053 = vsel %vm3002, %v3050, %v3052
        %v3054 = vrot.slane %v2656, 6
        %v3055 = vsel %vm3002, %v3052, %v3054
        %v3056 = vrot.slane %v2657, 6
        %v3057 = vsel %vm3002, %v3054, %v3056
        %v3058 = vrot.slane %v2658, 6
        %v3059 = vsel %vm3002, %v3056, %v3058
        %v3060 = vrot.slane %v2659, 6
        %v3061 = vsel %vm3002, %v3058, %v3060
        %v3062 = vrot.slane %v2660, 6
        %v3063 = vsel %vm3002, %v3060, %v3062
        %v3064 = vrot.slane %v2661, 6
        %v3065 = vsel %vm3002, %v3062, %v3064
        %3066 = vrot.lane.b32.xlu0 %v3005, 124
        %v3067 = vpop.permute.xlu0 %3066
        %3068 = vrot.lane.b32.xlu0 %v3007, 124
        %v3069 = vpop.permute.xlu0 %3068
        %3070 = vrot.lane.b32.xlu0 %v3009, 124
        %v3071 = vpop.permute.xlu0 %3070
        %3072 = vrot.lane.b32.xlu0 %v3011, 124
        %v3073 = vpop.permute.xlu0 %3072
        %3074 = vrot.lane.b32.xlu0 %v3013, 124
        %v3075 = vpop.permute.xlu0 %3074
        %3076 = vrot.lane.b32.xlu0 %v3015, 124
        %v3077 = vpop.permute.xlu0 %3076
        %3078 = vrot.lane.b32.xlu0 %v3017, 124
        %v3079 = vpop.permute.xlu0 %3078
        %3080 = vrot.lane.b32.xlu0 %v3019, 124
        %v3081 = vpop.permute.xlu0 %3080
        %3082 = vrot.lane.b32.xlu0 %v3021, 124
        %v3083 = vpop.permute.xlu0 %3082
        %3084 = vrot.lane.b32.xlu0 %v3023, 124
        %v3085 = vpop.permute.xlu0 %3084
        %3086 = vrot.lane.b32.xlu0 %v3025, 124
        %v3087 = vpop.permute.xlu0 %3086
        %3088 = vrot.lane.b32.xlu0 %v3027, 124
        %v3089 = vpop.permute.xlu0 %3088
        %3090 = vrot.lane.b32.xlu0 %v3029, 124
        %v3091 = vpop.permute.xlu0 %3090
        %3092 = vrot.lane.b32.xlu0 %v3031, 124
        %v3093 = vpop.permute.xlu0 %3092
        %3094 = vrot.lane.b32.xlu0 %v3033, 124
        %v3095 = vpop.permute.xlu0 %3094
        %3096 = vrot.lane.b32.xlu0 %v3035, 124
        %v3097 = vpop.permute.xlu0 %3096
        %3098 = vrot.lane.b32.xlu0 %v3037, 124
        %v3099 = vpop.permute.xlu0 %3098
        %3100 = vrot.lane.b32.xlu0 %v3039, 124
        %v3101 = vpop.permute.xlu0 %3100
        %3102 = vrot.lane.b32.xlu0 %v3041, 124
        %v3103 = vpop.permute.xlu0 %3102
        %3104 = vrot.lane.b32.xlu0 %v3043, 124
        %v3105 = vpop.permute.xlu0 %3104
        %3106 = vrot.lane.b32.xlu0 %v3045, 124
        %v3107 = vpop.permute.xlu0 %3106
        %3108 = vrot.lane.b32.xlu0 %v3047, 124
        %v3109 = vpop.permute.xlu0 %3108
        %3110 = vrot.lane.b32.xlu0 %v3049, 124
        %v3111 = vpop.permute.xlu0 %3110
        %3112 = vrot.lane.b32.xlu0 %v3051, 124
        %v3113 = vpop.permute.xlu0 %3112
        %3114 = vrot.lane.b32.xlu0 %v3053, 124
        %v3115 = vpop.permute.xlu0 %3114
        %3116 = vrot.lane.b32.xlu0 %v3055, 124
        %v3117 = vpop.permute.xlu0 %3116
        %3118 = vrot.lane.b32.xlu0 %v3057, 124
        %v3119 = vpop.permute.xlu0 %3118
        %3120 = vrot.lane.b32.xlu0 %v3059, 124
        %v3121 = vpop.permute.xlu0 %3120
        %3122 = vrot.lane.b32.xlu0 %v3061, 124
        %v3123 = vpop.permute.xlu0 %3122
        %3124 = vrot.lane.b32.xlu0 %v3063, 124
        %v3125 = vpop.permute.xlu0 %3124
        %3126 = vrot.lane.b32.xlu0 %v3065, 124
        %v3127 = vpop.permute.xlu0 %3126
        %3159 = vrot.lane.b32.xlu0 %v2631, 80
        %v3160 = vpop.permute.xlu0 %3159
        %3161 = vrot.lane.b32.xlu0 %v2632, 80
        %v3162 = vpop.permute.xlu0 %3161
        %3163 = vrot.lane.b32.xlu0 %v2633, 80
        %v3164 = vpop.permute.xlu0 %3163
        %3165 = vrot.lane.b32.xlu0 %v2634, 80
        %v3166 = vpop.permute.xlu0 %3165
        %3167 = vrot.lane.b32.xlu0 %v2635, 80
        %v3168 = vpop.permute.xlu0 %3167
        %3169 = vrot.lane.b32.xlu0 %v2636, 80
        %v3170 = vpop.permute.xlu0 %3169
        %3171 = vrot.lane.b32.xlu0 %v2637, 80
        %v3172 = vpop.permute.xlu0 %3171
        %3173 = vrot.lane.b32.xlu0 %v2638, 80
        %v3174 = vpop.permute.xlu0 %3173
        %3175 = vrot.lane.b32.xlu0 %v2639, 80
        %v3176 = vpop.permute.xlu0 %3175
        %3177 = vrot.lane.b32.xlu0 %v2640, 80
        %v3178 = vpop.permute.xlu0 %3177
        %3179 = vrot.lane.b32.xlu0 %v2641, 80
        %v3180 = vpop.permute.xlu0 %3179
        %3181 = vrot.lane.b32.xlu0 %v2642, 80
        %v3182 = vpop.permute.xlu0 %3181
        %3183 = vrot.lane.b32.xlu0 %v2643, 80
        %v3184 = vpop.permute.xlu0 %3183
        %3185 = vrot.lane.b32.xlu0 %v2644, 80
        %v3186 = vpop.permute.xlu0 %3185
        %3187 = vrot.lane.b32.xlu0 %v2645, 80
        %v3188 = vpop.permute.xlu0 %3187
        %3189 = vrot.lane.b32.xlu0 %v2646, 80
        %v3190 = vpop.permute.xlu0 %3189
        %3191 = vrot.lane.b32.xlu0 %v2647, 80
        %v3192 = vpop.permute.xlu0 %3191
        %3193 = vrot.lane.b32.xlu0 %v2648, 80
        %v3194 = vpop.permute.xlu0 %3193
        %3195 = vrot.lane.b32.xlu0 %v2649, 80
        %v3196 = vpop.permute.xlu0 %3195
        %3197 = vrot.lane.b32.xlu0 %v2650, 80
        %v3198 = vpop.permute.xlu0 %3197
        %3199 = vrot.lane.b32.xlu0 %v2651, 80
        %v3200 = vpop.permute.xlu0 %3199
        %3201 = vrot.lane.b32.xlu0 %v2652, 80
        %v3202 = vpop.permute.xlu0 %3201
        %3203 = vrot.lane.b32.xlu0 %v2653, 80
        %v3204 = vpop.permute.xlu0 %3203
        %3205 = vrot.lane.b32.xlu0 %v2654, 80
        %v3206 = vpop.permute.xlu0 %3205
        %3207 = vrot.lane.b32.xlu0 %v2655, 80
        %v3208 = vpop.permute.xlu0 %3207
        %3209 = vrot.lane.b32.xlu0 %v2656, 80
        %v3210 = vpop.permute.xlu0 %3209
        %3211 = vrot.lane.b32.xlu0 %v2657, 80
        %v3212 = vpop.permute.xlu0 %3211
        %3213 = vrot.lane.b32.xlu0 %v2658, 80
        %v3214 = vpop.permute.xlu0 %3213
        %3215 = vrot.lane.b32.xlu0 %v2659, 80
        %v3216 = vpop.permute.xlu0 %3215
        %3217 = vrot.lane.b32.xlu0 %v2660, 80
        %v3218 = vpop.permute.xlu0 %3217
        %3219 = vrot.lane.b32.xlu0 %v2661, 80
        %v3220 = vpop.permute.xlu0 %3219
        %vm3252 = vcmask 687104
        %v3253 = vsel %vm3252, %v2630, %v2755
        %v3254 = vsel %vm3252, %v2631, %v2757
        %v3255 = vsel %vm3252, %v2632, %v2759
        %v3256 = vsel %vm3252, %v2633, %v2761
        %v3257 = vsel %vm3252, %v2634, %v2763
        %v3258 = vsel %vm3252, %v2635, %v2765
        %v3259 = vsel %vm3252, %v2636, %v2767
        %v3260 = vsel %vm3252, %v2637, %v2769
        %v3261 = vsel %vm3252, %v2638, %v2771
        %v3262 = vsel %vm3252, %v2639, %v2773
        %v3263 = vsel %vm3252, %v2640, %v2775
        %v3264 = vsel %vm3252, %v2641, %v2777
        %v3265 = vsel %vm3252, %v2642, %v2779
        %v3266 = vsel %vm3252, %v2643, %v2781
        %v3267 = vsel %vm3252, %v2644, %v2783
        %v3268 = vsel %vm3252, %v2645, %v2785
        %v3269 = vsel %vm3252, %v2646, %v2787
        %v3270 = vsel %vm3252, %v2647, %v2789
        %v3271 = vsel %vm3252, %v2648, %v2791
        %v3272 = vsel %vm3252, %v2649, %v2793
        %v3273 = vsel %vm3252, %v2650, %v2795
        %v3274 = vsel %vm3252, %v2651, %v2797
        %v3275 = vsel %vm3252, %v2652, %v2799
        %v3276 = vsel %vm3252, %v2653, %v2801
        %v3277 = vsel %vm3252, %v2654, %v2803
        %v3278 = vsel %vm3252, %v2655, %v2805
        %v3279 = vsel %vm3252, %v2656, %v2807
        %v3280 = vsel %vm3252, %v2657, %v2809
        %v3281 = vsel %vm3252, %v2658, %v2811
        %v3282 = vsel %vm3252, %v2659, %v2813
        %v3283 = vsel %vm3252, %v2660, %v2815
        %v3284 = vsel %vm2258, %v2755, %v2909
        %v3285 = vsel %vm2258, %v2757, %v2911
        %v3286 = vsel %vm2258, %v2759, %v2913
        %v3287 = vsel %vm2258, %v2761, %v2915
        %v3288 = vsel %vm2258, %v2763, %v2917
        %v3289 = vsel %vm2258, %v2765, %v2919
        %v3290 = vsel %vm2258, %v2767, %v2921
        %v3291 = vsel %vm2258, %v2769, %v2923
        %v3292 = vsel %vm2258, %v2771, %v2925
        %v3293 = vsel %vm2258, %v2773, %v2927
        %v3294 = vsel %vm2258, %v2775, %v2929
        %v3295 = vsel %vm2258, %v2777, %v2931
        %v3296 = vsel %vm2258, %v2779, %v2933
        %v3297 = vsel %vm2258, %v2781, %v2935
        %v3298 = vsel %vm2258, %v2783, %v2937
        %v3299 = vsel %vm2258, %v2785, %v2939
        %v3300 = vsel %vm2258, %v2787, %v2941
        %v3301 = vsel %vm2258, %v2789, %v2943
        %v3302 = vsel %vm2258, %v2791, %v2945
        %v3303 = vsel %vm2258, %v2793, %v2947
        %v3304 = vsel %vm2258, %v2795, %v2949
        %v3305 = vsel %vm2258, %v2797, %v2951
        %v3306 = vsel %vm2258, %v2799, %v2953
        %v3307 = vsel %vm2258, %v2801, %v2955
        %v3308 = vsel %vm2258, %v2803, %v2957
        %v3309 = vsel %vm2258, %v2805, %v2959
        %v3310 = vsel %vm2258, %v2807, %v2961
        %v3311 = vsel %vm2258, %v2809, %v2963
        %v3312 = vsel %vm2258, %v2811, %v2965
        %v3313 = vsel %vm2258, %v2813, %v2967
        %v3314 = vsel %vm2258, %v2815, %v2969
        %vm3315 = vcmask 1014784
        %v3316 = vsel %vm3315, %v3284, %v3067
        %v3317 = vsel %vm3315, %v3285, %v3069
        %v3318 = vsel %vm3315, %v3286, %v3071
        %v3319 = vsel %vm3315, %v3287, %v3073
        %v3320 = vsel %vm3315, %v3288, %v3075
        %v3321 = vsel %vm3315, %v3289, %v3077
        %v3322 = vsel %vm3315, %v3290, %v3079
        %v3323 = vsel %vm3315, %v3291, %v3081
        %v3324 = vsel %vm3315, %v3292, %v3083
        %v3325 = vsel %vm3315, %v3293, %v3085
        %v3326 = vsel %vm3315, %v3294, %v3087
        %v3327 = vsel %vm3315, %v3295, %v3089
        %v3328 = vsel %vm3315, %v3296, %v3091
        %v3329 = vsel %vm3315, %v3297, %v3093
        %v3330 = vsel %vm3315, %v3298, %v3095
        %v3331 = vsel %vm3315, %v3299, %v3097
        %v3332 = vsel %vm3315, %v3300, %v3099
        %v3333 = vsel %vm3315, %v3301, %v3101
        %v3334 = vsel %vm3315, %v3302, %v3103
        %v3335 = vsel %vm3315, %v3303, %v3105
        %v3336 = vsel %vm3315, %v3304, %v3107
        %v3337 = vsel %vm3315, %v3305, %v3109
        %v3338 = vsel %vm3315, %v3306, %v3111
        %v3339 = vsel %vm3315, %v3307, %v3113
        %v3340 = vsel %vm3315, %v3308, %v3115
        %v3341 = vsel %vm3315, %v3309, %v3117
        %v3342 = vsel %vm3315, %v3310, %v3119
        %v3343 = vsel %vm3315, %v3311, %v3121
        %v3344 = vsel %vm3315, %v3312, %v3123
        %v3345 = vsel %vm3315, %v3313, %v3125
        %v3346 = vsel %vm3315, %v3314, %v3127
        %vm3347 = vcmask 654336
        %v3348 = vsel %vm3347, %v3067, %v3160
        %v3349 = vsel %vm3347, %v3069, %v3162
        %v3350 = vsel %vm3347, %v3071, %v3164
        %v3351 = vsel %vm3347, %v3073, %v3166
        %v3352 = vsel %vm3347, %v3075, %v3168
        %v3353 = vsel %vm3347, %v3077, %v3170
        %v3354 = vsel %vm3347, %v3079, %v3172
        %v3355 = vsel %vm3347, %v3081, %v3174
        %v3356 = vsel %vm3347, %v3083, %v3176
        %v3357 = vsel %vm3347, %v3085, %v3178
        %v3358 = vsel %vm3347, %v3087, %v3180
        %v3359 = vsel %vm3347, %v3089, %v3182
        %v3360 = vsel %vm3347, %v3091, %v3184
        %v3361 = vsel %vm3347, %v3093, %v3186
        %v3362 = vsel %vm3347, %v3095, %v3188
        %v3363 = vsel %vm3347, %v3097, %v3190
        %v3364 = vsel %vm3347, %v3099, %v3192
        %v3365 = vsel %vm3347, %v3101, %v3194
        %v3366 = vsel %vm3347, %v3103, %v3196
        %v3367 = vsel %vm3347, %v3105, %v3198
        %v3368 = vsel %vm3347, %v3107, %v3200
        %v3369 = vsel %vm3347, %v3109, %v3202
        %v3370 = vsel %vm3347, %v3111, %v3204
        %v3371 = vsel %vm3347, %v3113, %v3206
        %v3372 = vsel %vm3347, %v3115, %v3208
        %v3373 = vsel %vm3347, %v3117, %v3210
        %v3374 = vsel %vm3347, %v3119, %v3212
        %v3375 = vsel %vm3347, %v3121, %v3214
        %v3376 = vsel %vm3347, %v3123, %v3216
        %v3377 = vsel %vm3347, %v3125, %v3218
        %v3378 = vsel %vm3347, %v3127, %v3220
        %v3379 = vpack.c.bf16 %v3254, %v3253
        %v3380 = vpack.c.bf16 %v3317, %v3316
        %v3381 = vpack.c.bf16 %v3349, %v3348
        %v3382 = vpack.c.bf16 %v3162, %v3160
        %v3383 = vpack.c.bf16 %v3256, %v3255
        %v3384 = vpack.c.bf16 %v3319, %v3318
        %v3385 = vpack.c.bf16 %v3351, %v3350
        %v3386 = vpack.c.bf16 %v3166, %v3164
        %v3387 = vpack.c.bf16 %v3258, %v3257
        %v3388 = vpack.c.bf16 %v3321, %v3320
        %v3389 = vpack.c.bf16 %v3353, %v3352
        %v3390 = vpack.c.bf16 %v3170, %v3168
        %v3391 = vpack.c.bf16 %v3260, %v3259
        %v3392 = vpack.c.bf16 %v3323, %v3322
        %v3393 = vpack.c.bf16 %v3355, %v3354
        %v3394 = vpack.c.bf16 %v3174, %v3172
        %v3395 = vpack.c.bf16 %v3262, %v3261
        %v3396 = vpack.c.bf16 %v3325, %v3324
        %v3397 = vpack.c.bf16 %v3357, %v3356
        %v3398 = vpack.c.bf16 %v3178, %v3176
        %v3399 = vpack.c.bf16 %v3264, %v3263
        %v3400 = vpack.c.bf16 %v3327, %v3326
        %v3401 = vpack.c.bf16 %v3359, %v3358
        %v3402 = vpack.c.bf16 %v3182, %v3180
        %v3403 = vpack.c.bf16 %v3266, %v3265
        %v3404 = vpack.c.bf16 %v3329, %v3328
        %v3405 = vpack.c.bf16 %v3361, %v3360
        %v3406 = vpack.c.bf16 %v3186, %v3184
        %v3407 = vpack.c.bf16 %v3268, %v3267
        %v3408 = vpack.c.bf16 %v3331, %v3330
        %v3409 = vpack.c.bf16 %v3363, %v3362
        %v3410 = vpack.c.bf16 %v3190, %v3188
        %v3411 = vpack.c.bf16 %v3270, %v3269
        %v3412 = vpack.c.bf16 %v3333, %v3332
        %v3413 = vpack.c.bf16 %v3365, %v3364
        %v3414 = vpack.c.bf16 %v3194, %v3192
        %v3415 = vpack.c.bf16 %v3272, %v3271
        %v3416 = vpack.c.bf16 %v3335, %v3334
        %v3417 = vpack.c.bf16 %v3367, %v3366
        %v3418 = vpack.c.bf16 %v3198, %v3196
        %v3419 = vpack.c.bf16 %v3274, %v3273
        %v3420 = vpack.c.bf16 %v3337, %v3336
        %v3421 = vpack.c.bf16 %v3369, %v3368
        %v3422 = vpack.c.bf16 %v3202, %v3200
        %v3423 = vpack.c.bf16 %v3276, %v3275
        %v3424 = vpack.c.bf16 %v3339, %v3338
        %v3425 = vpack.c.bf16 %v3371, %v3370
        %v3426 = vpack.c.bf16 %v3206, %v3204
        %v3427 = vpack.c.bf16 %v3278, %v3277
        %v3428 = vpack.c.bf16 %v3341, %v3340
        %v3429 = vpack.c.bf16 %v3373, %v3372
        %v3430 = vpack.c.bf16 %v3210, %v3208
        %v3431 = vpack.c.bf16 %v3280, %v3279
        %v3432 = vpack.c.bf16 %v3343, %v3342
        %v3433 = vpack.c.bf16 %v3375, %v3374
        %v3434 = vpack.c.bf16 %v3214, %v3212
        %v3435 = vpack.c.bf16 %v3282, %v3281
        %v3436 = vpack.c.bf16 %v3345, %v3344
        %v3437 = vpack.c.bf16 %v3377, %v3376
        %v3438 = vpack.c.bf16 %v3218, %v3216
        %v3439 = vpack.c.bf16 %v3283, %v3283
        %v3440 = vpack.c.bf16 %v3346, %v3346
        %v3441 = vpack.c.bf16 %v3378, %v3378
        %v3442 = vpack.c.bf16 %v3220, %v3220
        %v3443 = vld [vmem:[%s3] sm:$0xff]
        %v3444 = vld [vmem:[%s3 + $0x8] sm:$0xff]
        %v3445 = vld [vmem:[%s3 + $0x10] sm:$0xff]
        %v3446 = vld [vmem:[%s3 + $0x18] sm:$0xff]
        %v3447 = vld [vmem:[%s3 + $0x20] sm:$0xff]
        %v3448 = vld [vmem:[%s3 + $0x28] sm:$0xff]
        %v3449 = vld [vmem:[%s3 + $0x30] sm:$0xff]
        %v3450 = vld [vmem:[%s3 + $0x38] sm:$0xff]
        %v3451 = vld [vmem:[%s3 + $0x40] sm:$0xff]
        %v3452 = vld [vmem:[%s3 + $0x48] sm:$0xff]
        %v3453 = vld [vmem:[%s3 + $0x50] sm:$0xff]
        %v3454 = vld [vmem:[%s3 + $0x58] sm:$0xff]
        %v3455 = vld [vmem:[%s3 + $0x60] sm:$0xff]
        %v3456 = vld [vmem:[%s3 + $0x68] sm:$0xff]
        %v3457 = vld [vmem:[%s3 + $0x70] sm:$0xff]
        %v3458 = vld [vmem:[%s3 + $0x78] sm:$0xff]
        %v3459 = vld [vmem:[%s3 + $0x80] sm:$0xff]
        %v3460 = vld [vmem:[%s3 + $0x88] sm:$0xff]
        %v3461 = vld [vmem:[%s3 + $0x90] sm:$0xff]
        %v3462 = vld [vmem:[%s3 + $0x98] sm:$0xff]
        %v3463 = vld [vmem:[%s3 + $0xa0] sm:$0xff]
        %v3464 = vld [vmem:[%s3 + $0xa8] sm:$0xff]
        %v3465 = vld [vmem:[%s3 + $0xb0] sm:$0xff]
        %v3466 = vld [vmem:[%s3 + $0xb8] sm:$0xff]
        %v3467 = vld [vmem:[%s3 + $0xc0] sm:$0xff]
        %v3468 = vld [vmem:[%s3 + $0xc8] sm:$0xff]
        %v3469 = vld [vmem:[%s3 + $0xd0] sm:$0xff]
        %v3470 = vld [vmem:[%s3 + $0xd8] sm:$0xff]
        %v3471 = vld [vmem:[%s3 + $0xe0] sm:$0xff]
        %v3472 = vld [vmem:[%s3 + $0xe8] sm:$0xff]
        %v3473 = vld [vmem:[%s3 + $0xf0] sm:$0xff]
        %v3474 = vld [vmem:[%s3 + $0xf8] sm:$0xff]
        %v3475 = vld [vmem:[%s3 + $0x100] sm:$0xff]
        %v3476 = vld [vmem:[%s3 + $0x108] sm:$0xff]
        %v3477 = vld [vmem:[%s3 + $0x110] sm:$0xff]
        %v3478 = vld [vmem:[%s3 + $0x118] sm:$0xff]
        %v3479 = vld [vmem:[%s3 + $0x120] sm:$0xff]
        %v3480 = vld [vmem:[%s3 + $0x128] sm:$0xff]
        %v3481 = vld [vmem:[%s3 + $0x130] sm:$0xff]
        %v3482 = vld [vmem:[%s3 + $0x138] sm:$0xff]
        %v3483 = vld [vmem:[%s3 + $0x140] sm:$0xff]
        %v3484 = vld [vmem:[%s3 + $0x148] sm:$0xff]
        %v3485 = vld [vmem:[%s3 + $0x150] sm:$0xff]
        %v3486 = vld [vmem:[%s3 + $0x158] sm:$0xff]
        %v3487 = vld [vmem:[%s3 + $0x160] sm:$0xff]
        %v3488 = vld [vmem:[%s3 + $0x168] sm:$0xff]
        %v3489 = vld [vmem:[%s3 + $0x170] sm:$0xff]
        %v3490 = vld [vmem:[%s3 + $0x178] sm:$0xff]
        %v3491 = vld [vmem:[%s3 + $0x180] sm:$0xff]
        %v3492 = vld [vmem:[%s3 + $0x188] sm:$0xff]
        %v3493 = vld [vmem:[%s3 + $0x190] sm:$0xff]
        %v3494 = vld [vmem:[%s3 + $0x198] sm:$0xff]
        %v3495 = vld [vmem:[%s3 + $0x1a0] sm:$0x33]
        %v3496 = vld [vmem:[%s4] sm:$0x3]
        %v3498 = vlaneseq
        %v3499 = vshrl.u32 %v3498, 7
        %v3500 = vsub.s32 0, %v3499
        %v3501 = vrot.slane %v3496, %v3500
        %v3502 = vlaneseq
        %v3503 = vshrl.u32 %v3502, 7
        %v3504 = vsub.s32 1, %v3503
        %v3505 = vrot.slane %v3496, %v3504
        %v3561 = vunpack.c.l.b16 %v3443
        %v3562 = vunpack.c.h.b16 %v3443
        %v3563 = vunpack.c.l.b16 %v3444
        %v3564 = vunpack.c.h.b16 %v3444
        %v3565 = vunpack.c.l.b16 %v3445
        %v3566 = vunpack.c.h.b16 %v3445
        %v3567 = vunpack.c.l.b16 %v3446
        %v3568 = vunpack.c.h.b16 %v3446
        %v3569 = vunpack.c.l.b16 %v3447
        %v3570 = vunpack.c.h.b16 %v3447
        %v3571 = vunpack.c.l.b16 %v3448
        %v3572 = vunpack.c.h.b16 %v3448
        %v3573 = vunpack.c.l.b16 %v3449
        %v3574 = vunpack.c.h.b16 %v3449
        %v3575 = vunpack.c.l.b16 %v3450
        %v3576 = vunpack.c.h.b16 %v3450
        %v3577 = vunpack.c.l.b16 %v3451
        %v3578 = vunpack.c.h.b16 %v3451
        %v3579 = vunpack.c.l.b16 %v3452
        %v3580 = vunpack.c.h.b16 %v3452
        %v3581 = vunpack.c.l.b16 %v3453
        %v3582 = vunpack.c.h.b16 %v3453
        %v3583 = vunpack.c.l.b16 %v3454
        %v3584 = vunpack.c.h.b16 %v3454
        %v3585 = vunpack.c.l.b16 %v3455
        %v3586 = vunpack.c.h.b16 %v3455
        %v3587 = vunpack.c.l.b16 %v3456
        %v3588 = vunpack.c.h.b16 %v3456
        %v3589 = vunpack.c.l.b16 %v3457
        %v3590 = vunpack.c.h.b16 %v3457
        %v3591 = vunpack.c.l.b16 %v3458
        %v3592 = vunpack.c.h.b16 %v3458
        %v3593 = vunpack.c.l.b16 %v3459
        %v3594 = vunpack.c.h.b16 %v3459
        %v3595 = vunpack.c.l.b16 %v3460
        %v3596 = vunpack.c.h.b16 %v3460
        %v3597 = vunpack.c.l.b16 %v3461
        %v3598 = vunpack.c.h.b16 %v3461
        %v3599 = vunpack.c.l.b16 %v3462
        %v3600 = vunpack.c.h.b16 %v3462
        %v3601 = vunpack.c.l.b16 %v3463
        %v3602 = vunpack.c.h.b16 %v3463
        %v3603 = vunpack.c.l.b16 %v3464
        %v3604 = vunpack.c.h.b16 %v3464
        %v3605 = vunpack.c.l.b16 %v3465
        %v3606 = vunpack.c.h.b16 %v3465
        %v3607 = vunpack.c.l.b16 %v3466
        %v3608 = vunpack.c.h.b16 %v3466
        %v3609 = vunpack.c.l.b16 %v3467
        %v3610 = vunpack.c.h.b16 %v3467
        %v3611 = vunpack.c.l.b16 %v3468
        %v3612 = vunpack.c.h.b16 %v3468
        %v3613 = vunpack.c.l.b16 %v3469
        %v3614 = vunpack.c.h.b16 %v3469
        %v3615 = vunpack.c.l.b16 %v3470
        %v3616 = vunpack.c.h.b16 %v3470
        %v3617 = vunpack.c.l.b16 %v3471
        %v3618 = vunpack.c.h.b16 %v3471
        %v3619 = vunpack.c.l.b16 %v3472
        %v3620 = vunpack.c.h.b16 %v3472
        %v3621 = vunpack.c.l.b16 %v3473
        %v3622 = vunpack.c.h.b16 %v3473
        %v3623 = vunpack.c.l.b16 %v3474
        %v3624 = vunpack.c.h.b16 %v3474
        %v3625 = vunpack.c.l.b16 %v3475
        %v3626 = vunpack.c.h.b16 %v3475
        %v3627 = vunpack.c.l.b16 %v3476
        %v3628 = vunpack.c.h.b16 %v3476
        %v3629 = vunpack.c.l.b16 %v3477
        %v3630 = vunpack.c.h.b16 %v3477
        %v3631 = vunpack.c.l.b16 %v3478
        %v3632 = vunpack.c.h.b16 %v3478
        %v3633 = vunpack.c.l.b16 %v3479
        %v3634 = vunpack.c.h.b16 %v3479
        %v3635 = vunpack.c.l.b16 %v3480
        %v3636 = vunpack.c.h.b16 %v3480
        %v3637 = vunpack.c.l.b16 %v3481
        %v3638 = vunpack.c.h.b16 %v3481
        %v3639 = vunpack.c.l.b16 %v3482
        %v3640 = vunpack.c.h.b16 %v3482
        %v3641 = vunpack.c.l.b16 %v3483
        %v3642 = vunpack.c.h.b16 %v3483
        %v3643 = vunpack.c.l.b16 %v3484
        %v3644 = vunpack.c.h.b16 %v3484
        %v3645 = vunpack.c.l.b16 %v3485
        %v3646 = vunpack.c.h.b16 %v3485
        %v3647 = vunpack.c.l.b16 %v3486
        %v3648 = vunpack.c.h.b16 %v3486
        %v3649 = vunpack.c.l.b16 %v3487
        %v3650 = vunpack.c.h.b16 %v3487
        %v3651 = vunpack.c.l.b16 %v3488
        %v3652 = vunpack.c.h.b16 %v3488
        %v3653 = vunpack.c.l.b16 %v3489
        %v3654 = vunpack.c.h.b16 %v3489
        %v3655 = vunpack.c.l.b16 %v3490
        %v3656 = vunpack.c.h.b16 %v3490
        %v3657 = vunpack.c.l.b16 %v3491
        %v3658 = vunpack.c.h.b16 %v3491
        %v3659 = vunpack.c.l.b16 %v3492
        %v3660 = vunpack.c.h.b16 %v3492
        %v3661 = vunpack.c.l.b16 %v3493
        %v3662 = vunpack.c.h.b16 %v3493
        %v3663 = vunpack.c.l.b16 %v3494
        %v3664 = vunpack.c.h.b16 %v3494
        %v3665 = vunpack.c.l.b16 %v3495
        %v3666 = vunpack.c.h.b16 %v3495
        %v3667 = vpack.c.b16 %v3563, %v3561
        %v3668 = vpack.c.b16 %v3564, %v3562
        %v3669 = vpack.c.b16 %v3567, %v3565
        %v3670 = vpack.c.b16 %v3568, %v3566
        %v3671 = vpack.c.b16 %v3571, %v3569
        %v3672 = vpack.c.b16 %v3572, %v3570
        %v3673 = vpack.c.b16 %v3575, %v3573
        %v3674 = vpack.c.b16 %v3576, %v3574
        %v3675 = vpack.c.b16 %v3579, %v3577
        %v3676 = vpack.c.b16 %v3580, %v3578
        %v3677 = vpack.c.b16 %v3583, %v3581
        %v3678 = vpack.c.b16 %v3584, %v3582
        %v3679 = vpack.c.b16 %v3587, %v3585
        %v3680 = vpack.c.b16 %v3588, %v3586
        %v3681 = vpack.c.b16 %v3591, %v3589
        %v3682 = vpack.c.b16 %v3592, %v3590
        %v3683 = vpack.c.b16 %v3595, %v3593
        %v3684 = vpack.c.b16 %v3596, %v3594
        %v3685 = vpack.c.b16 %v3599, %v3597
        %v3686 = vpack.c.b16 %v3600, %v3598
        %v3687 = vpack.c.b16 %v3603, %v3601
        %v3688 = vpack.c.b16 %v3604, %v3602
        %v3689 = vpack.c.b16 %v3607, %v3605
        %v3690 = vpack.c.b16 %v3608, %v3606
        %v3691 = vpack.c.b16 %v3611, %v3609
        %v3692 = vpack.c.b16 %v3612, %v3610
        %v3693 = vpack.c.b16 %v3615, %v3613
        %v3694 = vpack.c.b16 %v3616, %v3614
        %v3695 = vpack.c.b16 %v3619, %v3617
        %v3696 = vpack.c.b16 %v3620, %v3618
        %v3697 = vpack.c.b16 %v3623, %v3621
        %v3698 = vpack.c.b16 %v3624, %v3622
        %v3699 = vpack.c.b16 %v3627, %v3625
        %v3700 = vpack.c.b16 %v3628, %v3626
        %v3701 = vpack.c.b16 %v3631, %v3629
        %v3702 = vpack.c.b16 %v3632, %v3630
        %v3703 = vpack.c.b16 %v3635, %v3633
        %v3704 = vpack.c.b16 %v3636, %v3634
        %v3705 = vpack.c.b16 %v3639, %v3637
        %v3706 = vpack.c.b16 %v3640, %v3638
        %v3707 = vpack.c.b16 %v3643, %v3641
        %v3708 = vpack.c.b16 %v3644, %v3642
        %v3709 = vpack.c.b16 %v3647, %v3645
        %v3710 = vpack.c.b16 %v3648, %v3646
        %v3711 = vpack.c.b16 %v3651, %v3649
        %v3712 = vpack.c.b16 %v3652, %v3650
        %v3713 = vpack.c.b16 %v3655, %v3653
        %v3714 = vpack.c.b16 %v3656, %v3654
        %v3715 = vpack.c.b16 %v3659, %v3657
        %v3716 = vpack.c.b16 %v3660, %v3658
        %v3717 = vpack.c.b16 %v3663, %v3661
        %v3718 = vpack.c.b16 %v3664, %v3662
        %v3719 = vpack.c.b16 %v3665, %v3665
        %v3720 = vpack.c.b16 %v3666, %v3666
        %vm3773 = vcmask 293888
        %v3775 = vsel %vm3773, %v3382, 0
        %v3778 = vsel %vm3773, %v3386, 0
        %v3781 = vsel %vm3773, %v3390, 0
        %v3784 = vsel %vm3773, %v3394, 0
        %v3787 = vsel %vm3773, %v3398, 0
        %v3790 = vsel %vm3773, %v3402, 0
        %v3793 = vsel %vm3773, %v3406, 0
        %v3796 = vsel %vm3773, %v3410, 0
        %v3799 = vsel %vm3773, %v3414, 0
        %v3802 = vsel %vm3773, %v3418, 0
        %v3805 = vsel %vm3773, %v3422, 0
        %v3808 = vsel %vm3773, %v3426, 0
        %v3811 = vsel %vm3773, %v3430, 0
        %v3814 = vsel %vm3773, %v3434, 0
        %v3817 = vsel %vm3773, %v3438, 0
        %v3820 = vsel %vm3773, %v3442, 0
        %v3823 = vsel %vm3002, %v3719, 0
        %v3826 = vsel %vm3002, %v3720, 0
        %3828 = vmatprep.subr.bf16.mxu0 %v3682
        %3829 = vmatpush1.bf16.msra.mxu0 %v3681
        %3830 = vmatprep.subr.bf16.mxu0 %v3680
        %3831 = vmatpush1.bf16.msra.mxu0 %v3679
        %3832 = vmatprep.subr.bf16.mxu0 %v3678
        %3833 = vmatpush1.bf16.msra.mxu0 %v3677
        %3834 = vmatprep.subr.bf16.mxu0 %v3676
        %3835 = vmatpush1.bf16.msra.mxu0 %v3675
        %3836 = vmatprep.subr.bf16.mxu0 %v3674
        %3837 = vmatpush1.bf16.msra.mxu0 %v3673
        %3838 = vmatprep.subr.bf16.mxu0 %v3672
        %3839 = vmatpush1.bf16.msra.mxu0 %v3671
        %3840 = vmatprep.subr.bf16.mxu0 %v3670
        %3841 = vmatpush1.bf16.msra.mxu0 %v3669
        %3842 = vmatprep.subr.bf16.mxu0 %v3668
        %3843 = vmatpush1.bf16.msra.mxu0 %v3667
        %3844 = vmatprep.subr.bf16.mxu0 %v3698
        %3845 = vmatpush2.bf16.msra.mxu0 %v3697
        %3846 = vmatprep.subr.bf16.mxu0 %v3696
        %3847 = vmatpush2.bf16.msra.mxu0 %v3695
        %3848 = vmatprep.subr.bf16.mxu0 %v3694
        %3849 = vmatpush2.bf16.msra.mxu0 %v3693
        %3850 = vmatprep.subr.bf16.mxu0 %v3692
        %3851 = vmatpush2.bf16.msra.mxu0 %v3691
        %3852 = vmatprep.subr.bf16.mxu0 %v3690
        %3853 = vmatpush2.bf16.msra.mxu0 %v3689
        %3854 = vmatprep.subr.bf16.mxu0 %v3688
        %3855 = vmatpush2.bf16.msra.mxu0 %v3687
        %3856 = vmatprep.subr.bf16.mxu0 %v3686
        %3857 = vmatpush2.bf16.msra.mxu0 %v3685
        %3858 = vmatprep.subr.bf16.mxu0 %v3684
        %3859 = vmatpush2.bf16.msra.mxu0 %v3683
        %3860 = vmatprep.mubr.bf16.mxu0 %v3380
        %3861 = vmatmul.mubr.bf16.gmra.mxu0 %v3379
        %v3862 = vpop.f32.mrf.mxu0
        %v3863 = vadd.f32 %v3501, %v3862
        %v3864 = vpop.f32.mrf.mxu0
        %v3865 = vadd.f32 %v3505, %v3864
        %v3866 = vpop.f32.mrf.mxu0
        %v3867 = vadd.f32 %v3501, %v3866
        %v3868 = vpop.f32.mrf.mxu0
        %v3869 = vadd.f32 %v3505, %v3868
        %3870 = vmatprep.mubr.bf16.mxu0 %v3384
        %3871 = vmatmul.mubr.bf16.gmra.mxu0 %v3383
        %v3872 = vpop.f32.mrf.mxu0
        %v3873 = vadd.f32 %v3501, %v3872
        %v3874 = vpop.f32.mrf.mxu0
        %v3875 = vadd.f32 %v3505, %v3874
        %v3876 = vpop.f32.mrf.mxu0
        %v3877 = vadd.f32 %v3501, %v3876
        %v3878 = vpop.f32.mrf.mxu0
        %v3879 = vadd.f32 %v3505, %v3878
        %3880 = vmatprep.mubr.bf16.mxu0 %v3388
        %3881 = vmatmul.mubr.bf16.gmra.mxu0 %v3387
        %v3882 = vpop.f32.mrf.mxu0
        %v3883 = vadd.f32 %v3501, %v3882
        %v3884 = vpop.f32.mrf.mxu0
        %v3885 = vadd.f32 %v3505, %v3884
        %v3886 = vpop.f32.mrf.mxu0
        %v3887 = vadd.f32 %v3501, %v3886
        %v3888 = vpop.f32.mrf.mxu0
        %v3889 = vadd.f32 %v3505, %v3888
        %3890 = vmatprep.mubr.bf16.mxu0 %v3392
        %3891 = vmatmul.mubr.bf16.gmra.mxu0 %v3391
        %v3892 = vpop.f32.mrf.mxu0
        %v3893 = vadd.f32 %v3501, %v3892
        %v3894 = vpop.f32.mrf.mxu0
        %v3895 = vadd.f32 %v3505, %v3894
        %v3896 = vpop.f32.mrf.mxu0
        %v3897 = vadd.f32 %v3501, %v3896
        %v3898 = vpop.f32.mrf.mxu0
        %v3899 = vadd.f32 %v3505, %v3898
        %3900 = vmatprep.mubr.bf16.mxu0 %v3396
        %3901 = vmatmul.mubr.bf16.gmra.mxu0 %v3395
        %v3902 = vpop.f32.mrf.mxu0
        %v3903 = vadd.f32 %v3501, %v3902
        %v3904 = vpop.f32.mrf.mxu0
        %v3905 = vadd.f32 %v3505, %v3904
        %v3906 = vpop.f32.mrf.mxu0
        %v3907 = vadd.f32 %v3501, %v3906
        %v3908 = vpop.f32.mrf.mxu0
        %v3909 = vadd.f32 %v3505, %v3908
        %3910 = vmatprep.mubr.bf16.mxu0 %v3400
        %3911 = vmatmul.mubr.bf16.gmra.mxu0 %v3399
        %v3912 = vpop.f32.mrf.mxu0
        %v3913 = vadd.f32 %v3501, %v3912
        %v3914 = vpop.f32.mrf.mxu0
        %v3915 = vadd.f32 %v3505, %v3914
        %v3916 = vpop.f32.mrf.mxu0
        %v3917 = vadd.f32 %v3501, %v3916
        %v3918 = vpop.f32.mrf.mxu0
        %v3919 = vadd.f32 %v3505, %v3918
        %3920 = vmatprep.mubr.bf16.mxu0 %v3404
        %3921 = vmatmul.mubr.bf16.gmra.mxu0 %v3403
        %v3922 = vpop.f32.mrf.mxu0
        %v3923 = vadd.f32 %v3501, %v3922
        %v3924 = vpop.f32.mrf.mxu0
        %v3925 = vadd.f32 %v3505, %v3924
        %v3926 = vpop.f32.mrf.mxu0
        %v3927 = vadd.f32 %v3501, %v3926
        %v3928 = vpop.f32.mrf.mxu0
        %v3929 = vadd.f32 %v3505, %v3928
        %3930 = vmatprep.mubr.bf16.mxu0 %v3408
        %3931 = vmatmul.mubr.bf16.gmra.mxu0 %v3407
        %v3932 = vpop.f32.mrf.mxu0
        %v3933 = vadd.f32 %v3501, %v3932
        %v3934 = vpop.f32.mrf.mxu0
        %v3935 = vadd.f32 %v3505, %v3934
        %v3936 = vpop.f32.mrf.mxu0
        %v3937 = vadd.f32 %v3501, %v3936
        %v3938 = vpop.f32.mrf.mxu0
        %v3939 = vadd.f32 %v3505, %v3938
        %3940 = vmatprep.mubr.bf16.mxu0 %v3412
        %3941 = vmatmul.mubr.bf16.gmra.mxu0 %v3411
        %v3942 = vpop.f32.mrf.mxu0
        %v3943 = vadd.f32 %v3501, %v3942
        %v3944 = vpop.f32.mrf.mxu0
        %v3945 = vadd.f32 %v3505, %v3944
        %v3946 = vpop.f32.mrf.mxu0
        %v3947 = vadd.f32 %v3501, %v3946
        %v3948 = vpop.f32.mrf.mxu0
        %v3949 = vadd.f32 %v3505, %v3948
        %3950 = vmatprep.mubr.bf16.mxu0 %v3416
        %3951 = vmatmul.mubr.bf16.gmra.mxu0 %v3415
        %v3952 = vpop.f32.mrf.mxu0
        %v3953 = vadd.f32 %v3501, %v3952
        %v3954 = vpop.f32.mrf.mxu0
        %v3955 = vadd.f32 %v3505, %v3954
        %v3956 = vpop.f32.mrf.mxu0
        %v3957 = vadd.f32 %v3501, %v3956
        %v3958 = vpop.f32.mrf.mxu0
        %v3959 = vadd.f32 %v3505, %v3958
        %3960 = vmatprep.mubr.bf16.mxu0 %v3420
        %3961 = vmatmul.mubr.bf16.gmra.mxu0 %v3419
        %v3962 = vpop.f32.mrf.mxu0
        %v3963 = vadd.f32 %v3501, %v3962
        %v3964 = vpop.f32.mrf.mxu0
        %v3965 = vadd.f32 %v3505, %v3964
        %v3966 = vpop.f32.mrf.mxu0
        %v3967 = vadd.f32 %v3501, %v3966
        %v3968 = vpop.f32.mrf.mxu0
        %v3969 = vadd.f32 %v3505, %v3968
        %3970 = vmatprep.mubr.bf16.mxu0 %v3424
        %3971 = vmatmul.mubr.bf16.gmra.mxu0 %v3423
        %v3972 = vpop.f32.mrf.mxu0
        %v3973 = vadd.f32 %v3501, %v3972
        %v3974 = vpop.f32.mrf.mxu0
        %v3975 = vadd.f32 %v3505, %v3974
        %v3976 = vpop.f32.mrf.mxu0
        %v3977 = vadd.f32 %v3501, %v3976
        %v3978 = vpop.f32.mrf.mxu0
        %v3979 = vadd.f32 %v3505, %v3978
        %3980 = vmatprep.mubr.bf16.mxu0 %v3428
        %3981 = vmatmul.mubr.bf16.gmra.mxu0 %v3427
        %v3982 = vpop.f32.mrf.mxu0
        %v3983 = vadd.f32 %v3501, %v3982
        %v3984 = vpop.f32.mrf.mxu0
        %v3985 = vadd.f32 %v3505, %v3984
        %v3986 = vpop.f32.mrf.mxu0
        %v3987 = vadd.f32 %v3501, %v3986
        %v3988 = vpop.f32.mrf.mxu0
        %v3989 = vadd.f32 %v3505, %v3988
        %3990 = vmatprep.mubr.bf16.mxu0 %v3432
        %3991 = vmatmul.mubr.bf16.gmra.mxu0 %v3431
        %v3992 = vpop.f32.mrf.mxu0
        %v3993 = vadd.f32 %v3501, %v3992
        %v3994 = vpop.f32.mrf.mxu0
        %v3995 = vadd.f32 %v3505, %v3994
        %v3996 = vpop.f32.mrf.mxu0
        %v3997 = vadd.f32 %v3501, %v3996
        %v3998 = vpop.f32.mrf.mxu0
        %v3999 = vadd.f32 %v3505, %v3998
        %4000 = vmatprep.mubr.bf16.mxu0 %v3436
        %4001 = vmatmul.mubr.bf16.gmra.mxu0 %v3435
        %v4002 = vpop.f32.mrf.mxu0
        %v4003 = vadd.f32 %v3501, %v4002
        %v4004 = vpop.f32.mrf.mxu0
        %v4005 = vadd.f32 %v3505, %v4004
        %v4006 = vpop.f32.mrf.mxu0
        %v4007 = vadd.f32 %v3501, %v4006
        %v4008 = vpop.f32.mrf.mxu0
        %v4009 = vadd.f32 %v3505, %v4008
        %4010 = vmatprep.mubr.bf16.mxu0 %v3440
        %4011 = vmatmul.mubr.bf16.gmra.mxu0 %v3439
        %v4012 = vpop.f32.mrf.mxu0
        %v4013 = vadd.f32 %v3501, %v4012
        %v4014 = vpop.f32.mrf.mxu0
        %v4015 = vadd.f32 %v3505, %v4014
        %v4016 = vpop.f32.mrf.mxu0
        %v4017 = vpop.f32.mrf.mxu0
        %4018 = vdwg.mxu0
        %4019 = vmatprep.subr.bf16.mxu0 %v3714
        %4020 = vmatpush1.bf16.msra.mxu0 %v3713
        %4021 = vmatprep.subr.bf16.mxu0 %v3712
        %4022 = vmatpush1.bf16.msra.mxu0 %v3711
        %4023 = vmatprep.subr.bf16.mxu0 %v3710
        %4024 = vmatpush1.bf16.msra.mxu0 %v3709
        %4025 = vmatprep.subr.bf16.mxu0 %v3708
        %4026 = vmatpush1.bf16.msra.mxu0 %v3707
        %4027 = vmatprep.subr.bf16.mxu0 %v3706
        %4028 = vmatpush1.bf16.msra.mxu0 %v3705
        %4029 = vmatprep.subr.bf16.mxu0 %v3704
        %4030 = vmatpush1.bf16.msra.mxu0 %v3703
        %4031 = vmatprep.subr.bf16.mxu0 %v3702
        %4032 = vmatpush1.bf16.msra.mxu0 %v3701
        %4033 = vmatprep.subr.bf16.mxu0 %v3700
        %4034 = vmatpush1.bf16.msra.mxu0 %v3699
        %4035 = vmatprep.subr.bf16.mxu0 0
        %4036 = vmatpush2.bf16.msra.mxu0 0
        %4037 = vmatprep.subr.bf16.mxu0 0
        %4038 = vmatpush2.bf16.msra.mxu0 0
        %4039 = vmatprep.subr.bf16.mxu0 0
        %4040 = vmatpush2.bf16.msra.mxu0 0
        %4041 = vmatprep.subr.bf16.mxu0 0
        %4042 = vmatpush2.bf16.msra.mxu0 0
        %4043 = vmatprep.subr.bf16.mxu0 0
        %4044 = vmatpush2.bf16.msra.mxu0 0
        %4045 = vmatprep.subr.bf16.mxu0 %v3826
        %4046 = vmatpush2.bf16.msra.mxu0 %v3823
        %4047 = vmatprep.subr.bf16.mxu0 %v3718
        %4048 = vmatpush2.bf16.msra.mxu0 %v3717
        %4049 = vmatprep.subr.bf16.mxu0 %v3716
        %4050 = vmatpush2.bf16.msra.mxu0 %v3715
        %4051 = vmatprep.mubr.bf16.mxu0 %v3775
        %4052 = vmatmul.mubr.bf16.gmra.mxu0 %v3381
        %v4053 = vpop.f32.mrf.mxu0
        %v4054 = vadd.f32 %v3863, %v4053
        %v4055 = vpop.f32.mrf.mxu0
        %v4056 = vadd.f32 %v3865, %v4055
        %v4057 = vpop.f32.mrf.mxu0
        %v4058 = vadd.f32 %v3867, %v4057
        %v4059 = vpop.f32.mrf.mxu0
        %v4060 = vadd.f32 %v3869, %v4059
        %4061 = vmatprep.mubr.bf16.mxu0 %v3778
        %4062 = vmatmul.mubr.bf16.gmra.mxu0 %v3385
        %v4063 = vpop.f32.mrf.mxu0
        %v4064 = vadd.f32 %v3873, %v4063
        %v4065 = vpop.f32.mrf.mxu0
        %v4066 = vadd.f32 %v3875, %v4065
        %v4067 = vpop.f32.mrf.mxu0
        %v4068 = vadd.f32 %v3877, %v4067
        %v4069 = vpop.f32.mrf.mxu0
        %v4070 = vadd.f32 %v3879, %v4069
        %4071 = vmatprep.mubr.bf16.mxu0 %v3781
        %4072 = vmatmul.mubr.bf16.gmra.mxu0 %v3389
        %v4073 = vpop.f32.mrf.mxu0
        %v4074 = vadd.f32 %v3883, %v4073
        %v4075 = vpop.f32.mrf.mxu0
        %v4076 = vadd.f32 %v3885, %v4075
        %v4077 = vpop.f32.mrf.mxu0
        %v4078 = vadd.f32 %v3887, %v4077
        %v4079 = vpop.f32.mrf.mxu0
        %v4080 = vadd.f32 %v3889, %v4079
        %4081 = vmatprep.mubr.bf16.mxu0 %v3784
        %4082 = vmatmul.mubr.bf16.gmra.mxu0 %v3393
        %v4083 = vpop.f32.mrf.mxu0
        %v4084 = vadd.f32 %v3893, %v4083
        %v4085 = vpop.f32.mrf.mxu0
        %v4086 = vadd.f32 %v3895, %v4085
        %v4087 = vpop.f32.mrf.mxu0
        %v4088 = vadd.f32 %v3897, %v4087
        %v4089 = vpop.f32.mrf.mxu0
        %v4090 = vadd.f32 %v3899, %v4089
        %4091 = vmatprep.mubr.bf16.mxu0 %v3787
        %4092 = vmatmul.mubr.bf16.gmra.mxu0 %v3397
        %v4093 = vpop.f32.mrf.mxu0
        %v4094 = vadd.f32 %v3903, %v4093
        %v4095 = vpop.f32.mrf.mxu0
        %v4096 = vadd.f32 %v3905, %v4095
        %v4097 = vpop.f32.mrf.mxu0
        %v4098 = vadd.f32 %v3907, %v4097
        %v4099 = vpop.f32.mrf.mxu0
        %v4100 = vadd.f32 %v3909, %v4099
        %4101 = vmatprep.mubr.bf16.mxu0 %v3790
        %4102 = vmatmul.mubr.bf16.gmra.mxu0 %v3401
        %v4103 = vpop.f32.mrf.mxu0
        %v4104 = vadd.f32 %v3913, %v4103
        %v4105 = vpop.f32.mrf.mxu0
        %v4106 = vadd.f32 %v3915, %v4105
        %v4107 = vpop.f32.mrf.mxu0
        %v4108 = vadd.f32 %v3917, %v4107
        %v4109 = vpop.f32.mrf.mxu0
        %v4110 = vadd.f32 %v3919, %v4109
        %4111 = vmatprep.mubr.bf16.mxu0 %v3793
        %4112 = vmatmul.mubr.bf16.gmra.mxu0 %v3405
        %v4113 = vpop.f32.mrf.mxu0
        %v4114 = vadd.f32 %v3923, %v4113
        %v4115 = vpop.f32.mrf.mxu0
        %v4116 = vadd.f32 %v3925, %v4115
        %v4117 = vpop.f32.mrf.mxu0
        %v4118 = vadd.f32 %v3927, %v4117
        %v4119 = vpop.f32.mrf.mxu0
        %v4120 = vadd.f32 %v3929, %v4119
        %4121 = vmatprep.mubr.bf16.mxu0 %v3796
        %4122 = vmatmul.mubr.bf16.gmra.mxu0 %v3409
        %v4123 = vpop.f32.mrf.mxu0
        %v4124 = vadd.f32 %v3933, %v4123
        %v4125 = vpop.f32.mrf.mxu0
        %v4126 = vadd.f32 %v3935, %v4125
        %v4127 = vpop.f32.mrf.mxu0
        %v4128 = vadd.f32 %v3937, %v4127
        %v4129 = vpop.f32.mrf.mxu0
        %v4130 = vadd.f32 %v3939, %v4129
        %4131 = vmatprep.mubr.bf16.mxu0 %v3799
        %4132 = vmatmul.mubr.bf16.gmra.mxu0 %v3413
        %v4133 = vpop.f32.mrf.mxu0
        %v4134 = vadd.f32 %v3943, %v4133
        %v4135 = vpop.f32.mrf.mxu0
        %v4136 = vadd.f32 %v3945, %v4135
        %v4137 = vpop.f32.mrf.mxu0
        %v4138 = vadd.f32 %v3947, %v4137
        %v4139 = vpop.f32.mrf.mxu0
        %v4140 = vadd.f32 %v3949, %v4139
        %4141 = vmatprep.mubr.bf16.mxu0 %v3802
        %4142 = vmatmul.mubr.bf16.gmra.mxu0 %v3417
        %v4143 = vpop.f32.mrf.mxu0
        %v4144 = vadd.f32 %v3953, %v4143
        %v4145 = vpop.f32.mrf.mxu0
        %v4146 = vadd.f32 %v3955, %v4145
        %v4147 = vpop.f32.mrf.mxu0
        %v4148 = vadd.f32 %v3957, %v4147
        %v4149 = vpop.f32.mrf.mxu0
        %v4150 = vadd.f32 %v3959, %v4149
        %4151 = vmatprep.mubr.bf16.mxu0 %v3805
        %4152 = vmatmul.mubr.bf16.gmra.mxu0 %v3421
        %v4153 = vpop.f32.mrf.mxu0
        %v4154 = vadd.f32 %v3963, %v4153
        %v4155 = vpop.f32.mrf.mxu0
        %v4156 = vadd.f32 %v3965, %v4155
        %v4157 = vpop.f32.mrf.mxu0
        %v4158 = vadd.f32 %v3967, %v4157
        %v4159 = vpop.f32.mrf.mxu0
        %v4160 = vadd.f32 %v3969, %v4159
        %4161 = vmatprep.mubr.bf16.mxu0 %v3808
        %4162 = vmatmul.mubr.bf16.gmra.mxu0 %v3425
        %v4163 = vpop.f32.mrf.mxu0
        %v4164 = vadd.f32 %v3973, %v4163
        %v4165 = vpop.f32.mrf.mxu0
        %v4166 = vadd.f32 %v3975, %v4165
        %v4167 = vpop.f32.mrf.mxu0
        %v4168 = vadd.f32 %v3977, %v4167
        %v4169 = vpop.f32.mrf.mxu0
        %v4170 = vadd.f32 %v3979, %v4169
        %4171 = vmatprep.mubr.bf16.mxu0 %v3811
        %4172 = vmatmul.mubr.bf16.gmra.mxu0 %v3429
        %v4173 = vpop.f32.mrf.mxu0
        %v4174 = vadd.f32 %v3983, %v4173
        %v4175 = vpop.f32.mrf.mxu0
        %v4176 = vadd.f32 %v3985, %v4175
        %v4177 = vpop.f32.mrf.mxu0
        %v4178 = vadd.f32 %v3987, %v4177
        %v4179 = vpop.f32.mrf.mxu0
        %v4180 = vadd.f32 %v3989, %v4179
        %4181 = vmatprep.mubr.bf16.mxu0 %v3814
        %4182 = vmatmul.mubr.bf16.gmra.mxu0 %v3433
        %v4183 = vpop.f32.mrf.mxu0
        %v4184 = vadd.f32 %v3993, %v4183
        %v4185 = vpop.f32.mrf.mxu0
        %v4186 = vadd.f32 %v3995, %v4185
        %v4187 = vpop.f32.mrf.mxu0
        %v4188 = vadd.f32 %v3997, %v4187
        %v4189 = vpop.f32.mrf.mxu0
        %v4190 = vadd.f32 %v3999, %v4189
        %4191 = vmatprep.mubr.bf16.mxu0 %v3817
        %4192 = vmatmul.mubr.bf16.gmra.mxu0 %v3437
        %v4193 = vpop.f32.mrf.mxu0
        %v4194 = vadd.f32 %v4003, %v4193
        %v4195 = vpop.f32.mrf.mxu0
        %v4196 = vadd.f32 %v4005, %v4195
        %v4197 = vpop.f32.mrf.mxu0
        %v4198 = vadd.f32 %v4007, %v4197
        %v4199 = vpop.f32.mrf.mxu0
        %v4200 = vadd.f32 %v4009, %v4199
        %4201 = vmatprep.mubr.bf16.mxu0 %v3820
        %4202 = vmatmul.mubr.bf16.gmra.mxu0 %v3441
        %v4203 = vpop.f32.mrf.mxu0
        %v4204 = vadd.f32 %v4013, %v4203
        %v4205 = vpop.f32.mrf.mxu0
        %v4206 = vadd.f32 %v4015, %v4205
        %v4207 = vpop.f32.mrf.mxu0
        %v4208 = vpop.f32.mrf.mxu0
        %4209 = vdwg.mxu0
        %v4210 = vtanh.pop %v4054
        %v4211 = vtanh.pop %v4056
        %v4212 = vtanh.pop %v4058
        %v4213 = vtanh.pop %v4060
        %v4214 = vtanh.pop %v4064
        %v4215 = vtanh.pop %v4066
        %v4216 = vtanh.pop %v4068
        %v4217 = vtanh.pop %v4070
        %v4218 = vtanh.pop %v4074
        %v4219 = vtanh.pop %v4076
        %v4220 = vtanh.pop %v4078
        %v4221 = vtanh.pop %v4080
        %v4222 = vtanh.pop %v4084
        %v4223 = vtanh.pop %v4086
        %v4224 = vtanh.pop %v4088
        %v4225 = vtanh.pop %v4090
        %v4226 = vtanh.pop %v4094
        %v4227 = vtanh.pop %v4096
        %v4228 = vtanh.pop %v4098
        %v4229 = vtanh.pop %v4100
        %v4230 = vtanh.pop %v4104
        %v4231 = vtanh.pop %v4106
        %v4232 = vtanh.pop %v4108
        %v4233 = vtanh.pop %v4110
        %v4234 = vtanh.pop %v4114
        %v4235 = vtanh.pop %v4116
        %v4236 = vtanh.pop %v4118
        %v4237 = vtanh.pop %v4120
        %v4238 = vtanh.pop %v4124
        %v4239 = vtanh.pop %v4126
        %v4240 = vtanh.pop %v4128
        %v4241 = vtanh.pop %v4130
        %v4242 = vtanh.pop %v4134
        %v4243 = vtanh.pop %v4136
        %v4244 = vtanh.pop %v4138
        %v4245 = vtanh.pop %v4140
        %v4246 = vtanh.pop %v4144
        %v4247 = vtanh.pop %v4146
        %v4248 = vtanh.pop %v4148
        %v4249 = vtanh.pop %v4150
        %v4250 = vtanh.pop %v4154
        %v4251 = vtanh.pop %v4156
        %v4252 = vtanh.pop %v4158
        %v4253 = vtanh.pop %v4160
        %v4254 = vtanh.pop %v4164
        %v4255 = vtanh.pop %v4166
        %v4256 = vtanh.pop %v4168
        %v4257 = vtanh.pop %v4170
        %v4258 = vtanh.pop %v4174
        %v4259 = vtanh.pop %v4176
        %v4260 = vtanh.pop %v4178
        %v4261 = vtanh.pop %v4180
        %v4262 = vtanh.pop %v4184
        %v4263 = vtanh.pop %v4186
        %v4264 = vtanh.pop %v4188
        %v4265 = vtanh.pop %v4190
        %v4266 = vtanh.pop %v4194
        %v4267 = vtanh.pop %v4196
        %v4268 = vtanh.pop %v4198
        %v4269 = vtanh.pop %v4200
        %v4270 = vtanh.pop %v4204
        %v4271 = vtanh.pop %v4206
        %v4272 = vpack.c.bf16 %v4212, %v4210
        %v4273 = vpack.c.bf16 %v4213, %v4211
        %v4274 = vpack.c.bf16 %v4216, %v4214
        %v4275 = vpack.c.bf16 %v4217, %v4215
        %v4276 = vpack.c.bf16 %v4220, %v4218
        %v4277 = vpack.c.bf16 %v4221, %v4219
        %v4278 = vpack.c.bf16 %v4224, %v4222
        %v4279 = vpack.c.bf16 %v4225, %v4223
        %v4280 = vpack.c.bf16 %v4228, %v4226
        %v4281 = vpack.c.bf16 %v4229, %v4227
        %v4282 = vpack.c.bf16 %v4232, %v4230
        %v4283 = vpack.c.bf16 %v4233, %v4231
        %v4284 = vpack.c.bf16 %v4236, %v4234
        %v4285 = vpack.c.bf16 %v4237, %v4235
        %v4286 = vpack.c.bf16 %v4240, %v4238
        %v4287 = vpack.c.bf16 %v4241, %v4239
        %v4288 = vpack.c.bf16 %v4244, %v4242
        %v4289 = vpack.c.bf16 %v4245, %v4243
        %v4290 = vpack.c.bf16 %v4248, %v4246
        %v4291 = vpack.c.bf16 %v4249, %v4247
        %v4292 = vpack.c.bf16 %v4252, %v4250
        %v4293 = vpack.c.bf16 %v4253, %v4251
        %v4294 = vpack.c.bf16 %v4256, %v4254
        %v4295 = vpack.c.bf16 %v4257, %v4255
        %v4296 = vpack.c.bf16 %v4260, %v4258
        %v4297 = vpack.c.bf16 %v4261, %v4259
        %v4298 = vpack.c.bf16 %v4264, %v4262
        %v4299 = vpack.c.bf16 %v4265, %v4263
        %v4300 = vpack.c.bf16 %v4268, %v4266
        %v4301 = vpack.c.bf16 %v4269, %v4267
        %v4302 = vpack.c.bf16 %v4270, %v4270
        %v4303 = vpack.c.bf16 %v4271, %v4271
        %v4304 = vld [vmem:[%s6] sm:$0xf]
        %v4305 = vld [vmem:[%s6 + $0x4] sm:$0xf]
        %v4306 = vld [vmem:[%s6 + $0x8] sm:$0xf]
        %v4307 = vld [vmem:[%s6 + $0xc] sm:$0xf]
        %v4308 = vld [vmem:[%s6 + $0x10] sm:$0xf]
        %v4309 = vld [vmem:[%s6 + $0x14] sm:$0xf]
        %v4310 = vld [vmem:[%s6 + $0x18] sm:$0xf]
        %v4311 = vld [vmem:[%s6 + $0x1c] sm:$0xf]
        %v4312 = vld [vmem:[%s6 + $0x20] sm:$0xf]
        %v4313 = vld [vmem:[%s6 + $0x24] sm:$0xf]
        %v4314 = vld [vmem:[%s6 + $0x28] sm:$0xf]
        %v4315 = vld [vmem:[%s6 + $0x2c] sm:$0xf]
        %v4316 = vld [vmem:[%s6 + $0x30] sm:$0xf]
        %v4317 = vld [vmem:[%s6 + $0x34] sm:$0xf]
        %v4318 = vld [vmem:[%s6 + $0x38] sm:$0xf]
        %v4319 = vld [vmem:[%s6 + $0x3c] sm:$0xf]
        %v4320 = vld [vmem:[%s6 + $0x40] sm:$0xf]
        %v4321 = vld [vmem:[%s6 + $0x44] sm:$0xf]
        %v4322 = vld [vmem:[%s6 + $0x48] sm:$0xf]
        %v4323 = vld [vmem:[%s6 + $0x4c] sm:$0xf]
        %v4344 = vunpack.c.l.b16 %v4304
        %v4345 = vunpack.c.l.b16 %v4305
        %v4346 = vunpack.c.l.b16 %v4306
        %v4347 = vunpack.c.l.b16 %v4307
        %v4348 = vunpack.c.l.b16 %v4308
        %v4349 = vunpack.c.l.b16 %v4309
        %v4350 = vunpack.c.l.b16 %v4310
        %v4351 = vunpack.c.l.b16 %v4311
        %v4352 = vunpack.c.l.b16 %v4312
        %v4353 = vunpack.c.l.b16 %v4313
        %v4354 = vunpack.c.l.b16 %v4314
        %v4355 = vunpack.c.l.b16 %v4315
        %v4356 = vunpack.c.l.b16 %v4316
        %v4357 = vunpack.c.l.b16 %v4317
        %v4358 = vunpack.c.l.b16 %v4318
        %v4359 = vunpack.c.l.b16 %v4319
        %v4360 = vunpack.c.l.b16 %v4320
        %v4361 = vunpack.c.l.b16 %v4321
        %v4362 = vunpack.c.l.b16 %v4322
        %v4363 = vunpack.c.l.b16 %v4323
        %v4364 = vpack.c.b16 %v4345, %v4344
        %v4365 = vpack.c.b16 %v4347, %v4346
        %v4366 = vpack.c.b16 %v4349, %v4348
        %v4367 = vpack.c.b16 %v4351, %v4350
        %v4368 = vpack.c.b16 %v4353, %v4352
        %v4369 = vpack.c.b16 %v4355, %v4354
        %v4370 = vpack.c.b16 %v4357, %v4356
        %v4371 = vpack.c.b16 %v4359, %v4358
        %v4372 = vpack.c.b16 %v4361, %v4360
        %v4373 = vpack.c.b16 %v4363, %v4362
        %v4385 = vsel %vm1175, %v4273, 0
        %v4388 = vsel %vm1175, %v4275, 0
        %v4391 = vsel %vm1175, %v4277, 0
        %v4394 = vsel %vm1175, %v4279, 0
        %v4397 = vsel %vm1175, %v4281, 0
        %v4400 = vsel %vm1175, %v4283, 0
        %v4403 = vsel %vm1175, %v4285, 0
        %v4406 = vsel %vm1175, %v4287, 0
        %v4409 = vsel %vm1175, %v4289, 0
        %v4412 = vsel %vm1175, %v4291, 0
        %v4415 = vsel %vm1175, %v4293, 0
        %v4418 = vsel %vm1175, %v4295, 0
        %v4421 = vsel %vm1175, %v4297, 0
        %v4424 = vsel %vm1175, %v4299, 0
        %v4427 = vsel %vm1175, %v4301, 0
        %v4430 = vsel %vm1175, %v4303, 0
        %4432 = vmatprep.subr.bf16.mxu0 0
        %4433 = vmatpush1.bf16.msra.mxu0 %v4371
        %4434 = vmatprep.subr.bf16.mxu0 0
        %4435 = vmatpush1.bf16.msra.mxu0 %v4370
        %4436 = vmatprep.subr.bf16.mxu0 0
        %4437 = vmatpush1.bf16.msra.mxu0 %v4369
        %4438 = vmatprep.subr.bf16.mxu0 0
        %4439 = vmatpush1.bf16.msra.mxu0 %v4368
        %4440 = vmatprep.subr.bf16.mxu0 0
        %4441 = vmatpush1.bf16.msra.mxu0 %v4367
        %4442 = vmatprep.subr.bf16.mxu0 0
        %4443 = vmatpush1.bf16.msra.mxu0 %v4366
        %4444 = vmatprep.subr.bf16.mxu0 0
        %4445 = vmatpush1.bf16.msra.mxu0 %v4365
        %4446 = vmatprep.subr.bf16.mxu0 0
        %4447 = vmatpush1.bf16.msra.mxu0 %v4364
        %4448 = vmatprep.subr.bf16.mxu0 0
        %4449 = vmatpush2.bf16.msra.mxu0 0
        %4450 = vmatprep.subr.bf16.mxu0 0
        %4451 = vmatpush2.bf16.msra.mxu0 0
        %4452 = vmatprep.subr.bf16.mxu0 0
        %4453 = vmatpush2.bf16.msra.mxu0 0
        %4454 = vmatprep.subr.bf16.mxu0 0
        %4455 = vmatpush2.bf16.msra.mxu0 0
        %4456 = vmatprep.subr.bf16.mxu0 0
        %4457 = vmatpush2.bf16.msra.mxu0 0
        %4458 = vmatprep.subr.bf16.mxu0 0
        %4459 = vmatpush2.bf16.msra.mxu0 0
        %4460 = vmatprep.subr.bf16.mxu0 0
        %4461 = vmatpush2.bf16.msra.mxu0 %v4373
        %4462 = vmatprep.subr.bf16.mxu0 0
        %4463 = vmatpush2.bf16.msra.mxu0 %v4372
        %4464 = vmatprep.mubr.bf16.mxu0 %v4385
        %4465 = vmatmul.mubr.bf16.gmra.mxu0 %v4272
        %v4466 = vpop.f32.mrf.mxu0
        %v4467 = vadd.f32 0.0, %v4466
        %v4468 = vpop.f32.mrf.mxu0
        %v4469 = vpop.f32.mrf.mxu0
        %v4470 = vadd.f32 0.0, %v4469
        %v4471 = vpop.f32.mrf.mxu0
        %4472 = vmatprep.mubr.bf16.mxu0 %v4388
        %4473 = vmatmul.mubr.bf16.gmra.mxu0 %v4274
        %v4474 = vpop.f32.mrf.mxu0
        %v4475 = vadd.f32 0.0, %v4474
        %v4476 = vpop.f32.mrf.mxu0
        %v4477 = vpop.f32.mrf.mxu0
        %v4478 = vadd.f32 0.0, %v4477
        %v4479 = vpop.f32.mrf.mxu0
        %4480 = vmatprep.mubr.bf16.mxu0 %v4391
        %4481 = vmatmul.mubr.bf16.gmra.mxu0 %v4276
        %v4482 = vpop.f32.mrf.mxu0
        %v4483 = vadd.f32 0.0, %v4482
        %v4484 = vpop.f32.mrf.mxu0
        %v4485 = vpop.f32.mrf.mxu0
        %v4486 = vadd.f32 0.0, %v4485
        %v4487 = vpop.f32.mrf.mxu0
        %4488 = vmatprep.mubr.bf16.mxu0 %v4394
        %4489 = vmatmul.mubr.bf16.gmra.mxu0 %v4278
        %v4490 = vpop.f32.mrf.mxu0
        %v4491 = vadd.f32 0.0, %v4490
        %v4492 = vpop.f32.mrf.mxu0
        %v4493 = vpop.f32.mrf.mxu0
        %v4494 = vadd.f32 0.0, %v4493
        %v4495 = vpop.f32.mrf.mxu0
        %4496 = vmatprep.mubr.bf16.mxu0 %v4397
        %4497 = vmatmul.mubr.bf16.gmra.mxu0 %v4280
        %v4498 = vpop.f32.mrf.mxu0
        %v4499 = vadd.f32 0.0, %v4498
        %v4500 = vpop.f32.mrf.mxu0
        %v4501 = vpop.f32.mrf.mxu0
        %v4502 = vadd.f32 0.0, %v4501
        %v4503 = vpop.f32.mrf.mxu0
        %4504 = vmatprep.mubr.bf16.mxu0 %v4400
        %4505 = vmatmul.mubr.bf16.gmra.mxu0 %v4282
        %v4506 = vpop.f32.mrf.mxu0
        %v4507 = vadd.f32 0.0, %v4506
        %v4508 = vpop.f32.mrf.mxu0
        %v4509 = vpop.f32.mrf.mxu0
        %v4510 = vadd.f32 0.0, %v4509
        %v4511 = vpop.f32.mrf.mxu0
        %4512 = vmatprep.mubr.bf16.mxu0 %v4403
        %4513 = vmatmul.mubr.bf16.gmra.mxu0 %v4284
        %v4514 = vpop.f32.mrf.mxu0
        %v4515 = vadd.f32 0.0, %v4514
        %v4516 = vpop.f32.mrf.mxu0
        %v4517 = vpop.f32.mrf.mxu0
        %v4518 = vadd.f32 0.0, %v4517
        %v4519 = vpop.f32.mrf.mxu0
        %4520 = vmatprep.mubr.bf16.mxu0 %v4406
        %4521 = vmatmul.mubr.bf16.gmra.mxu0 %v4286
        %v4522 = vpop.f32.mrf.mxu0
        %v4523 = vadd.f32 0.0, %v4522
        %v4524 = vpop.f32.mrf.mxu0
        %v4525 = vpop.f32.mrf.mxu0
        %v4526 = vadd.f32 0.0, %v4525
        %v4527 = vpop.f32.mrf.mxu0
        %4528 = vmatprep.mubr.bf16.mxu0 %v4409
        %4529 = vmatmul.mubr.bf16.gmra.mxu0 %v4288
        %v4530 = vpop.f32.mrf.mxu0
        %v4531 = vadd.f32 0.0, %v4530
        %v4532 = vpop.f32.mrf.mxu0
        %v4533 = vpop.f32.mrf.mxu0
        %v4534 = vadd.f32 0.0, %v4533
        %v4535 = vpop.f32.mrf.mxu0
        %4536 = vmatprep.mubr.bf16.mxu0 %v4412
        %4537 = vmatmul.mubr.bf16.gmra.mxu0 %v4290
        %v4538 = vpop.f32.mrf.mxu0
        %v4539 = vadd.f32 0.0, %v4538
        %v4540 = vpop.f32.mrf.mxu0
        %v4541 = vpop.f32.mrf.mxu0
        %v4542 = vadd.f32 0.0, %v4541
        %v4543 = vpop.f32.mrf.mxu0
        %4544 = vmatprep.mubr.bf16.mxu0 %v4415
        %4545 = vmatmul.mubr.bf16.gmra.mxu0 %v4292
        %v4546 = vpop.f32.mrf.mxu0
        %v4547 = vadd.f32 0.0, %v4546
        %v4548 = vpop.f32.mrf.mxu0
        %v4549 = vpop.f32.mrf.mxu0
        %v4550 = vadd.f32 0.0, %v4549
        %v4551 = vpop.f32.mrf.mxu0
        %4552 = vmatprep.mubr.bf16.mxu0 %v4418
        %4553 = vmatmul.mubr.bf16.gmra.mxu0 %v4294
        %v4554 = vpop.f32.mrf.mxu0
        %v4555 = vadd.f32 0.0, %v4554
        %v4556 = vpop.f32.mrf.mxu0
        %v4557 = vpop.f32.mrf.mxu0
        %v4558 = vadd.f32 0.0, %v4557
        %v4559 = vpop.f32.mrf.mxu0
        %4560 = vmatprep.mubr.bf16.mxu0 %v4421
        %4561 = vmatmul.mubr.bf16.gmra.mxu0 %v4296
        %v4562 = vpop.f32.mrf.mxu0
        %v4563 = vadd.f32 0.0, %v4562
        %v4564 = vpop.f32.mrf.mxu0
        %v4565 = vpop.f32.mrf.mxu0
        %v4566 = vadd.f32 0.0, %v4565
        %v4567 = vpop.f32.mrf.mxu0
        %4568 = vmatprep.mubr.bf16.mxu0 %v4424
        %4569 = vmatmul.mubr.bf16.gmra.mxu0 %v4298
        %v4570 = vpop.f32.mrf.mxu0
        %v4571 = vadd.f32 0.0, %v4570
        %v4572 = vpop.f32.mrf.mxu0
        %v4573 = vpop.f32.mrf.mxu0
        %v4574 = vadd.f32 0.0, %v4573
        %v4575 = vpop.f32.mrf.mxu0
        %4576 = vmatprep.mubr.bf16.mxu0 %v4427
        %4577 = vmatmul.mubr.bf16.gmra.mxu0 %v4300
        %v4578 = vpop.f32.mrf.mxu0
        %v4579 = vadd.f32 0.0, %v4578
        %v4580 = vpop.f32.mrf.mxu0
        %v4581 = vpop.f32.mrf.mxu0
        %v4582 = vadd.f32 0.0, %v4581
        %v4583 = vpop.f32.mrf.mxu0
        %4584 = vmatprep.mubr.bf16.mxu0 %v4430
        %4585 = vmatmul.mubr.bf16.gmra.mxu0 %v4302
        %v4586 = vpop.f32.mrf.mxu0
        %v4587 = vadd.f32 0.0, %v4586
        %v4588 = vpop.f32.mrf.mxu0
        %v4589 = vpop.f32.mrf.mxu0
        %v4590 = vpop.f32.mrf.mxu0
        %4591 = vdwg.mxu0
        %v4623 = vrot.slane %v4467, 2
        %v4624 = vrot.slane %v4470, 2
        %v4625 = vsel %vm693, %v4623, %v4624
        %v4626 = vrot.slane %v4475, 2
        %v4627 = vsel %vm693, %v4624, %v4626
        %v4628 = vrot.slane %v4478, 2
        %v4629 = vsel %vm693, %v4626, %v4628
        %v4630 = vrot.slane %v4483, 2
        %v4631 = vsel %vm693, %v4628, %v4630
        %v4632 = vrot.slane %v4486, 2
        %v4633 = vsel %vm693, %v4630, %v4632
        %v4634 = vrot.slane %v4491, 2
        %v4635 = vsel %vm693, %v4632, %v4634
        %v4636 = vrot.slane %v4494, 2
        %v4637 = vsel %vm693, %v4634, %v4636
        %v4638 = vrot.slane %v4499, 2
        %v4639 = vsel %vm693, %v4636, %v4638
        %v4640 = vrot.slane %v4502, 2
        %v4641 = vsel %vm693, %v4638, %v4640
        %v4642 = vrot.slane %v4507, 2
        %v4643 = vsel %vm693, %v4640, %v4642
        %v4644 = vrot.slane %v4510, 2
        %v4645 = vsel %vm693, %v4642, %v4644
        %v4646 = vrot.slane %v4515, 2
        %v4647 = vsel %vm693, %v4644, %v4646
        %v4648 = vrot.slane %v4518, 2
        %v4649 = vsel %vm693, %v4646, %v4648
        %v4650 = vrot.slane %v4523, 2
        %v4651 = vsel %vm693, %v4648, %v4650
        %v4652 = vrot.slane %v4526, 2
        %v4653 = vsel %vm693, %v4650, %v4652
        %v4654 = vrot.slane %v4531, 2
        %v4655 = vsel %vm693, %v4652, %v4654
        %v4656 = vrot.slane %v4534, 2
        %v4657 = vsel %vm693, %v4654, %v4656
        %v4658 = vrot.slane %v4539, 2
        %v4659 = vsel %vm693, %v4656, %v4658
        %v4660 = vrot.slane %v4542, 2
        %v4661 = vsel %vm693, %v4658, %v4660
        %v4662 = vrot.slane %v4547, 2
        %v4663 = vsel %vm693, %v4660, %v4662
        %v4664 = vrot.slane %v4550, 2
        %v4665 = vsel %vm693, %v4662, %v4664
        %v4666 = vrot.slane %v4555, 2
        %v4667 = vsel %vm693, %v4664, %v4666
        %v4668 = vrot.slane %v4558, 2
        %v4669 = vsel %vm693, %v4666, %v4668
        %v4670 = vrot.slane %v4563, 2
        %v4671 = vsel %vm693, %v4668, %v4670
        %v4672 = vrot.slane %v4566, 2
        %v4673 = vsel %vm693, %v4670, %v4672
        %v4674 = vrot.slane %v4571, 2
        %v4675 = vsel %vm693, %v4672, %v4674
        %v4676 = vrot.slane %v4574, 2
        %v4677 = vsel %vm693, %v4674, %v4676
        %v4678 = vrot.slane %v4579, 2
        %v4679 = vsel %vm693, %v4676, %v4678
        %v4680 = vrot.slane %v4582, 2
        %v4681 = vsel %vm693, %v4678, %v4680
        %v4682 = vrot.slane %v4587, 2
        %v4683 = vsel %vm693, %v4680, %v4682
        %v4715 = vadd.f32 %v4467, %v4625
        %v4716 = vadd.f32 %v4470, %v4627
        %v4717 = vadd.f32 %v4475, %v4629
        %v4718 = vadd.f32 %v4478, %v4631
        %v4719 = vadd.f32 %v4483, %v4633
        %v4720 = vadd.f32 %v4486, %v4635
        %v4721 = vadd.f32 %v4491, %v4637
        %v4722 = vadd.f32 %v4494, %v4639
        %v4723 = vadd.f32 %v4499, %v4641
        %v4724 = vadd.f32 %v4502, %v4643
        %v4725 = vadd.f32 %v4507, %v4645
        %v4726 = vadd.f32 %v4510, %v4647
        %v4727 = vadd.f32 %v4515, %v4649
        %v4728 = vadd.f32 %v4518, %v4651
        %v4729 = vadd.f32 %v4523, %v4653
        %v4730 = vadd.f32 %v4526, %v4655
        %v4731 = vadd.f32 %v4531, %v4657
        %v4732 = vadd.f32 %v4534, %v4659
        %v4733 = vadd.f32 %v4539, %v4661
        %v4734 = vadd.f32 %v4542, %v4663
        %v4735 = vadd.f32 %v4547, %v4665
        %v4736 = vadd.f32 %v4550, %v4667
        %v4737 = vadd.f32 %v4555, %v4669
        %v4738 = vadd.f32 %v4558, %v4671
        %v4739 = vadd.f32 %v4563, %v4673
        %v4740 = vadd.f32 %v4566, %v4675
        %v4741 = vadd.f32 %v4571, %v4677
        %v4742 = vadd.f32 %v4574, %v4679
        %v4743 = vadd.f32 %v4579, %v4681
        %v4744 = vadd.f32 %v4582, %v4683
        %v4745 = vadd.f32 %v4587, %v4682
        %v4746 = vmul.f32 %v4715, 0.5
        %v4747 = vmul.f32 %v4716, 0.5
        %v4748 = vmul.f32 %v4717, 0.5
        %v4749 = vmul.f32 %v4718, 0.5
        %v4750 = vmul.f32 %v4719, 0.5
        %v4751 = vmul.f32 %v4720, 0.5
        %v4752 = vmul.f32 %v4721, 0.5
        %v4753 = vmul.f32 %v4722, 0.5
        %v4754 = vmul.f32 %v4723, 0.5
        %v4755 = vmul.f32 %v4724, 0.5
        %v4756 = vmul.f32 %v4725, 0.5
        %v4757 = vmul.f32 %v4726, 0.5
        %v4758 = vmul.f32 %v4727, 0.5
        %v4759 = vmul.f32 %v4728, 0.5
        %v4760 = vmul.f32 %v4729, 0.5
        %v4761 = vmul.f32 %v4730, 0.5
        %v4762 = vmul.f32 %v4731, 0.5
        %v4763 = vmul.f32 %v4732, 0.5
        %v4764 = vmul.f32 %v4733, 0.5
        %v4765 = vmul.f32 %v4734, 0.5
        %v4766 = vmul.f32 %v4735, 0.5
        %v4767 = vmul.f32 %v4736, 0.5
        %v4768 = vmul.f32 %v4737, 0.5
        %v4769 = vmul.f32 %v4738, 0.5
        %v4770 = vmul.f32 %v4739, 0.5
        %v4771 = vmul.f32 %v4740, 0.5
        %v4772 = vmul.f32 %v4741, 0.5
        %v4773 = vmul.f32 %v4742, 0.5
        %v4774 = vmul.f32 %v4743, 0.5
        %v4775 = vmul.f32 %v4744, 0.5
        %v4776 = vmul.f32 %v4745, 0.5
        %v4806 = vrot.slane %v4746, 4
        %v4807 = vrot.slane %v4747, 4
        %v4808 = vsel %vm1013, %v4806, %v4807
        %v4809 = vrot.slane %v4748, 4
        %v4810 = vsel %vm1013, %v4807, %v4809
        %v4811 = vrot.slane %v4749, 4
        %v4812 = vsel %vm1013, %v4809, %v4811
        %v4813 = vrot.slane %v4750, 4
        %v4814 = vsel %vm1013, %v4811, %v4813
        %v4815 = vrot.slane %v4751, 4
        %v4816 = vsel %vm1013, %v4813, %v4815
        %v4817 = vrot.slane %v4752, 4
        %v4818 = vsel %vm1013, %v4815, %v4817
        %v4819 = vrot.slane %v4753, 4
        %v4820 = vsel %vm1013, %v4817, %v4819
        %v4821 = vrot.slane %v4754, 4
        %v4822 = vsel %vm1013, %v4819, %v4821
        %v4823 = vrot.slane %v4755, 4
        %v4824 = vsel %vm1013, %v4821, %v4823
        %v4825 = vrot.slane %v4756, 4
        %v4826 = vsel %vm1013, %v4823, %v4825
        %v4827 = vrot.slane %v4757, 4
        %v4828 = vsel %vm1013, %v4825, %v4827
        %v4829 = vrot.slane %v4758, 4
        %v4830 = vsel %vm1013, %v4827, %v4829
        %v4831 = vrot.slane %v4759, 4
        %v4832 = vsel %vm1013, %v4829, %v4831
        %v4833 = vrot.slane %v4760, 4
        %v4834 = vsel %vm1013, %v4831, %v4833
        %v4835 = vrot.slane %v4761, 4
        %v4836 = vsel %vm1013, %v4833, %v4835
        %v4837 = vrot.slane %v4762, 4
        %v4838 = vsel %vm1013, %v4835, %v4837
        %v4839 = vrot.slane %v4763, 4
        %v4840 = vsel %vm1013, %v4837, %v4839
        %v4841 = vrot.slane %v4764, 4
        %v4842 = vsel %vm1013, %v4839, %v4841
        %v4843 = vrot.slane %v4765, 4
        %v4844 = vsel %vm1013, %v4841, %v4843
        %v4845 = vrot.slane %v4766, 4
        %v4846 = vsel %vm1013, %v4843, %v4845
        %v4847 = vrot.slane %v4767, 4
        %v4848 = vsel %vm1013, %v4845, %v4847
        %v4849 = vrot.slane %v4768, 4
        %v4850 = vsel %vm1013, %v4847, %v4849
        %v4851 = vrot.slane %v4769, 4
        %v4852 = vsel %vm1013, %v4849, %v4851
        %v4853 = vrot.slane %v4770, 4
        %v4854 = vsel %vm1013, %v4851, %v4853
        %v4855 = vrot.slane %v4771, 4
        %v4856 = vsel %vm1013, %v4853, %v4855
        %v4857 = vrot.slane %v4772, 4
        %v4858 = vsel %vm1013, %v4855, %v4857
        %v4859 = vrot.slane %v4773, 4
        %v4860 = vsel %vm1013, %v4857, %v4859
        %v4861 = vrot.slane %v4774, 4
        %v4862 = vsel %vm1013, %v4859, %v4861
        %4863 = vrot.lane.b32.xlu0 %v4808, 80
        %v4864 = vpop.permute.xlu0 %4863
        %4865 = vrot.lane.b32.xlu0 %v4810, 80
        %v4866 = vpop.permute.xlu0 %4865
        %4867 = vrot.lane.b32.xlu0 %v4812, 80
        %v4868 = vpop.permute.xlu0 %4867
        %4869 = vrot.lane.b32.xlu0 %v4814, 80
        %v4870 = vpop.permute.xlu0 %4869
        %4871 = vrot.lane.b32.xlu0 %v4816, 80
        %v4872 = vpop.permute.xlu0 %4871
        %4873 = vrot.lane.b32.xlu0 %v4818, 80
        %v4874 = vpop.permute.xlu0 %4873
        %4875 = vrot.lane.b32.xlu0 %v4820, 80
        %v4876 = vpop.permute.xlu0 %4875
        %4877 = vrot.lane.b32.xlu0 %v4822, 80
        %v4878 = vpop.permute.xlu0 %4877
        %4879 = vrot.lane.b32.xlu0 %v4824, 80
        %v4880 = vpop.permute.xlu0 %4879
        %4881 = vrot.lane.b32.xlu0 %v4826, 80
        %v4882 = vpop.permute.xlu0 %4881
        %4883 = vrot.lane.b32.xlu0 %v4828, 80
        %v4884 = vpop.permute.xlu0 %4883
        %4885 = vrot.lane.b32.xlu0 %v4830, 80
        %v4886 = vpop.permute.xlu0 %4885
        %4887 = vrot.lane.b32.xlu0 %v4832, 80
        %v4888 = vpop.permute.xlu0 %4887
        %4889 = vrot.lane.b32.xlu0 %v4834, 80
        %v4890 = vpop.permute.xlu0 %4889
        %4891 = vrot.lane.b32.xlu0 %v4836, 80
        %v4892 = vpop.permute.xlu0 %4891
        %4893 = vrot.lane.b32.xlu0 %v4838, 80
        %v4894 = vpop.permute.xlu0 %4893
        %4895 = vrot.lane.b32.xlu0 %v4840, 80
        %v4896 = vpop.permute.xlu0 %4895
        %4897 = vrot.lane.b32.xlu0 %v4842, 80
        %v4898 = vpop.permute.xlu0 %4897
        %4899 = vrot.lane.b32.xlu0 %v4844, 80
        %v4900 = vpop.permute.xlu0 %4899
        %4901 = vrot.lane.b32.xlu0 %v4846, 80
        %v4902 = vpop.permute.xlu0 %4901
        %4903 = vrot.lane.b32.xlu0 %v4848, 80
        %v4904 = vpop.permute.xlu0 %4903
        %4905 = vrot.lane.b32.xlu0 %v4850, 80
        %v4906 = vpop.permute.xlu0 %4905
        %4907 = vrot.lane.b32.xlu0 %v4852, 80
        %v4908 = vpop.permute.xlu0 %4907
        %4909 = vrot.lane.b32.xlu0 %v4854, 80
        %v4910 = vpop.permute.xlu0 %4909
        %4911 = vrot.lane.b32.xlu0 %v4856, 80
        %v4912 = vpop.permute.xlu0 %4911
        %4913 = vrot.lane.b32.xlu0 %v4858, 80
        %v4914 = vpop.permute.xlu0 %4913
        %4915 = vrot.lane.b32.xlu0 %v4860, 80
        %v4916 = vpop.permute.xlu0 %4915
        %4917 = vrot.lane.b32.xlu0 %v4862, 80
        %v4918 = vpop.permute.xlu0 %4917
        %4919 = vrot.lane.b32.xlu0 %v4861, 80
        %v4920 = vpop.permute.xlu0 %4919
        %4951 = vrot.lane.b32.xlu0 %v4747, 32
        %v4952 = vpop.permute.xlu0 %4951
        %4953 = vrot.lane.b32.xlu0 %v4748, 32
        %v4954 = vpop.permute.xlu0 %4953
        %4955 = vrot.lane.b32.xlu0 %v4749, 32
        %v4956 = vpop.permute.xlu0 %4955
        %4957 = vrot.lane.b32.xlu0 %v4750, 32
        %v4958 = vpop.permute.xlu0 %4957
        %4959 = vrot.lane.b32.xlu0 %v4751, 32
        %v4960 = vpop.permute.xlu0 %4959
        %4961 = vrot.lane.b32.xlu0 %v4752, 32
        %v4962 = vpop.permute.xlu0 %4961
        %4963 = vrot.lane.b32.xlu0 %v4753, 32
        %v4964 = vpop.permute.xlu0 %4963
        %4965 = vrot.lane.b32.xlu0 %v4754, 32
        %v4966 = vpop.permute.xlu0 %4965
        %4967 = vrot.lane.b32.xlu0 %v4755, 32
        %v4968 = vpop.permute.xlu0 %4967
        %4969 = vrot.lane.b32.xlu0 %v4756, 32
        %v4970 = vpop.permute.xlu0 %4969
        %4971 = vrot.lane.b32.xlu0 %v4757, 32
        %v4972 = vpop.permute.xlu0 %4971
        %4973 = vrot.lane.b32.xlu0 %v4758, 32
        %v4974 = vpop.permute.xlu0 %4973
        %4975 = vrot.lane.b32.xlu0 %v4759, 32
        %v4976 = vpop.permute.xlu0 %4975
        %4977 = vrot.lane.b32.xlu0 %v4760, 32
        %v4978 = vpop.permute.xlu0 %4977
        %4979 = vrot.lane.b32.xlu0 %v4761, 32
        %v4980 = vpop.permute.xlu0 %4979
        %4981 = vrot.lane.b32.xlu0 %v4762, 32
        %v4982 = vpop.permute.xlu0 %4981
        %4983 = vrot.lane.b32.xlu0 %v4763, 32
        %v4984 = vpop.permute.xlu0 %4983
        %4985 = vrot.lane.b32.xlu0 %v4764, 32
        %v4986 = vpop.permute.xlu0 %4985
        %4987 = vrot.lane.b32.xlu0 %v4765, 32
        %v4988 = vpop.permute.xlu0 %4987
        %4989 = vrot.lane.b32.xlu0 %v4766, 32
        %v4990 = vpop.permute.xlu0 %4989
        %4991 = vrot.lane.b32.xlu0 %v4767, 32
        %v4992 = vpop.permute.xlu0 %4991
        %4993 = vrot.lane.b32.xlu0 %v4768, 32
        %v4994 = vpop.permute.xlu0 %4993
        %4995 = vrot.lane.b32.xlu0 %v4769, 32
        %v4996 = vpop.permute.xlu0 %4995
        %4997 = vrot.lane.b32.xlu0 %v4770, 32
        %v4998 = vpop.permute.xlu0 %4997
        %4999 = vrot.lane.b32.xlu0 %v4771, 32
        %v5000 = vpop.permute.xlu0 %4999
        %5001 = vrot.lane.b32.xlu0 %v4772, 32
        %v5002 = vpop.permute.xlu0 %5001
        %5003 = vrot.lane.b32.xlu0 %v4773, 32
        %v5004 = vpop.permute.xlu0 %5003
        %5005 = vrot.lane.b32.xlu0 %v4774, 32
        %v5006 = vpop.permute.xlu0 %5005
        %5007 = vrot.lane.b32.xlu0 %v4775, 32
        %v5008 = vpop.permute.xlu0 %5007
        %v5038 = vrot.slane %v4775, 4
        %v5039 = vsel %vm1013, %v4861, %v5038
        %5040 = vrot.lane.b32.xlu0 %v4810, 112
        %v5041 = vpop.permute.xlu0 %5040
        %5042 = vrot.lane.b32.xlu0 %v4812, 112
        %v5043 = vpop.permute.xlu0 %5042
        %5044 = vrot.lane.b32.xlu0 %v4814, 112
        %v5045 = vpop.permute.xlu0 %5044
        %5046 = vrot.lane.b32.xlu0 %v4816, 112
        %v5047 = vpop.permute.xlu0 %5046
        %5048 = vrot.lane.b32.xlu0 %v4818, 112
        %v5049 = vpop.permute.xlu0 %5048
        %5050 = vrot.lane.b32.xlu0 %v4820, 112
        %v5051 = vpop.permute.xlu0 %5050
        %5052 = vrot.lane.b32.xlu0 %v4822, 112
        %v5053 = vpop.permute.xlu0 %5052
        %5054 = vrot.lane.b32.xlu0 %v4824, 112
        %v5055 = vpop.permute.xlu0 %5054
        %5056 = vrot.lane.b32.xlu0 %v4826, 112
        %v5057 = vpop.permute.xlu0 %5056
        %5058 = vrot.lane.b32.xlu0 %v4828, 112
        %v5059 = vpop.permute.xlu0 %5058
        %5060 = vrot.lane.b32.xlu0 %v4830, 112
        %v5061 = vpop.permute.xlu0 %5060
        %5062 = vrot.lane.b32.xlu0 %v4832, 112
        %v5063 = vpop.permute.xlu0 %5062
        %5064 = vrot.lane.b32.xlu0 %v4834, 112
        %v5065 = vpop.permute.xlu0 %5064
        %5066 = vrot.lane.b32.xlu0 %v4836, 112
        %v5067 = vpop.permute.xlu0 %5066
        %5068 = vrot.lane.b32.xlu0 %v4838, 112
        %v5069 = vpop.permute.xlu0 %5068
        %5070 = vrot.lane.b32.xlu0 %v4840, 112
        %v5071 = vpop.permute.xlu0 %5070
        %5072 = vrot.lane.b32.xlu0 %v4842, 112
        %v5073 = vpop.permute.xlu0 %5072
        %5074 = vrot.lane.b32.xlu0 %v4844, 112
        %v5075 = vpop.permute.xlu0 %5074
        %5076 = vrot.lane.b32.xlu0 %v4846, 112
        %v5077 = vpop.permute.xlu0 %5076
        %5078 = vrot.lane.b32.xlu0 %v4848, 112
        %v5079 = vpop.permute.xlu0 %5078
        %5080 = vrot.lane.b32.xlu0 %v4850, 112
        %v5081 = vpop.permute.xlu0 %5080
        %5082 = vrot.lane.b32.xlu0 %v4852, 112
        %v5083 = vpop.permute.xlu0 %5082
        %5084 = vrot.lane.b32.xlu0 %v4854, 112
        %v5085 = vpop.permute.xlu0 %5084
        %5086 = vrot.lane.b32.xlu0 %v4856, 112
        %v5087 = vpop.permute.xlu0 %5086
        %5088 = vrot.lane.b32.xlu0 %v4858, 112
        %v5089 = vpop.permute.xlu0 %5088
        %5090 = vrot.lane.b32.xlu0 %v4860, 112
        %v5091 = vpop.permute.xlu0 %5090
        %5092 = vrot.lane.b32.xlu0 %v4862, 112
        %v5093 = vpop.permute.xlu0 %5092
        %5094 = vrot.lane.b32.xlu0 %v5039, 112
        %v5095 = vpop.permute.xlu0 %5094
        %5096 = vrot.lane.b32.xlu0 %v5038, 112
        %v5097 = vpop.permute.xlu0 %5096
        %5128 = vrot.lane.b32.xlu0 %v4748, 64
        %v5129 = vpop.permute.xlu0 %5128
        %5130 = vrot.lane.b32.xlu0 %v4749, 64
        %v5131 = vpop.permute.xlu0 %5130
        %5132 = vrot.lane.b32.xlu0 %v4750, 64
        %v5133 = vpop.permute.xlu0 %5132
        %5134 = vrot.lane.b32.xlu0 %v4751, 64
        %v5135 = vpop.permute.xlu0 %5134
        %5136 = vrot.lane.b32.xlu0 %v4752, 64
        %v5137 = vpop.permute.xlu0 %5136
        %5138 = vrot.lane.b32.xlu0 %v4753, 64
        %v5139 = vpop.permute.xlu0 %5138
        %5140 = vrot.lane.b32.xlu0 %v4754, 64
        %v5141 = vpop.permute.xlu0 %5140
        %5142 = vrot.lane.b32.xlu0 %v4755, 64
        %v5143 = vpop.permute.xlu0 %5142
        %5144 = vrot.lane.b32.xlu0 %v4756, 64
        %v5145 = vpop.permute.xlu0 %5144
        %5146 = vrot.lane.b32.xlu0 %v4757, 64
        %v5147 = vpop.permute.xlu0 %5146
        %5148 = vrot.lane.b32.xlu0 %v4758, 64
        %v5149 = vpop.permute.xlu0 %5148
        %5150 = vrot.lane.b32.xlu0 %v4759, 64
        %v5151 = vpop.permute.xlu0 %5150
        %5152 = vrot.lane.b32.xlu0 %v4760, 64
        %v5153 = vpop.permute.xlu0 %5152
        %5154 = vrot.lane.b32.xlu0 %v4761, 64
        %v5155 = vpop.permute.xlu0 %5154
        %5156 = vrot.lane.b32.xlu0 %v4762, 64
        %v5157 = vpop.permute.xlu0 %5156
        %5158 = vrot.lane.b32.xlu0 %v4763, 64
        %v5159 = vpop.permute.xlu0 %5158
        %5160 = vrot.lane.b32.xlu0 %v4764, 64
        %v5161 = vpop.permute.xlu0 %5160
        %5162 = vrot.lane.b32.xlu0 %v4765, 64
        %v5163 = vpop.permute.xlu0 %5162
        %5164 = vrot.lane.b32.xlu0 %v4766, 64
        %v5165 = vpop.permute.xlu0 %5164
        %5166 = vrot.lane.b32.xlu0 %v4767, 64
        %v5167 = vpop.permute.xlu0 %5166
        %5168 = vrot.lane.b32.xlu0 %v4768, 64
        %v5169 = vpop.permute.xlu0 %5168
        %5170 = vrot.lane.b32.xlu0 %v4769, 64
        %v5171 = vpop.permute.xlu0 %5170
        %5172 = vrot.lane.b32.xlu0 %v4770, 64
        %v5173 = vpop.permute.xlu0 %5172
        %5174 = vrot.lane.b32.xlu0 %v4771, 64
        %v5175 = vpop.permute.xlu0 %5174
        %5176 = vrot.lane.b32.xlu0 %v4772, 64
        %v5177 = vpop.permute.xlu0 %5176
        %5178 = vrot.lane.b32.xlu0 %v4773, 64
        %v5179 = vpop.permute.xlu0 %5178
        %5180 = vrot.lane.b32.xlu0 %v4774, 64
        %v5181 = vpop.permute.xlu0 %5180
        %5182 = vrot.lane.b32.xlu0 %v4775, 64
        %v5183 = vpop.permute.xlu0 %5182
        %5184 = vrot.lane.b32.xlu0 %v4776, 64
        %v5185 = vpop.permute.xlu0 %5184
        %v5215 = vsel %vm3347, %v4746, %v4864
        %v5216 = vsel %vm3347, %v4747, %v4866
        %v5217 = vsel %vm3347, %v4748, %v4868
        %v5218 = vsel %vm3347, %v4749, %v4870
        %v5219 = vsel %vm3347, %v4750, %v4872
        %v5220 = vsel %vm3347, %v4751, %v4874
        %v5221 = vsel %vm3347, %v4752, %v4876
        %v5222 = vsel %vm3347, %v4753, %v4878
        %v5223 = vsel %vm3347, %v4754, %v4880
        %v5224 = vsel %vm3347, %v4755, %v4882
        %v5225 = vsel %vm3347, %v4756, %v4884
        %v5226 = vsel %vm3347, %v4757, %v4886
        %v5227 = vsel %vm3347, %v4758, %v4888
        %v5228 = vsel %vm3347, %v4759, %v4890
        %v5229 = vsel %vm3347, %v4760, %v4892
        %v5230 = vsel %vm3347, %v4761, %v4894
        %v5231 = vsel %vm3347, %v4762, %v4896
        %v5232 = vsel %vm3347, %v4763, %v4898
        %v5233 = vsel %vm3347, %v4764, %v4900
        %v5234 = vsel %vm3347, %v4765, %v4902
        %v5235 = vsel %vm3347, %v4766, %v4904
        %v5236 = vsel %vm3347, %v4767, %v4906
        %v5237 = vsel %vm3347, %v4768, %v4908
        %v5238 = vsel %vm3347, %v4769, %v4910
        %v5239 = vsel %vm3347, %v4770, %v4912
        %v5240 = vsel %vm3347, %v4771, %v4914
        %v5241 = vsel %vm3347, %v4772, %v4916
        %v5242 = vsel %vm3347, %v4773, %v4918
        %v5243 = vsel %vm3347, %v4774, %v4920
        %v5244 = vsel %vm1175, %v4864, %v4952
        %v5245 = vsel %vm1175, %v4866, %v4954
        %v5246 = vsel %vm1175, %v4868, %v4956
        %v5247 = vsel %vm1175, %v4870, %v4958
        %v5248 = vsel %vm1175, %v4872, %v4960
        %v5249 = vsel %vm1175, %v4874, %v4962
        %v5250 = vsel %vm1175, %v4876, %v4964
        %v5251 = vsel %vm1175, %v4878, %v4966
        %v5252 = vsel %vm1175, %v4880, %v4968
        %v5253 = vsel %vm1175, %v4882, %v4970
        %v5254 = vsel %vm1175, %v4884, %v4972
        %v5255 = vsel %vm1175, %v4886, %v4974
        %v5256 = vsel %vm1175, %v4888, %v4976
        %v5257 = vsel %vm1175, %v4890, %v4978
        %v5258 = vsel %vm1175, %v4892, %v4980
        %v5259 = vsel %vm1175, %v4894, %v4982
        %v5260 = vsel %vm1175, %v4896, %v4984
        %v5261 = vsel %vm1175, %v4898, %v4986
        %v5262 = vsel %vm1175, %v4900, %v4988
        %v5263 = vsel %vm1175, %v4902, %v4990
        %v5264 = vsel %vm1175, %v4904, %v4992
        %v5265 = vsel %vm1175, %v4906, %v4994
        %v5266 = vsel %vm1175, %v4908, %v4996
        %v5267 = vsel %vm1175, %v4910, %v4998
        %v5268 = vsel %vm1175, %v4912, %v5000
        %v5269 = vsel %vm1175, %v4914, %v5002
        %v5270 = vsel %vm1175, %v4916, %v5004
        %v5271 = vsel %vm1175, %v4918, %v5006
        %v5272 = vsel %vm1175, %v4920, %v5008
        %vm5273 = vcmask 916480
        %v5274 = vsel %vm5273, %v5244, %v5041
        %v5275 = vsel %vm5273, %v5245, %v5043
        %v5276 = vsel %vm5273, %v5246, %v5045
        %v5277 = vsel %vm5273, %v5247, %v5047
        %v5278 = vsel %vm5273, %v5248, %v5049
        %v5279 = vsel %vm5273, %v5249, %v5051
        %v5280 = vsel %vm5273, %v5250, %v5053
        %v5281 = vsel %vm5273, %v5251, %v5055
        %v5282 = vsel %vm5273, %v5252, %v5057
        %v5283 = vsel %vm5273, %v5253, %v5059
        %v5284 = vsel %vm5273, %v5254, %v5061
        %v5285 = vsel %vm5273, %v5255, %v5063
        %v5286 = vsel %vm5273, %v5256, %v5065
        %v5287 = vsel %vm5273, %v5257, %v5067
        %v5288 = vsel %vm5273, %v5258, %v5069
        %v5289 = vsel %vm5273, %v5259, %v5071
        %v5290 = vsel %vm5273, %v5260, %v5073
        %v5291 = vsel %vm5273, %v5261, %v5075
        %v5292 = vsel %vm5273, %v5262, %v5077
        %v5293 = vsel %vm5273, %v5263, %v5079
        %v5294 = vsel %vm5273, %v5264, %v5081
        %v5295 = vsel %vm5273, %v5265, %v5083
        %v5296 = vsel %vm5273, %v5266, %v5085
        %v5297 = vsel %vm5273, %v5267, %v5087
        %v5298 = vsel %vm5273, %v5268, %v5089
        %v5299 = vsel %vm5273, %v5269, %v5091
        %v5300 = vsel %vm5273, %v5270, %v5093
        %v5301 = vsel %vm5273, %v5271, %v5095
        %v5302 = vsel %vm5273, %v5272, %v5097
        %v5303 = vsel %vm1142, %v5041, %v5129
        %v5304 = vsel %vm1142, %v5043, %v5131
        %v5305 = vsel %vm1142, %v5045, %v5133
        %v5306 = vsel %vm1142, %v5047, %v5135
        %v5307 = vsel %vm1142, %v5049, %v5137
        %v5308 = vsel %vm1142, %v5051, %v5139
        %v5309 = vsel %vm1142, %v5053, %v5141
        %v5310 = vsel %vm1142, %v5055, %v5143
        %v5311 = vsel %vm1142, %v5057, %v5145
        %v5312 = vsel %vm1142, %v5059, %v5147
        %v5313 = vsel %vm1142, %v5061, %v5149
        %v5314 = vsel %vm1142, %v5063, %v5151
        %v5315 = vsel %vm1142, %v5065, %v5153
        %v5316 = vsel %vm1142, %v5067, %v5155
        %v5317 = vsel %vm1142, %v5069, %v5157
        %v5318 = vsel %vm1142, %v5071, %v5159
        %v5319 = vsel %vm1142, %v5073, %v5161
        %v5320 = vsel %vm1142, %v5075, %v5163
        %v5321 = vsel %vm1142, %v5077, %v5165
        %v5322 = vsel %vm1142, %v5079, %v5167
        %v5323 = vsel %vm1142, %v5081, %v5169
        %v5324 = vsel %vm1142, %v5083, %v5171
        %v5325 = vsel %vm1142, %v5085, %v5173
        %v5326 = vsel %vm1142, %v5087, %v5175
        %v5327 = vsel %vm1142, %v5089, %v5177
        %v5328 = vsel %vm1142, %v5091, %v5179
        %v5329 = vsel %vm1142, %v5093, %v5181
        %v5330 = vsel %vm1142, %v5095, %v5183
        %v5331 = vsel %vm1142, %v5097, %v5185
        %v5332 = vpack.c.bf16 %v5216, %v5215
        %v5333 = vpack.c.bf16 %v5275, %v5274
        %v5334 = vpack.c.bf16 %v5304, %v5303
        %v5335 = vpack.c.bf16 %v5131, %v5129
        %v5336 = vpack.c.bf16 %v5218, %v5217
        %v5337 = vpack.c.bf16 %v5277, %v5276
        %v5338 = vpack.c.bf16 %v5306, %v5305
        %v5339 = vpack.c.bf16 %v5135, %v5133
        %v5340 = vpack.c.bf16 %v5220, %v5219
        %v5341 = vpack.c.bf16 %v5279, %v5278
        %v5342 = vpack.c.bf16 %v5308, %v5307
        %v5343 = vpack.c.bf16 %v5139, %v5137
        %v5344 = vpack.c.bf16 %v5222, %v5221
        %v5345 = vpack.c.bf16 %v5281, %v5280
        %v5346 = vpack.c.bf16 %v5310, %v5309
        %v5347 = vpack.c.bf16 %v5143, %v5141
        %v5348 = vpack.c.bf16 %v5224, %v5223
        %v5349 = vpack.c.bf16 %v5283, %v5282
        %v5350 = vpack.c.bf16 %v5312, %v5311
        %v5351 = vpack.c.bf16 %v5147, %v5145
        %v5352 = vpack.c.bf16 %v5226, %v5225
        %v5353 = vpack.c.bf16 %v5285, %v5284
        %v5354 = vpack.c.bf16 %v5314, %v5313
        %v5355 = vpack.c.bf16 %v5151, %v5149
        %v5356 = vpack.c.bf16 %v5228, %v5227
        %v5357 = vpack.c.bf16 %v5287, %v5286
        %v5358 = vpack.c.bf16 %v5316, %v5315
        %v5359 = vpack.c.bf16 %v5155, %v5153
        %v5360 = vpack.c.bf16 %v5230, %v5229
        %v5361 = vpack.c.bf16 %v5289, %v5288
        %v5362 = vpack.c.bf16 %v5318, %v5317
        %v5363 = vpack.c.bf16 %v5159, %v5157
        %v5364 = vpack.c.bf16 %v5232, %v5231
        %v5365 = vpack.c.bf16 %v5291, %v5290
        %v5366 = vpack.c.bf16 %v5320, %v5319
        %v5367 = vpack.c.bf16 %v5163, %v5161
        %v5368 = vpack.c.bf16 %v5234, %v5233
        %v5369 = vpack.c.bf16 %v5293, %v5292
        %v5370 = vpack.c.bf16 %v5322, %v5321
        %v5371 = vpack.c.bf16 %v5167, %v5165
        %v5372 = vpack.c.bf16 %v5236, %v5235
        %v5373 = vpack.c.bf16 %v5295, %v5294
        %v5374 = vpack.c.bf16 %v5324, %v5323
        %v5375 = vpack.c.bf16 %v5171, %v5169
        %v5376 = vpack.c.bf16 %v5238, %v5237
        %v5377 = vpack.c.bf16 %v5297, %v5296
        %v5378 = vpack.c.bf16 %v5326, %v5325
        %v5379 = vpack.c.bf16 %v5175, %v5173
        %v5380 = vpack.c.bf16 %v5240, %v5239
        %v5381 = vpack.c.bf16 %v5299, %v5298
        %v5382 = vpack.c.bf16 %v5328, %v5327
        %v5383 = vpack.c.bf16 %v5179, %v5177
        %v5384 = vpack.c.bf16 %v5242, %v5241
        %v5385 = vpack.c.bf16 %v5301, %v5300
        %v5386 = vpack.c.bf16 %v5330, %v5329
        %v5387 = vpack.c.bf16 %v5183, %v5181
        %v5388 = vpack.c.bf16 %v5243, %v5243
        %v5389 = vpack.c.bf16 %v5302, %v5302
        %v5390 = vpack.c.bf16 %v5331, %v5331
        %v5391 = vpack.c.bf16 %v5185, %v5185
        %v5392 = vld [vmem:[%s7] sm:$0xff]
        %v5394 = vunpack.c.l.b16 %v5392
        %v5395 = vunpack.c.h.b16 %v5392
        %v5396 = vpack.c.b16 %v5394, %v5394
        %v5397 = vpack.c.b16 %v5395, %v5395
        %vm5399 = vcmask 793600
        %v5401 = vsel %vm5399, %v5397, 0
        %vm5403 = vcmask 1040384
        %v5404 = vsel 0, 4294967295, 65535
        %v5405 = vsel %vm5403, %v5404, 0
        %v5407 = vand.u32 %v5388, %v5405
        %v5410 = vand.u32 %v5389, %v5405
        %v5413 = vand.u32 %v5390, %v5405
        %v5416 = vand.u32 %v5391, %v5405
        %5418 = vmatprep.subr.bf16.mxu0 %v5361
        %5419 = vmatpush1.bf16.msra.mxu0 %v5360
        %5420 = vmatprep.subr.bf16.mxu0 %v5357
        %5421 = vmatpush1.bf16.msra.mxu0 %v5356
        %5422 = vmatprep.subr.bf16.mxu0 %v5353
        %5423 = vmatpush1.bf16.msra.mxu0 %v5352
        %5424 = vmatprep.subr.bf16.mxu0 %v5349
        %5425 = vmatpush1.bf16.msra.mxu0 %v5348
        %5426 = vmatprep.subr.bf16.mxu0 %v5345
        %5427 = vmatpush1.bf16.msra.mxu0 %v5344
        %5428 = vmatprep.subr.bf16.mxu0 %v5341
        %5429 = vmatpush1.bf16.msra.mxu0 %v5340
        %5430 = vmatprep.subr.bf16.mxu0 %v5337
        %5431 = vmatpush1.bf16.msra.mxu0 %v5336
        %5432 = vmatprep.subr.bf16.mxu0 %v5333
        %5433 = vmatpush1.bf16.msra.mxu0 %v5332
        %5434 = vmatprep.subr.bf16.mxu0 0
        %5435 = vmatpush2.bf16.msra.mxu0 0
        %5436 = vmatprep.subr.bf16.mxu0 %v5410
        %5437 = vmatpush2.bf16.msra.mxu0 %v5407
        %5438 = vmatprep.subr.bf16.mxu0 %v5385
        %5439 = vmatpush2.bf16.msra.mxu0 %v5384
        %5440 = vmatprep.subr.bf16.mxu0 %v5381
        %5441 = vmatpush2.bf16.msra.mxu0 %v5380
        %5442 = vmatprep.subr.bf16.mxu0 %v5377
        %5443 = vmatpush2.bf16.msra.mxu0 %v5376
        %5444 = vmatprep.subr.bf16.mxu0 %v5373
        %5445 = vmatpush2.bf16.msra.mxu0 %v5372
        %5446 = vmatprep.subr.bf16.mxu0 %v5369
        %5447 = vmatpush2.bf16.msra.mxu0 %v5368
        %5448 = vmatprep.subr.bf16.mxu0 %v5365
        %5449 = vmatpush2.bf16.msra.mxu0 %v5364
        %5450 = vmatprep.mubr.bf16.mxu0 %v5401
        %5451 = vmatmul.mubr.bf16.gmra.mxu0 %v5396
        %v5452 = vpop.f32.mrf.mxu0
        %v5453 = vadd.f32 0.0, %v5452
        %v5454 = vpop.f32.mrf.mxu0
        %v5455 = vadd.f32 0.0, %v5454
        %v5456 = vpop.f32.mrf.mxu0
        %v5457 = vpop.f32.mrf.mxu0
        %5458 = vdwg.mxu0
        %5459 = vmatprep.subr.bf16.mxu0 %v5363
        %5460 = vmatpush1.bf16.msra.mxu0 %v5362
        %5461 = vmatprep.subr.bf16.mxu0 %v5359
        %5462 = vmatpush1.bf16.msra.mxu0 %v5358
        %5463 = vmatprep.subr.bf16.mxu0 %v5355
        %5464 = vmatpush1.bf16.msra.mxu0 %v5354
        %5465 = vmatprep.subr.bf16.mxu0 %v5351
        %5466 = vmatpush1.bf16.msra.mxu0 %v5350
        %5467 = vmatprep.subr.bf16.mxu0 %v5347
        %5468 = vmatpush1.bf16.msra.mxu0 %v5346
        %5469 = vmatprep.subr.bf16.mxu0 %v5343
        %5470 = vmatpush1.bf16.msra.mxu0 %v5342
        %5471 = vmatprep.subr.bf16.mxu0 %v5339
        %5472 = vmatpush1.bf16.msra.mxu0 %v5338
        %5473 = vmatprep.subr.bf16.mxu0 %v5335
        %5474 = vmatpush1.bf16.msra.mxu0 %v5334
        %5475 = vmatprep.subr.bf16.mxu0 0
        %5476 = vmatpush2.bf16.msra.mxu0 0
        %5477 = vmatprep.subr.bf16.mxu0 %v5416
        %5478 = vmatpush2.bf16.msra.mxu0 %v5413
        %5479 = vmatprep.subr.bf16.mxu0 %v5387
        %5480 = vmatpush2.bf16.msra.mxu0 %v5386
        %5481 = vmatprep.subr.bf16.mxu0 %v5383
        %5482 = vmatpush2.bf16.msra.mxu0 %v5382
        %5483 = vmatprep.subr.bf16.mxu0 %v5379
        %5484 = vmatpush2.bf16.msra.mxu0 %v5378
        %5485 = vmatprep.subr.bf16.mxu0 %v5375
        %5486 = vmatpush2.bf16.msra.mxu0 %v5374
        %5487 = vmatprep.subr.bf16.mxu0 %v5371
        %5488 = vmatpush2.bf16.msra.mxu0 %v5370
        %5489 = vmatprep.subr.bf16.mxu0 %v5367
        %5490 = vmatpush2.bf16.msra.mxu0 %v5366
        %5491 = vmatprep.mubr.bf16.mxu0 %v5401
        %5492 = vmatmul.mubr.bf16.gmra.mxu0 %v5396
        %v5493 = vpop.f32.mrf.mxu0
        %v5494 = vadd.f32 0.0, %v5493
        %v5495 = vpop.f32.mrf.mxu0
        %v5496 = vadd.f32 0.0, %v5495
        %v5497 = vpop.f32.mrf.mxu0
        %v5498 = vpop.f32.mrf.mxu0
        %5499 = vdwg.mxu0
        %v5500 = vpack.c.bf16 %v5453, %v5453
        %v5501 = vpack.c.bf16 %v5455, %v5455
        %v5502 = vpack.c.bf16 %v5494, %v5494
        %v5503 = vpack.c.bf16 %v5496, %v5496
        %v5504 = vld [vmem:[%s8] sm:$0xf]
        %v5505 = vld [vmem:[%s8 + $0x4] sm:$0xf]
        %v5506 = vld [vmem:[%s8 + $0x8] sm:$0xf]
        %v5507 = vld [vmem:[%s8 + $0xc] sm:$0xf]
        %v5508 = vld [vmem:[%s8 + $0x10] sm:$0xf]
        %v5509 = vld [vmem:[%s8 + $0x14] sm:$0xf]
        %v5510 = vld [vmem:[%s8 + $0x18] sm:$0xf]
        %v5511 = vld [vmem:[%s8 + $0x1c] sm:$0xf]
        %v5512 = vld [vmem:[%s8 + $0x20] sm:$0xf]
        %v5513 = vld [vmem:[%s8 + $0x24] sm:$0xf]
        %v5514 = vld [vmem:[%s8 + $0x28] sm:$0xf]
        %v5515 = vld [vmem:[%s8 + $0x2c] sm:$0xf]
        %v5516 = vld [vmem:[%s8 + $0x30] sm:$0xf]
        %v5517 = vld [vmem:[%s8 + $0x34] sm:$0xf]
        %v5518 = vld [vmem:[%s8 + $0x38] sm:$0xf]
        %v5519 = vld [vmem:[%s8 + $0x3c] sm:$0xf]
        %v5520 = vld [vmem:[%s8 + $0x40] sm:$0xf]
        %v5521 = vld [vmem:[%s8 + $0x44] sm:$0xf]
        %v5522 = vld [vmem:[%s8 + $0x48] sm:$0xf]
        %v5523 = vld [vmem:[%s8 + $0x4c] sm:$0xf]
        %v5524 = vld [vmem:[%s8 + $0x50] sm:$0xf]
        %v5525 = vld [vmem:[%s8 + $0x54] sm:$0xf]
        %v5526 = vld [vmem:[%s8 + $0x58] sm:$0xf]
        %v5527 = vld [vmem:[%s8 + $0x5c] sm:$0xf]
        %v5528 = vld [vmem:[%s8 + $0x60] sm:$0xf]
        %v5529 = vld [vmem:[%s8 + $0x64] sm:$0xf]
        %v5530 = vld [vmem:[%s8 + $0x68] sm:$0xf]
        %v5531 = vld [vmem:[%s8 + $0x6c] sm:$0xf]
        %v5532 = vld [vmem:[%s8 + $0x70] sm:$0xf]
        %v5533 = vld [vmem:[%s8 + $0x74] sm:$0xf]
        %v5534 = vld [vmem:[%s8 + $0x78] sm:$0xf]
        %v5535 = vld [vmem:[%s8 + $0x7c] sm:$0xf]
        %v5536 = vld [vmem:[%s8 + $0x80] sm:$0xf]
        %v5537 = vld [vmem:[%s8 + $0x84] sm:$0xf]
        %v5538 = vld [vmem:[%s8 + $0x88] sm:$0xf]
        %v5539 = vld [vmem:[%s8 + $0x8c] sm:$0xf]
        %v5540 = vld [vmem:[%s8 + $0x90] sm:$0xf]
        %v5541 = vld [vmem:[%s8 + $0x94] sm:$0xf]
        %v5542 = vld [vmem:[%s8 + $0x98] sm:$0xf]
        %v5543 = vld [vmem:[%s8 + $0x9c] sm:$0xf]
        %v5544 = vld [vmem:[%s8 + $0xa0] sm:$0xf]
        %v5545 = vld [vmem:[%s8 + $0xa4] sm:$0xf]
        %v5546 = vld [vmem:[%s8 + $0xa8] sm:$0xf]
        %v5547 = vld [vmem:[%s8 + $0xac] sm:$0xf]
        %v5548 = vld [vmem:[%s8 + $0xb0] sm:$0xf]
        %v5549 = vld [vmem:[%s8 + $0xb4] sm:$0xf]
        %v5550 = vld [vmem:[%s8 + $0xb8] sm:$0xf]
        %v5551 = vld [vmem:[%s8 + $0xbc] sm:$0xf]
        %v5552 = vld [vmem:[%s8 + $0xc0] sm:$0xf]
        %v5553 = vld [vmem:[%s8 + $0xc4] sm:$0xf]
        %v5554 = vld [vmem:[%s9] sm:$0x1]
        %v5556 = vlaneseq
        %v5557 = vshrl.u32 %v5556, 7
        %v5558 = vsub.s32 0, %v5557
        %v5559 = vrot.slane %v5554, %v5558
        %v5611 = vunpack.c.l.b16 %v5504
        %v5612 = vunpack.c.l.b16 %v5505
        %v5613 = vunpack.c.l.b16 %v5506
        %v5614 = vunpack.c.l.b16 %v5507
        %v5615 = vunpack.c.l.b16 %v5508
        %v5616 = vunpack.c.l.b16 %v5509
        %v5617 = vunpack.c.l.b16 %v5510
        %v5618 = vunpack.c.l.b16 %v5511
        %v5619 = vunpack.c.l.b16 %v5512
        %v5620 = vunpack.c.l.b16 %v5513
        %v5621 = vunpack.c.l.b16 %v5514
        %v5622 = vunpack.c.l.b16 %v5515
        %v5623 = vunpack.c.l.b16 %v5516
        %v5624 = vunpack.c.l.b16 %v5517
        %v5625 = vunpack.c.l.b16 %v5518
        %v5626 = vunpack.c.l.b16 %v5519
        %v5627 = vunpack.c.l.b16 %v5520
        %v5628 = vunpack.c.l.b16 %v5521
        %v5629 = vunpack.c.l.b16 %v5522
        %v5630 = vunpack.c.l.b16 %v5523
        %v5631 = vunpack.c.l.b16 %v5524
        %v5632 = vunpack.c.l.b16 %v5525
        %v5633 = vunpack.c.l.b16 %v5526
        %v5634 = vunpack.c.l.b16 %v5527
        %v5635 = vunpack.c.l.b16 %v5528
        %v5636 = vunpack.c.l.b16 %v5529
        %v5637 = vunpack.c.l.b16 %v5530
        %v5638 = vunpack.c.l.b16 %v5531
        %v5639 = vunpack.c.l.b16 %v5532
        %v5640 = vunpack.c.l.b16 %v5533
        %v5641 = vunpack.c.l.b16 %v5534
        %v5642 = vunpack.c.l.b16 %v5535
        %v5643 = vunpack.c.l.b16 %v5536
        %v5644 = vunpack.c.l.b16 %v5537
        %v5645 = vunpack.c.l.b16 %v5538
        %v5646 = vunpack.c.l.b16 %v5539
        %v5647 = vunpack.c.l.b16 %v5540
        %v5648 = vunpack.c.l.b16 %v5541
        %v5649 = vunpack.c.l.b16 %v5542
        %v5650 = vunpack.c.l.b16 %v5543
        %v5651 = vunpack.c.l.b16 %v5544
        %v5652 = vunpack.c.l.b16 %v5545
        %v5653 = vunpack.c.l.b16 %v5546
        %v5654 = vunpack.c.l.b16 %v5547
        %v5655 = vunpack.c.l.b16 %v5548
        %v5656 = vunpack.c.l.b16 %v5549
        %v5657 = vunpack.c.l.b16 %v5550
        %v5658 = vunpack.c.l.b16 %v5551
        %v5659 = vunpack.c.l.b16 %v5552
        %v5660 = vunpack.c.l.b16 %v5553
        %v5661 = vpack.c.b16 %v5612, %v5611
        %v5662 = vpack.c.b16 %v5614, %v5613
        %v5663 = vpack.c.b16 %v5616, %v5615
        %v5664 = vpack.c.b16 %v5618, %v5617
        %v5665 = vpack.c.b16 %v5620, %v5619
        %v5666 = vpack.c.b16 %v5622, %v5621
        %v5667 = vpack.c.b16 %v5624, %v5623
        %v5668 = vpack.c.b16 %v5626, %v5625
        %v5669 = vpack.c.b16 %v5628, %v5627
        %v5670 = vpack.c.b16 %v5630, %v5629
        %v5671 = vpack.c.b16 %v5632, %v5631
        %v5672 = vpack.c.b16 %v5634, %v5633
        %v5673 = vpack.c.b16 %v5636, %v5635
        %v5674 = vpack.c.b16 %v5638, %v5637
        %v5675 = vpack.c.b16 %v5640, %v5639
        %v5676 = vpack.c.b16 %v5642, %v5641
        %v5677 = vpack.c.b16 %v5644, %v5643
        %v5678 = vpack.c.b16 %v5646, %v5645
        %v5679 = vpack.c.b16 %v5648, %v5647
        %v5680 = vpack.c.b16 %v5650, %v5649
        %v5681 = vpack.c.b16 %v5652, %v5651
        %v5682 = vpack.c.b16 %v5654, %v5653
        %v5683 = vpack.c.b16 %v5656, %v5655
        %v5684 = vpack.c.b16 %v5658, %v5657
        %v5685 = vpack.c.b16 %v5660, %v5659
        %vm5711 = vcmask 130048
        %v5713 = vsel %vm5711, %v5503, 0
        %5715 = vmatprep.subr.bf16.mxu0 0
        %5716 = vmatpush1.bf16.msra.mxu0 %v5668
        %5717 = vmatprep.subr.bf16.mxu0 0
        %5718 = vmatpush1.bf16.msra.mxu0 %v5667
        %5719 = vmatprep.subr.bf16.mxu0 0
        %5720 = vmatpush1.bf16.msra.mxu0 %v5666
        %5721 = vmatprep.subr.bf16.mxu0 0
        %5722 = vmatpush1.bf16.msra.mxu0 %v5665
        %5723 = vmatprep.subr.bf16.mxu0 0
        %5724 = vmatpush1.bf16.msra.mxu0 %v5664
        %5725 = vmatprep.subr.bf16.mxu0 0
        %5726 = vmatpush1.bf16.msra.mxu0 %v5663
        %5727 = vmatprep.subr.bf16.mxu0 0
        %5728 = vmatpush1.bf16.msra.mxu0 %v5662
        %5729 = vmatprep.subr.bf16.mxu0 0
        %5730 = vmatpush1.bf16.msra.mxu0 %v5661
        %5731 = vmatprep.subr.bf16.mxu0 0
        %5732 = vmatpush2.bf16.msra.mxu0 %v5676
        %5733 = vmatprep.subr.bf16.mxu0 0
        %5734 = vmatpush2.bf16.msra.mxu0 %v5675
        %5735 = vmatprep.subr.bf16.mxu0 0
        %5736 = vmatpush2.bf16.msra.mxu0 %v5674
        %5737 = vmatprep.subr.bf16.mxu0 0
        %5738 = vmatpush2.bf16.msra.mxu0 %v5673
        %5739 = vmatprep.subr.bf16.mxu0 0
        %5740 = vmatpush2.bf16.msra.mxu0 %v5672
        %5741 = vmatprep.subr.bf16.mxu0 0
        %5742 = vmatpush2.bf16.msra.mxu0 %v5671
        %5743 = vmatprep.subr.bf16.mxu0 0
        %5744 = vmatpush2.bf16.msra.mxu0 %v5670
        %5745 = vmatprep.subr.bf16.mxu0 0
        %5746 = vmatpush2.bf16.msra.mxu0 %v5669
        %5747 = vmatprep.mubr.bf16.mxu0 %v5501
        %5748 = vmatmul.mubr.bf16.gmra.mxu0 %v5500
        %v5749 = vpop.f32.mrf.mxu0
        %v5750 = vadd.f32 %v5559, %v5749
        %v5751 = vpop.f32.mrf.mxu0
        %v5752 = vpop.f32.mrf.mxu0
        %v5753 = vpop.f32.mrf.mxu0
        %5754 = vdwg.mxu0
        %5755 = vmatprep.subr.bf16.mxu0 0
        %5756 = vmatpush1.bf16.msra.mxu0 %v5684
        %5757 = vmatprep.subr.bf16.mxu0 0
        %5758 = vmatpush1.bf16.msra.mxu0 %v5683
        %5759 = vmatprep.subr.bf16.mxu0 0
        %5760 = vmatpush1.bf16.msra.mxu0 %v5682
        %5761 = vmatprep.subr.bf16.mxu0 0
        %5762 = vmatpush1.bf16.msra.mxu0 %v5681
        %5763 = vmatprep.subr.bf16.mxu0 0
        %5764 = vmatpush1.bf16.msra.mxu0 %v5680
        %5765 = vmatprep.subr.bf16.mxu0 0
        %5766 = vmatpush1.bf16.msra.mxu0 %v5679
        %5767 = vmatprep.subr.bf16.mxu0 0
        %5768 = vmatpush1.bf16.msra.mxu0 %v5678
        %5769 = vmatprep.subr.bf16.mxu0 0
        %5770 = vmatpush1.bf16.msra.mxu0 %v5677
        %5771 = vmatprep.subr.bf16.mxu0 0
        %5772 = vmatpush2.bf16.msra.mxu0 0
        %5773 = vmatprep.subr.bf16.mxu0 0
        %5774 = vmatpush2.bf16.msra.mxu0 0
        %5775 = vmatprep.subr.bf16.mxu0 0
        %5776 = vmatpush2.bf16.msra.mxu0 0
        %5777 = vmatprep.subr.bf16.mxu0 0
        %5778 = vmatpush2.bf16.msra.mxu0 0
        %5779 = vmatprep.subr.bf16.mxu0 0
        %5780 = vmatpush2.bf16.msra.mxu0 0
        %5781 = vmatprep.subr.bf16.mxu0 0
        %5782 = vmatpush2.bf16.msra.mxu0 0
        %5783 = vmatprep.subr.bf16.mxu0 0
        %5784 = vmatpush2.bf16.msra.mxu0 0
        %5785 = vmatprep.subr.bf16.mxu0 0
        %5786 = vmatpush2.bf16.msra.mxu0 %v5685
        %5787 = vmatprep.mubr.bf16.mxu0 %v5713
        %5788 = vmatmul.mubr.bf16.gmra.mxu0 %v5502
        %v5789 = vpop.f32.mrf.mxu0
        %v5790 = vadd.f32 %v5750, %v5789
        %v5791 = vpop.f32.mrf.mxu0
        %v5792 = vpop.f32.mrf.mxu0
        %v5793 = vpop.f32.mrf.mxu0
        %5794 = vdwg.mxu0
        %v5795 = vtanh.pop %v5790
        %v5796 = vpack.c.bf16 %v5795, %v5795
        %v5797 = vld [vmem:[%s10] sm:$0xf]
        %v5798 = vld [vmem:[%s10 + $0x4] sm:$0xf]
        %v5799 = vld [vmem:[%s10 + $0x8] sm:$0xf]
        %v5800 = vld [vmem:[%s10 + $0xc] sm:$0xf]
        %v5801 = vld [vmem:[%s10 + $0x10] sm:$0xf]
        %v5802 = vld [vmem:[%s10 + $0x14] sm:$0xf]
        %v5803 = vld [vmem:[%s10 + $0x18] sm:$0xf]
        %v5804 = vld [vmem:[%s10 + $0x1c] sm:$0xf]
        %v5805 = vld [vmem:[%s10 + $0x20] sm:$0xf]
        %v5806 = vld [vmem:[%s10 + $0x24] sm:$0xf]
        %v5807 = vld [vmem:[%s10 + $0x28] sm:$0xf]
        %v5808 = vld [vmem:[%s10 + $0x2c] sm:$0xf]
        %v5809 = vld [vmem:[%s10 + $0x30] sm:$0xf]
        %v5810 = vld [vmem:[%s10 + $0x34] sm:$0xf]
        %v5811 = vld [vmem:[%s10 + $0x38] sm:$0xf]
        %v5812 = vld [vmem:[%s11] sm:$0x1]
        %v5814 = vlaneseq
        %v5815 = vshrl.u32 %v5814, 7
        %v5816 = vsub.s32 0, %v5815
        %v5817 = vrot.slane %v5812, %v5816
        %v5834 = vunpack.c.l.b16 %v5797
        %v5835 = vunpack.c.l.b16 %v5798
        %v5836 = vunpack.c.l.b16 %v5799
        %v5837 = vunpack.c.l.b16 %v5800
        %v5838 = vunpack.c.l.b16 %v5801
        %v5839 = vunpack.c.l.b16 %v5802
        %v5840 = vunpack.c.l.b16 %v5803
        %v5841 = vunpack.c.l.b16 %v5804
        %v5842 = vunpack.c.l.b16 %v5805
        %v5843 = vunpack.c.l.b16 %v5806
        %v5844 = vunpack.c.l.b16 %v5807
        %v5845 = vunpack.c.l.b16 %v5808
        %v5846 = vunpack.c.l.b16 %v5809
        %v5847 = vunpack.c.l.b16 %v5810
        %v5848 = vunpack.c.l.b16 %v5811
        %v5849 = vpack.c.b16 %v5835, %v5834
        %v5850 = vpack.c.b16 %v5837, %v5836
        %v5851 = vpack.c.b16 %v5839, %v5838
        %v5852 = vpack.c.b16 %v5841, %v5840
        %v5853 = vpack.c.b16 %v5843, %v5842
        %v5854 = vpack.c.b16 %v5845, %v5844
        %v5855 = vpack.c.b16 %v5847, %v5846
        %v5856 = vpack.c.b16 %v5848, %v5848
        %vm5864 = vcmask 982016
        %v5866 = vsel %vm5864, %v5796, 0
        %v5869 = vsel %vm1013, %v5856, 0
        %5871 = vmatprep.subr.bf16.mxu0 0
        %5872 = vmatpush1.bf16.msra.mxu0 %v5869
        %5873 = vmatprep.subr.bf16.mxu0 0
        %5874 = vmatpush1.bf16.msra.mxu0 %v5855
        %5875 = vmatprep.subr.bf16.mxu0 0
        %5876 = vmatpush1.bf16.msra.mxu0 %v5854
        %5877 = vmatprep.subr.bf16.mxu0 0
        %5878 = vmatpush1.bf16.msra.mxu0 %v5853
        %5879 = vmatprep.subr.bf16.mxu0 0
        %5880 = vmatpush1.bf16.msra.mxu0 %v5852
        %5881 = vmatprep.subr.bf16.mxu0 0
        %5882 = vmatpush1.bf16.msra.mxu0 %v5851
        %5883 = vmatprep.subr.bf16.mxu0 0
        %5884 = vmatpush1.bf16.msra.mxu0 %v5850
        %5885 = vmatprep.subr.bf16.mxu0 0
        %5886 = vmatpush1.bf16.msra.mxu0 %v5849
        %5887 = vmatprep.subr.bf16.mxu0 0
        %5888 = vmatpush2.bf16.msra.mxu0 0
        %5889 = vmatprep.subr.bf16.mxu0 0
        %5890 = vmatpush2.bf16.msra.mxu0 0
        %5891 = vmatprep.subr.bf16.mxu0 0
        %5892 = vmatpush2.bf16.msra.mxu0 0
        %5893 = vmatprep.subr.bf16.mxu0 0
        %5894 = vmatpush2.bf16.msra.mxu0 0
        %5895 = vmatprep.subr.bf16.mxu0 0
        %5896 = vmatpush2.bf16.msra.mxu0 0
        %5897 = vmatprep.subr.bf16.mxu0 0
        %5898 = vmatpush2.bf16.msra.mxu0 0
        %5899 = vmatprep.subr.bf16.mxu0 0
        %5900 = vmatpush2.bf16.msra.mxu0 0
        %5901 = vmatprep.subr.bf16.mxu0 0
        %5902 = vmatpush2.bf16.msra.mxu0 0
        %5903 = vmatprep.mubr.bf16.mxu0 0
        %5904 = vmatmul.mubr.bf16.gmra.mxu0 %v5866
        %v5905 = vpop.f32.mrf.mxu0
        %v5906 = vadd.f32 %v5817, %v5905
        %v5907 = vpop.f32.mrf.mxu0
        %v5908 = vpop.f32.mrf.mxu0
        %v5909 = vpop.f32.mrf.mxu0
        %5910 = vdwg.mxu0
        %v5911 = vtanh.pop %v5906
        %v5912 = vpack.c.bf16 %v5911, %v5911
        %v5913 = vld [vmem:[%s12] sm:$0xf]
        %v5914 = vld [vmem:[%s12 + $0x4] sm:$0xf]
        %v5915 = vld [vmem:[%s12 + $0x8] sm:$0xf]
        %v5916 = vld [vmem:[%s12 + $0xc] sm:$0xf]
        %v5917 = vld [vmem:[%s12 + $0x10] sm:$0xf]
        %v5918 = vld [vmem:[%s12 + $0x14] sm:$0xf]
        %v5919 = vld [vmem:[%s12 + $0x18] sm:$0xf]
        %v5920 = vld [vmem:[%s12 + $0x1c] sm:$0xf]
        %v5921 = vld [vmem:[%s12 + $0x20] sm:$0xf]
        %v5922 = vld [vmem:[%s12 + $0x24] sm:$0xf]
        %v5923 = vld [vmem:[%s12 + $0x28] sm:$0x3]
        %v5924 = vld [vmem:[%s13] sm:$0x1]
        %v5926 = vlaneseq
        %v5927 = vshrl.u32 %v5926, 7
        %v5928 = vsub.s32 0, %v5927
        %v5929 = vrot.slane %v5924, %v5928
        %v5942 = vunpack.c.l.b16 %v5913
        %v5943 = vunpack.c.l.b16 %v5914
        %v5944 = vunpack.c.l.b16 %v5915
        %v5945 = vunpack.c.l.b16 %v5916
        %v5946 = vunpack.c.l.b16 %v5917
        %v5947 = vunpack.c.l.b16 %v5918
        %v5948 = vunpack.c.l.b16 %v5919
        %v5949 = vunpack.c.l.b16 %v5920
        %v5950 = vunpack.c.l.b16 %v5921
        %v5951 = vunpack.c.l.b16 %v5922
        %v5952 = vunpack.c.l.b16 %v5923
        %v5953 = vpack.c.b16 %v5943, %v5942
        %v5954 = vpack.c.b16 %v5945, %v5944
        %v5955 = vpack.c.b16 %v5947, %v5946
        %v5956 = vpack.c.b16 %v5949, %v5948
        %v5957 = vpack.c.b16 %v5951, %v5950
        %v5958 = vpack.c.b16 %v5952, %v5952
        %v5965 = vsel %vm3252, %v5912, 0
        %v5968 = vsel %vm3002, %v5958, 0
        %5970 = vmatprep.subr.bf16.mxu0 0
        %5971 = vmatpush1.bf16.msra.mxu0 0
        %5972 = vmatprep.subr.bf16.mxu0 0
        %5973 = vmatpush1.bf16.msra.mxu0 0
        %5974 = vmatprep.subr.bf16.mxu0 0
        %5975 = vmatpush1.bf16.msra.mxu0 %v5968
        %5976 = vmatprep.subr.bf16.mxu0 0
        %5977 = vmatpush1.bf16.msra.mxu0 %v5957
        %5978 = vmatprep.subr.bf16.mxu0 0
        %5979 = vmatpush1.bf16.msra.mxu0 %v5956
        %5980 = vmatprep.subr.bf16.mxu0 0
        %5981 = vmatpush1.bf16.msra.mxu0 %v5955
        %5982 = vmatprep.subr.bf16.mxu0 0
        %5983 = vmatpush1.bf16.msra.mxu0 %v5954
        %5984 = vmatprep.subr.bf16.mxu0 0
        %5985 = vmatpush1.bf16.msra.mxu0 %v5953
        %5986 = vmatprep.subr.bf16.mxu0 0
        %5987 = vmatpush2.bf16.msra.mxu0 0
        %5988 = vmatprep.subr.bf16.mxu0 0
        %5989 = vmatpush2.bf16.msra.mxu0 0
        %5990 = vmatprep.subr.bf16.mxu0 0
        %5991 = vmatpush2.bf16.msra.mxu0 0
        %5992 = vmatprep.subr.bf16.mxu0 0
        %5993 = vmatpush2.bf16.msra.mxu0 0
        %5994 = vmatprep.subr.bf16.mxu0 0
        %5995 = vmatpush2.bf16.msra.mxu0 0
        %5996 = vmatprep.subr.bf16.mxu0 0
        %5997 = vmatpush2.bf16.msra.mxu0 0
        %5998 = vmatprep.subr.bf16.mxu0 0
        %5999 = vmatpush2.bf16.msra.mxu0 0
        %6000 = vmatprep.subr.bf16.mxu0 0
        %6001 = vmatpush2.bf16.msra.mxu0 0
        %6002 = vmatprep.mubr.bf16.mxu0 0
        %6003 = vmatmul.mubr.bf16.gmra.mxu0 %v5965
        %v6004 = vpop.f32.mrf.mxu0
        %v6005 = vadd.f32 %v5929, %v6004
        %v6006 = vpop.f32.mrf.mxu0
        %v6007 = vpop.f32.mrf.mxu0
        %v6008 = vpop.f32.mrf.mxu0
        %6009 = vdwg.mxu0
        %vm6010 = vcmask 80896
        %6011 = vst.msk [vmem:[%s461] sm:$0xff] %vm6010, %v6005
        %s6012 = sand.u32 %s335, 1
        %s6013 = scalar_lea.sflag [#allocation3], %s6012
        %s6014 = sand.u32 %s335, 1
        %s6015 = smul.addr %s6014, 8
        %s6016 = scalar_lea.vmem [#allocation2], %s6015
        // Predicated region
        $region77: #{lenet_forward.1} parent=75 // pred_check
          %p6017 = pneg %p345
        $region78: #{lenet_forward.1} parent=75 // pred_check_branch
          %6019 = sbr.rel (%p6017) target = $region80
        $region79: #{lenet_forward.1} parent=75 // pred_region
          %s6021 = ssub.s32 128, 128
          %6022 = vsyncadd %s6013, %s6021
          %s6023 = smul.addr %s28, 128
          %s6024 = scalar_lea.hbm %s14, %s6023
          %s6026 = sshll.u32 %s6016, 4
          %s6027 = int_to_ptr.vmem [resolvable:$true] %s6026
          %6029 = dma.vmem_to_hbm [thread:$0]  %s6027, 128, %s6024, %s6013
        $region80: #{lenet_forward.1} parent=75 // pred_fallthru
          _
      $region76: #{lenet_forward.1} parent=5 // pred_fallthru
        _
      %p6030 = scmp.le.s32.totalorder 2, %s23
      // Predicated region
      $region81: #{lenet_forward.1} parent=5 // pred_check
        %p6031 = pneg %p6030
      $region82: #{lenet_forward.1} parent=5 // pred_check_branch
        %6033 = sbr.rel (%p6031) target = $region84
      $region83: #{lenet_forward.1} parent=5 // pred_region
        %s6034 = ssub.s32 %s23, 2
        // Predicated region
        $region85: #{lenet_forward.1} parent=83 // pred_check
          %p6035 = pneg %p351
        $region86: #{lenet_forward.1} parent=83 // pred_check_branch
          %6037 = sbr.rel (%p6035) target = $region88
        $region87: #{lenet_forward.1} parent=83 // pred_region
          %s6038 = sand.u32 %s336, 1
          %s6039 = scalar_lea.sflag [#allocation3], %s6038
          %s6040 = sand.u32 %s336, 1
          %s6041 = smul.addr %s6040, 8
          %s6042 = scalar_lea.vmem [#allocation2], %s6041
          %6043 = dma.done %s6039, 128
        $region88: #{lenet_forward.1} parent=83 // pred_fallthru
          _
      $region84: #{lenet_forward.1} parent=5 // pred_fallthru
        _
    $region6: #{lenet_forward.1} parent=1 // loop_footer
      %s27 = sadd.s32 1, %s23
    $region7: #{lenet_forward.1} parent=1 // loop_footer_branch
      %22 = sbr.rel target = $region3
    $region8: #{lenet_forward.1} parent=1 // loop_exit
      _
    %6044 = vsyncpa [#allocation3], 1
    %s6045 = scalar_lea.sflag [#allocation3], 1
    %6046 = vsyncpa %s6045, 1

</llo_original>
